<compile_context>
chip_gen: v6e
topology: v6e:2x2x1
jax: 0.10.0
libtpu: 0.0.40
codegen_flags: <defaults>
</compile_context>

<pallas_src>
import jax
import jax.numpy as jnp
from jax import lax
from jax.experimental import pallas as pl
from jax.experimental.pallas import tpu as pltpu


# ---------------------------------------------------------------------------
# Fused Pallas kernel: 3 branches + head for one batch tile of TB samples.
# ---------------------------------------------------------------------------
def _regnet_fused_kernel(
    px_ref, py_ref, pz_ref,
    w01_ref, b01_ref, w02_ref, b02_ref, fw0_ref, fb0_ref,
    w11_ref, b11_ref, w12_ref, b12_ref, fw1_ref, fb1_ref,
    w21_ref, b21_ref, w22_ref, b22_ref,
    fw3_ref, fb3_ref, fw4_ref, fb4_ref,
    out_ref,
):
    tb = out_ref.shape[0]          # batch-tile size
    r = px_ref.shape[0]            # tb * 64 stacked conv rows
    assert r == tb * 64

    # Constant 0/1 selector matrices (built once, shared by all 3 branches).
    #   lsel[b, rr] = 1  iff  rr // 64 == b      (shape (TB, R))
    #   qsel[rr, j] = 1  iff  rr %  64 == j      (shape (R, 64))
    # Together they express the "(R,1) -> (TB,64)" regrouping as MXU matmuls,
    # avoiding a Mosaic reshape / XLU transpose.
    rr_ids = lax.broadcasted_iota(jnp.int32, (tb, r), 1)
    bb_ids = lax.broadcasted_iota(jnp.int32, (tb, r), 0) * 64
    lsel = jnp.where(
        jnp.logical_and(rr_ids >= bb_ids, rr_ids < bb_ids + 64), 1.0, 0.0
    ).astype(jnp.float32)
    qr_ids = lax.broadcasted_iota(jnp.int32, (r, 64), 0)
    qc_ids = lax.broadcasted_iota(jnp.int32, (r, 64), 1)
    qsel = jnp.where(jnp.bitwise_and(qr_ids, 63) == qc_ids, 1.0, 0.0).astype(
        jnp.float32
    )

    def branch(p_ref, w1_ref, b1_ref, w2_ref, b2_ref, fw_ref, fb_ref):
        # conv[Kh,1] (1->64 ch) as one big im2col matmul over the whole tile.
        h = jnp.dot(p_ref[...], w1_ref[...],
                    preferred_element_type=jnp.float32) + b1_ref[...]
        h = jnp.maximum(h, 0.0)                               # (R, 64)
        # 1x1 conv (64 -> 1 ch)
        s = jnp.dot(h, w2_ref[...],
                    preferred_element_type=jnp.float32) + b2_ref[...]
        s = jnp.maximum(s, 0.0)                               # (R, 1)
        # Regroup the R = TB*64 scalars into (TB, 64) via selector matmul:
        # S[b, j] = s[b*64 + j]  (== torch.flatten(conv_out, 1)).
        s_mat = jnp.dot(lsel, s * qsel,
                        preferred_element_type=jnp.float32)   # (TB, 64)
        # Linear(64, 64) + ReLU for the whole tile in one matmul.
        fc = jnp.dot(s_mat, fw_ref[...],
                     preferred_element_type=jnp.float32) + fb_ref[...]
        return jnp.maximum(fc, 0.0)                           # (TB, 64)
        # TODO(synk): Dropout2d(0.15) after each branch fc is identity (eval).

    xf = branch(px_ref, w01_ref, b01_ref, w02_ref, b02_ref, fw0_ref, fb0_ref)
    yf = branch(py_ref, w11_ref, b11_ref, w12_ref, b12_ref, fw1_ref, fb1_ref)
    # z branch reuses fc1 weights/bias, exactly as in the PyTorch forward().
    zf = branch(pz_ref, w21_ref, b21_ref, w22_ref, b22_ref, fw1_ref, fb1_ref)

    # Head: fc3 on cat([x, y, z], dim=1) expressed as 3 partial matmuls using
    # static row-slices of the (192, 64) weight (avoids an in-kernel concat).
    h3 = (jnp.dot(xf, fw3_ref[0:64, :], preferred_element_type=jnp.float32)
          + jnp.dot(yf, fw3_ref[64:128, :], preferred_element_type=jnp.float32)
          + jnp.dot(zf, fw3_ref[128:192, :], preferred_element_type=jnp.float32)
          + fb3_ref[...])
    # TODO(synk): Dropout2d(0.5) before fc4 is identity (eval mode).
    o = jnp.dot(h3, fw4_ref[...],
                preferred_element_type=jnp.float32) + fb4_ref[...]   # (TB, 1)
    # Lane-dense store: broadcast the single output column across 128 lanes so
    # every store is a full, unmasked vreg write.  Wrapper slices column 0.
    out_ref[...] = jnp.broadcast_to(o, out_ref.shape)


# ---------------------------------------------------------------------------
# Glue: im2col for [Kh, 1] convs, wrapper, parameter init, reference.
# ---------------------------------------------------------------------------
def im2col_h(x, kh):
    """x: (B, 1, H, W) NCHW; conv kernel (kh, 1), stride 1, no padding.
    Returns patches (B, Hout*W, kh); row order matches PyTorch flatten(1)."""
    B, C, H, W = x.shape
    assert C == 1
    hout = H - kh + 1
    p = x[:, 0]                                                  # (B, H, W)
    idx = jnp.arange(hout)[:, None] + jnp.arange(kh)[None, :]    # (Hout, kh)
    win = p[:, idx, :]                                           # (B, Hout, kh, W)
    patches = jnp.transpose(win, (0, 1, 3, 2))                   # (B, Hout, W, kh)
    return patches.reshape(B, hout * W, kh)


def regnet_forward(x, y, z, p, tb=8):
    """Fused forward pass. tb = batch tile per grid step (tb*64 matmul rows)."""
    B = x.shape[0]
    px = im2col_h(x, 30).reshape(B * 64, 30)
    py = im2col_h(y, 10).reshape(B * 64, 10)
    pz = im2col_h(z, 100).reshape(B * 64, 100)

    grid_n = pl.cdiv(B, tb)
    b_pad = grid_n * tb
    if b_pad != B:
        pad_rows = (b_pad - B) * 64
        px = jnp.pad(px, ((0, pad_rows), (0, 0)))
        py = jnp.pad(py, ((0, pad_rows), (0, 0)))
        pz = jnp.pad(pz, ((0, pad_rows), (0, 0)))
    r = tb * 64

    wspec = lambda shape: pl.BlockSpec(shape, lambda i: (0, 0))  # grid-invariant

    out = pl.pallas_call(
        _regnet_fused_kernel,
        out_shape=jax.ShapeDtypeStruct((b_pad, 128), jnp.float32),
        grid=(grid_n,),
        in_specs=[
            pl.BlockSpec((r, 30), lambda i: (i, 0)),
            pl.BlockSpec((r, 10), lambda i: (i, 0)),
            pl.BlockSpec((r, 100), lambda i: (i, 0)),
            # branch 0 (x): conv0_1, conv0_2, fc0
            wspec((30, 64)), wspec((1, 64)), wspec((64, 1)), wspec((1, 1)),
            wspec((64, 64)), wspec((1, 64)),
            # branch 1 (y): conv1_1, conv1_2, fc1
            wspec((10, 64)), wspec((1, 64)), wspec((64, 1)), wspec((1, 1)),
            wspec((64, 64)), wspec((1, 64)),
            # branch 2 (z): conv2_1, conv2_2 (fc reuses fc1)
            wspec((100, 64)), wspec((1, 64)), wspec((64, 1)), wspec((1, 1)),
            # head: fc3, fc4
            wspec((192, 64)), wspec((1, 64)), wspec((64, 1)), wspec((1, 1)),
        ],
        out_specs=pl.BlockSpec((tb, 128), lambda i: (i, 0)),
        compiler_params=pltpu.CompilerParams(
            dimension_semantics=("parallel",)),
    )(
        px, py, pz,
        p["w0_1"], p["b0_1"], p["w0_2"], p["b0_2"], p["fw0"], p["fb0"],
        p["w1_1"], p["b1_1"], p["w1_2"], p["b1_2"], p["fw1"], p["fb1"],
        p["w2_1"], p["b2_1"], p["w2_2"], p["b2_2"],
        p["fw3"], p["fb3"], p["fw4"], p["fb4"],
    )
    return out[:B, 0]                                            # == f.view(-1)


def kaiming_normal(key, shape, fan_in):
    return (2.0 / fan_in) ** 0.5 * jax.random.normal(key, shape, dtype=jnp.float32)


def init_params(key):
    ks = jax.random.split(key, 20)
    p = {}
    # conv weights stored directly in matmul layout (Kh, 64) / (64, 1);
    # fc weights stored as (in, out).
    p["w0_1"] = kaiming_normal(ks[0], (30, 64), 30)     # conv0_1 (1->64, [30,1])
    p["w0_2"] = kaiming_normal(ks[1], (64, 1), 64)      # conv0_2 (64->1, 1x1)
    p["fw0"] = kaiming_normal(ks[2], (64, 64), 64)      # fc0
    p["w1_1"] = kaiming_normal(ks[3], (10, 64), 10)     # conv1_1 (1->64, [10,1])
    p["w1_2"] = kaiming_normal(ks[4], (64, 1), 64)      # conv1_2
    p["fw1"] = kaiming_normal(ks[5], (64, 64), 64)      # fc1 (also used by z branch)
    p["w2_1"] = kaiming_normal(ks[6], (100, 64), 100)   # conv2_1 (1->64, [100,1])
    p["w2_2"] = kaiming_normal(ks[7], (64, 1), 64)      # conv2_2
    p["fw3"] = kaiming_normal(ks[8], (192, 64), 192)    # fc3
    p["fw4"] = kaiming_normal(ks[9], (64, 1), 64)       # fc4
    # TODO(synk): fc2 exists in the module but is never used by forward() — omitted.
    # kaiming_init zero-fills biases; we use small random biases so the
    # correctness check exercises every bias-add path of the kernel.
    bias = lambda k, n: 0.1 * jax.random.normal(k, (1, n), dtype=jnp.float32)
    p["b0_1"], p["b0_2"], p["fb0"] = bias(ks[10], 64), bias(ks[11], 1), bias(ks[12], 64)
    p["b1_1"], p["b1_2"], p["fb1"] = bias(ks[13], 64), bias(ks[14], 1), bias(ks[15], 64)
    p["b2_1"], p["b2_2"] = bias(ks[16], 64), bias(ks[17], 1)
    p["fb3"], p["fb4"] = bias(ks[18], 64), bias(ks[19], 1)
    return p


def regnet_forward_ref(x, y, z, p):
    """Pure-JAX reference (includes all bias adds)."""
    hp = lax.Precision.HIGHEST

    def branch(inp, kh, w1, b1, w2, b2, fw, fb):
        pat = im2col_h(inp, kh)                                  # (B, 64, kh)
        h = jnp.maximum(jnp.einsum("bsk,kc->bsc", pat, w1, precision=hp) + b1[None], 0.0)
        s = jnp.maximum(jnp.einsum("bsc,co->bso", h, w2, precision=hp) + b2[None], 0.0)[..., 0]
        return jnp.maximum(jnp.dot(s, fw, precision=hp) + fb, 0.0)

    xf = branch(x, 30, p["w0_1"], p["b0_1"], p["w0_2"], p["b0_2"], p["fw0"], p["fb0"])
    yf = branch(y, 10, p["w1_1"], p["b1_1"], p["w1_2"], p["b1_2"], p["fw1"], p["fb1"])
    zf = branch(z, 100, p["w2_1"], p["b2_1"], p["w2_2"], p["b2_2"], p["fw1"], p["fb1"])
    f = jnp.concatenate([xf, yf, zf], axis=1)                    # (B, 192)
    h3 = jnp.dot(f, p["fw3"], precision=hp) + p["fb3"]
    return (jnp.dot(h3, p["fw4"], precision=hp) + p["fb4"]).reshape(-1)


if __name__ == "__main__":
    key = jax.random.PRNGKey(0)
    kx, ky, kz, kp = jax.random.split(key, 4)

    B, W = 2, 8
    # heights chosen so each conv output flattens to exactly 64 features
    x = jax.random.normal(kx, (B, 1, 30 + W - 1, W), dtype=jnp.float32)   # (2,1,37,8)
    y = jax.random.normal(ky, (B, 1, 10 + W - 1, W), dtype=jnp.float32)   # (2,1,17,8)
    z = jax.random.normal(kz, (B, 1, 100 + W - 1, W), dtype=jnp.float32)  # (2,1,107,8)

    params = init_params(kp)

    out = jax.block_until_ready(regnet_forward(x, y, z, params))
    ref = regnet_forward_ref(x, y, z, params)

    assert out.shape == (B,), out.shape
    assert jnp.allclose(out, ref, rtol=1e-3, atol=1e-3), (out, ref)

    print("KERNEL_OK")
</pallas_src>

<mosaic_0001>
module attributes {stable_mosaic.version = 11 : i64} {
  func.func @_regnet_fused_kernel(%arg0: i32, %arg1: memref<512x30xf32, #tpu.memory_space<vmem>>, %arg2: memref<512x10xf32, #tpu.memory_space<vmem>>, %arg3: memref<512x100xf32, #tpu.memory_space<vmem>>, %arg4: memref<30x64xf32, #tpu.memory_space<vmem>>, %arg5: memref<1x64xf32, #tpu.memory_space<vmem>>, %arg6: memref<64x1xf32, #tpu.memory_space<vmem>>, %arg7: memref<1x1xf32, #tpu.memory_space<vmem>>, %arg8: memref<64x64xf32, #tpu.memory_space<vmem>>, %arg9: memref<1x64xf32, #tpu.memory_space<vmem>>, %arg10: memref<10x64xf32, #tpu.memory_space<vmem>>, %arg11: memref<1x64xf32, #tpu.memory_space<vmem>>, %arg12: memref<64x1xf32, #tpu.memory_space<vmem>>, %arg13: memref<1x1xf32, #tpu.memory_space<vmem>>, %arg14: memref<64x64xf32, #tpu.memory_space<vmem>>, %arg15: memref<1x64xf32, #tpu.memory_space<vmem>>, %arg16: memref<100x64xf32, #tpu.memory_space<vmem>>, %arg17: memref<1x64xf32, #tpu.memory_space<vmem>>, %arg18: memref<64x1xf32, #tpu.memory_space<vmem>>, %arg19: memref<1x1xf32, #tpu.memory_space<vmem>>, %arg20: memref<192x64xf32, #tpu.memory_space<vmem>>, %arg21: memref<1x64xf32, #tpu.memory_space<vmem>>, %arg22: memref<64x1xf32, #tpu.memory_space<vmem>>, %arg23: memref<1x1xf32, #tpu.memory_space<vmem>>, %arg24: memref<8x128xf32, #tpu.memory_space<vmem>>) attributes {dimension_semantics = [#tpu.dimension_semantics<parallel>], iteration_bounds = array<i64: 1>, scalar_prefetch = 0 : i64, scratch_operands = 0 : i64, tpu.core_type = #tpu.core_type<tc>, window_params = [{transform_indices = @transform_0, window_bounds = array<i64: 512, 30>}, {transform_indices = @transform_1, window_bounds = array<i64: 512, 10>}, {transform_indices = @transform_2, window_bounds = array<i64: 512, 100>}, {pipeline_mode = #tpu.pipeline_mode<synchronous>, transform_indices = @transform_3, window_bounds = array<i64: 30, 64>}, {pipeline_mode = #tpu.pipeline_mode<synchronous>, transform_indices = @transform_4, window_bounds = array<i64: 1, 64>}, {pipeline_mode = #tpu.pipeline_mode<synchronous>, transform_indices = @transform_5, window_bounds = array<i64: 64, 1>}, {pipeline_mode = #tpu.pipeline_mode<synchronous>, transform_indices = @transform_6, window_bounds = array<i64: 1, 1>}, {pipeline_mode = #tpu.pipeline_mode<synchronous>, transform_indices = @transform_7, window_bounds = array<i64: 64, 64>}, {pipeline_mode = #tpu.pipeline_mode<synchronous>, transform_indices = @transform_8, window_bounds = array<i64: 1, 64>}, {pipeline_mode = #tpu.pipeline_mode<synchronous>, transform_indices = @transform_9, window_bounds = array<i64: 10, 64>}, {pipeline_mode = #tpu.pipeline_mode<synchronous>, transform_indices = @transform_10, window_bounds = array<i64: 1, 64>}, {pipeline_mode = #tpu.pipeline_mode<synchronous>, transform_indices = @transform_11, window_bounds = array<i64: 64, 1>}, {pipeline_mode = #tpu.pipeline_mode<synchronous>, transform_indices = @transform_12, window_bounds = array<i64: 1, 1>}, {pipeline_mode = #tpu.pipeline_mode<synchronous>, transform_indices = @transform_13, window_bounds = array<i64: 64, 64>}, {pipeline_mode = #tpu.pipeline_mode<synchronous>, transform_indices = @transform_14, window_bounds = array<i64: 1, 64>}, {pipeline_mode = #tpu.pipeline_mode<synchronous>, transform_indices = @transform_15, window_bounds = array<i64: 100, 64>}, {pipeline_mode = #tpu.pipeline_mode<synchronous>, transform_indices = @transform_16, window_bounds = array<i64: 1, 64>}, {pipeline_mode = #tpu.pipeline_mode<synchronous>, transform_indices = @transform_17, window_bounds = array<i64: 64, 1>}, {pipeline_mode = #tpu.pipeline_mode<synchronous>, transform_indices = @transform_18, window_bounds = array<i64: 1, 1>}, {pipeline_mode = #tpu.pipeline_mode<synchronous>, transform_indices = @transform_19, window_bounds = array<i64: 192, 64>}, {pipeline_mode = #tpu.pipeline_mode<synchronous>, transform_indices = @transform_20, window_bounds = array<i64: 1, 64>}, {pipeline_mode = #tpu.pipeline_mode<synchronous>, transform_indices = @transform_21, window_bounds = array<i64: 64, 1>}, {pipeline_mode = #tpu.pipeline_mode<synchronous>, transform_indices = @transform_22, window_bounds = array<i64: 1, 1>}, {transform_indices = @transform_23, window_bounds = array<i64: 8, 128>}]} {
    %0 = tpu.iota {dimensions = array<i32: 1>} : vector<8x512xi32>
    %1 = tpu.iota {dimensions = array<i32: 0>} : vector<8x512xi32>
    %c64_i32 = arith.constant 64 : i32
    %2 = vector.broadcast %c64_i32 : i32 to vector<8x512xi32>
    %3 = arith.muli %1, %2 : vector<8x512xi32>
    %4 = arith.cmpi sge, %0, %3 : vector<8x512xi32>
    %c64_i32_0 = arith.constant 64 : i32
    %5 = vector.broadcast %c64_i32_0 : i32 to vector<8x512xi32>
    %6 = arith.addi %3, %5 : vector<8x512xi32>
    %7 = arith.cmpi slt, %0, %6 : vector<8x512xi32>
    %8 = arith.andi %4, %7 : vector<8x512xi1>
    %cst = arith.constant 1.000000e+00 : f32
    %cst_1 = arith.constant 0.000000e+00 : f32
    %9 = vector.broadcast %cst : f32 to vector<8x512xf32>
    %10 = vector.broadcast %cst_1 : f32 to vector<8x512xf32>
    %11 = arith.select %8, %9, %10 : vector<8x512xi1>, vector<8x512xf32>
    %12 = tpu.iota {dimensions = array<i32: 0>} : vector<512x64xi32>
    %13 = tpu.iota {dimensions = array<i32: 1>} : vector<512x64xi32>
    %c63_i32 = arith.constant 63 : i32
    %14 = vector.broadcast %c63_i32 : i32 to vector<512x64xi32>
    %15 = arith.andi %12, %14 : vector<512x64xi32>
    %16 = arith.cmpi eq, %15, %13 : vector<512x64xi32>
    %cst_2 = arith.constant 1.000000e+00 : f32
    %cst_3 = arith.constant 0.000000e+00 : f32
    %17 = vector.broadcast %cst_2 : f32 to vector<512x64xf32>
    %18 = vector.broadcast %cst_3 : f32 to vector<512x64xf32>
    %19 = arith.select %16, %17, %18 : vector<512x64xi1>, vector<512x64xf32>
    %c0 = arith.constant 0 : index
    %c0_4 = arith.constant 0 : index
    %20 = vector.load %arg1[%c0, %c0_4] : memref<512x30xf32, #tpu.memory_space<vmem>>, vector<512x30xf32>
    %c0_5 = arith.constant 0 : index
    %c0_6 = arith.constant 0 : index
    %21 = vector.load %arg4[%c0_5, %c0_6] : memref<30x64xf32, #tpu.memory_space<vmem>>, vector<30x64xf32>
    %cst_7 = arith.constant dense<0.000000e+00> : vector<512x64xf32>
    %22 = tpu.matmul %20, %21, %cst_7 {dimension_numbers = #tpu.dot_dimension_numbers<[1], [0], [0], [1], [0, 0, 1, 1], [], []>} : vector<512x30xf32>, vector<30x64xf32>, vector<512x64xf32> -> vector<512x64xf32>
    %c0_8 = arith.constant 0 : index
    %c0_9 = arith.constant 0 : index
    %23 = vector.load %arg5[%c0_8, %c0_9] : memref<1x64xf32, #tpu.memory_space<vmem>>, vector<1x64xf32>
    %24 = vector.broadcast %23 : vector<1x64xf32> to vector<512x64xf32>
    %25 = arith.addf %22, %24 : vector<512x64xf32>
    %cst_10 = arith.constant 0.000000e+00 : f32
    %26 = vector.broadcast %cst_10 : f32 to vector<512x64xf32>
    %27 = arith.maximumf %25, %26 : vector<512x64xf32>
    %c0_11 = arith.constant 0 : index
    %c0_12 = arith.constant 0 : index
    %28 = vector.load %arg6[%c0_11, %c0_12] : memref<64x1xf32, #tpu.memory_space<vmem>>, vector<64x1xf32>
    %cst_13 = arith.constant dense<0.000000e+00> : vector<512x1xf32>
    %29 = tpu.matmul %27, %28, %cst_13 {dimension_numbers = #tpu.dot_dimension_numbers<[1], [0], [0], [1], [0, 0, 1, 1], [], []>} : vector<512x64xf32>, vector<64x1xf32>, vector<512x1xf32> -> vector<512x1xf32>
    %c0_14 = arith.constant 0 : index
    %c0_15 = arith.constant 0 : index
    %30 = vector.load %arg7[%c0_14, %c0_15] : memref<1x1xf32, #tpu.memory_space<vmem>>, vector<1x1xf32>
    %31 = vector.broadcast %30 : vector<1x1xf32> to vector<512x1xf32>
    %32 = arith.addf %29, %31 : vector<512x1xf32>
    %cst_16 = arith.constant 0.000000e+00 : f32
    %33 = vector.broadcast %cst_16 : f32 to vector<512x1xf32>
    %34 = arith.maximumf %32, %33 : vector<512x1xf32>
    %35 = vector.broadcast %34 : vector<512x1xf32> to vector<512x64xf32>
    %36 = arith.mulf %35, %19 : vector<512x64xf32>
    %cst_17 = arith.constant dense<0.000000e+00> : vector<8x64xf32>
    %37 = tpu.matmul %11, %36, %cst_17 {dimension_numbers = #tpu.dot_dimension_numbers<[1], [0], [0], [1], [0, 0, 1, 1], [], []>} : vector<8x512xf32>, vector<512x64xf32>, vector<8x64xf32> -> vector<8x64xf32>
    %c0_18 = arith.constant 0 : index
    %c0_19 = arith.constant 0 : index
    %38 = vector.load %arg8[%c0_18, %c0_19] : memref<64x64xf32, #tpu.memory_space<vmem>>, vector<64x64xf32>
    %cst_20 = arith.constant dense<0.000000e+00> : vector<8x64xf32>
    %39 = tpu.matmul %37, %38, %cst_20 {dimension_numbers = #tpu.dot_dimension_numbers<[1], [0], [0], [1], [0, 0, 1, 1], [], []>} : vector<8x64xf32>, vector<64x64xf32>, vector<8x64xf32> -> vector<8x64xf32>
    %c0_21 = arith.constant 0 : index
    %c0_22 = arith.constant 0 : index
    %40 = vector.load %arg9[%c0_21, %c0_22] : memref<1x64xf32, #tpu.memory_space<vmem>>, vector<1x64xf32>
    %41 = vector.broadcast %40 : vector<1x64xf32> to vector<8x64xf32>
    %42 = arith.addf %39, %41 : vector<8x64xf32>
    %cst_23 = arith.constant 0.000000e+00 : f32
    %43 = vector.broadcast %cst_23 : f32 to vector<8x64xf32>
    %44 = arith.maximumf %42, %43 : vector<8x64xf32>
    %c0_24 = arith.constant 0 : index
    %c0_25 = arith.constant 0 : index
    %45 = vector.load %arg2[%c0_24, %c0_25] : memref<512x10xf32, #tpu.memory_space<vmem>>, vector<512x10xf32>
    %c0_26 = arith.constant 0 : index
    %c0_27 = arith.constant 0 : index
    %46 = vector.load %arg10[%c0_26, %c0_27] : memref<10x64xf32, #tpu.memory_space<vmem>>, vector<10x64xf32>
    %cst_28 = arith.constant dense<0.000000e+00> : vector<512x64xf32>
    %47 = tpu.matmul %45, %46, %cst_28 {dimension_numbers = #tpu.dot_dimension_numbers<[1], [0], [0], [1], [0, 0, 1, 1], [], []>} : vector<512x10xf32>, vector<10x64xf32>, vector<512x64xf32> -> vector<512x64xf32>
    %c0_29 = arith.constant 0 : index
    %c0_30 = arith.constant 0 : index
    %48 = vector.load %arg11[%c0_29, %c0_30] : memref<1x64xf32, #tpu.memory_space<vmem>>, vector<1x64xf32>
    %49 = vector.broadcast %48 : vector<1x64xf32> to vector<512x64xf32>
    %50 = arith.addf %47, %49 : vector<512x64xf32>
    %cst_31 = arith.constant 0.000000e+00 : f32
    %51 = vector.broadcast %cst_31 : f32 to vector<512x64xf32>
    %52 = arith.maximumf %50, %51 : vector<512x64xf32>
    %c0_32 = arith.constant 0 : index
    %c0_33 = arith.constant 0 : index
    %53 = vector.load %arg12[%c0_32, %c0_33] : memref<64x1xf32, #tpu.memory_space<vmem>>, vector<64x1xf32>
    %cst_34 = arith.constant dense<0.000000e+00> : vector<512x1xf32>
    %54 = tpu.matmul %52, %53, %cst_34 {dimension_numbers = #tpu.dot_dimension_numbers<[1], [0], [0], [1], [0, 0, 1, 1], [], []>} : vector<512x64xf32>, vector<64x1xf32>, vector<512x1xf32> -> vector<512x1xf32>
    %c0_35 = arith.constant 0 : index
    %c0_36 = arith.constant 0 : index
    %55 = vector.load %arg13[%c0_35, %c0_36] : memref<1x1xf32, #tpu.memory_space<vmem>>, vector<1x1xf32>
    %56 = vector.broadcast %55 : vector<1x1xf32> to vector<512x1xf32>
    %57 = arith.addf %54, %56 : vector<512x1xf32>
    %cst_37 = arith.constant 0.000000e+00 : f32
    %58 = vector.broadcast %cst_37 : f32 to vector<512x1xf32>
    %59 = arith.maximumf %57, %58 : vector<512x1xf32>
    %60 = vector.broadcast %59 : vector<512x1xf32> to vector<512x64xf32>
    %61 = arith.mulf %60, %19 : vector<512x64xf32>
    %cst_38 = arith.constant dense<0.000000e+00> : vector<8x64xf32>
    %62 = tpu.matmul %11, %61, %cst_38 {dimension_numbers = #tpu.dot_dimension_numbers<[1], [0], [0], [1], [0, 0, 1, 1], [], []>} : vector<8x512xf32>, vector<512x64xf32>, vector<8x64xf32> -> vector<8x64xf32>
    %c0_39 = arith.constant 0 : index
    %c0_40 = arith.constant 0 : index
    %63 = vector.load %arg14[%c0_39, %c0_40] : memref<64x64xf32, #tpu.memory_space<vmem>>, vector<64x64xf32>
    %cst_41 = arith.constant dense<0.000000e+00> : vector<8x64xf32>
    %64 = tpu.matmul %62, %63, %cst_41 {dimension_numbers = #tpu.dot_dimension_numbers<[1], [0], [0], [1], [0, 0, 1, 1], [], []>} : vector<8x64xf32>, vector<64x64xf32>, vector<8x64xf32> -> vector<8x64xf32>
    %c0_42 = arith.constant 0 : index
    %c0_43 = arith.constant 0 : index
    %65 = vector.load %arg15[%c0_42, %c0_43] : memref<1x64xf32, #tpu.memory_space<vmem>>, vector<1x64xf32>
    %66 = vector.broadcast %65 : vector<1x64xf32> to vector<8x64xf32>
    %67 = arith.addf %64, %66 : vector<8x64xf32>
    %cst_44 = arith.constant 0.000000e+00 : f32
    %68 = vector.broadcast %cst_44 : f32 to vector<8x64xf32>
    %69 = arith.maximumf %67, %68 : vector<8x64xf32>
    %c0_45 = arith.constant 0 : index
    %c0_46 = arith.constant 0 : index
    %70 = vector.load %arg3[%c0_45, %c0_46] : memref<512x100xf32, #tpu.memory_space<vmem>>, vector<512x100xf32>
    %c0_47 = arith.constant 0 : index
    %c0_48 = arith.constant 0 : index
    %71 = vector.load %arg16[%c0_47, %c0_48] : memref<100x64xf32, #tpu.memory_space<vmem>>, vector<100x64xf32>
    %cst_49 = arith.constant dense<0.000000e+00> : vector<512x64xf32>
    %72 = tpu.matmul %70, %71, %cst_49 {dimension_numbers = #tpu.dot_dimension_numbers<[1], [0], [0], [1], [0, 0, 1, 1], [], []>} : vector<512x100xf32>, vector<100x64xf32>, vector<512x64xf32> -> vector<512x64xf32>
    %c0_50 = arith.constant 0 : index
    %c0_51 = arith.constant 0 : index
    %73 = vector.load %arg17[%c0_50, %c0_51] : memref<1x64xf32, #tpu.memory_space<vmem>>, vector<1x64xf32>
    %74 = vector.broadcast %73 : vector<1x64xf32> to vector<512x64xf32>
    %75 = arith.addf %72, %74 : vector<512x64xf32>
    %cst_52 = arith.constant 0.000000e+00 : f32
    %76 = vector.broadcast %cst_52 : f32 to vector<512x64xf32>
    %77 = arith.maximumf %75, %76 : vector<512x64xf32>
    %c0_53 = arith.constant 0 : index
    %c0_54 = arith.constant 0 : index
    %78 = vector.load %arg18[%c0_53, %c0_54] : memref<64x1xf32, #tpu.memory_space<vmem>>, vector<64x1xf32>
    %cst_55 = arith.constant dense<0.000000e+00> : vector<512x1xf32>
    %79 = tpu.matmul %77, %78, %cst_55 {dimension_numbers = #tpu.dot_dimension_numbers<[1], [0], [0], [1], [0, 0, 1, 1], [], []>} : vector<512x64xf32>, vector<64x1xf32>, vector<512x1xf32> -> vector<512x1xf32>
    %c0_56 = arith.constant 0 : index
    %c0_57 = arith.constant 0 : index
    %80 = vector.load %arg19[%c0_56, %c0_57] : memref<1x1xf32, #tpu.memory_space<vmem>>, vector<1x1xf32>
    %81 = vector.broadcast %80 : vector<1x1xf32> to vector<512x1xf32>
    %82 = arith.addf %79, %81 : vector<512x1xf32>
    %cst_58 = arith.constant 0.000000e+00 : f32
    %83 = vector.broadcast %cst_58 : f32 to vector<512x1xf32>
    %84 = arith.maximumf %82, %83 : vector<512x1xf32>
    %85 = vector.broadcast %84 : vector<512x1xf32> to vector<512x64xf32>
    %86 = arith.mulf %85, %19 : vector<512x64xf32>
    %cst_59 = arith.constant dense<0.000000e+00> : vector<8x64xf32>
    %87 = tpu.matmul %11, %86, %cst_59 {dimension_numbers = #tpu.dot_dimension_numbers<[1], [0], [0], [1], [0, 0, 1, 1], [], []>} : vector<8x512xf32>, vector<512x64xf32>, vector<8x64xf32> -> vector<8x64xf32>
    %c0_60 = arith.constant 0 : index
    %c0_61 = arith.constant 0 : index
    %88 = vector.load %arg14[%c0_60, %c0_61] : memref<64x64xf32, #tpu.memory_space<vmem>>, vector<64x64xf32>
    %cst_62 = arith.constant dense<0.000000e+00> : vector<8x64xf32>
    %89 = tpu.matmul %87, %88, %cst_62 {dimension_numbers = #tpu.dot_dimension_numbers<[1], [0], [0], [1], [0, 0, 1, 1], [], []>} : vector<8x64xf32>, vector<64x64xf32>, vector<8x64xf32> -> vector<8x64xf32>
    %c0_63 = arith.constant 0 : index
    %c0_64 = arith.constant 0 : index
    %90 = vector.load %arg15[%c0_63, %c0_64] : memref<1x64xf32, #tpu.memory_space<vmem>>, vector<1x64xf32>
    %91 = vector.broadcast %90 : vector<1x64xf32> to vector<8x64xf32>
    %92 = arith.addf %89, %91 : vector<8x64xf32>
    %cst_65 = arith.constant 0.000000e+00 : f32
    %93 = vector.broadcast %cst_65 : f32 to vector<8x64xf32>
    %94 = arith.maximumf %92, %93 : vector<8x64xf32>
    %c0_66 = arith.constant 0 : index
    %c0_67 = arith.constant 0 : index
    %95 = vector.load %arg20[%c0_66, %c0_67] : memref<192x64xf32, #tpu.memory_space<vmem>>, vector<64x64xf32>
    %cst_68 = arith.constant dense<0.000000e+00> : vector<8x64xf32>
    %96 = tpu.matmul %44, %95, %cst_68 {dimension_numbers = #tpu.dot_dimension_numbers<[1], [0], [0], [1], [0, 0, 1, 1], [], []>} : vector<8x64xf32>, vector<64x64xf32>, vector<8x64xf32> -> vector<8x64xf32>
    %c64 = arith.constant 64 : index
    %c0_69 = arith.constant 0 : index
    %97 = vector.load %arg20[%c64, %c0_69] : memref<192x64xf32, #tpu.memory_space<vmem>>, vector<64x64xf32>
    %cst_70 = arith.constant dense<0.000000e+00> : vector<8x64xf32>
    %98 = tpu.matmul %69, %97, %cst_70 {dimension_numbers = #tpu.dot_dimension_numbers<[1], [0], [0], [1], [0, 0, 1, 1], [], []>} : vector<8x64xf32>, vector<64x64xf32>, vector<8x64xf32> -> vector<8x64xf32>
    %99 = arith.addf %96, %98 : vector<8x64xf32>
    %c128 = arith.constant 128 : index
    %c0_71 = arith.constant 0 : index
    %100 = vector.load %arg20[%c128, %c0_71] : memref<192x64xf32, #tpu.memory_space<vmem>>, vector<64x64xf32>
    %cst_72 = arith.constant dense<0.000000e+00> : vector<8x64xf32>
    %101 = tpu.matmul %94, %100, %cst_72 {dimension_numbers = #tpu.dot_dimension_numbers<[1], [0], [0], [1], [0, 0, 1, 1], [], []>} : vector<8x64xf32>, vector<64x64xf32>, vector<8x64xf32> -> vector<8x64xf32>
    %102 = arith.addf %99, %101 : vector<8x64xf32>
    %c0_73 = arith.constant 0 : index
    %c0_74 = arith.constant 0 : index
    %103 = vector.load %arg21[%c0_73, %c0_74] : memref<1x64xf32, #tpu.memory_space<vmem>>, vector<1x64xf32>
    %104 = vector.broadcast %103 : vector<1x64xf32> to vector<8x64xf32>
    %105 = arith.addf %102, %104 : vector<8x64xf32>
    %c0_75 = arith.constant 0 : index
    %c0_76 = arith.constant 0 : index
    %106 = vector.load %arg22[%c0_75, %c0_76] : memref<64x1xf32, #tpu.memory_space<vmem>>, vector<64x1xf32>
    %cst_77 = arith.constant dense<0.000000e+00> : vector<8x1xf32>
    %107 = tpu.matmul %105, %106, %cst_77 {dimension_numbers = #tpu.dot_dimension_numbers<[1], [0], [0], [1], [0, 0, 1, 1], [], []>} : vector<8x64xf32>, vector<64x1xf32>, vector<8x1xf32> -> vector<8x1xf32>
    %c0_78 = arith.constant 0 : index
    %c0_79 = arith.constant 0 : index
    %108 = vector.load %arg23[%c0_78, %c0_79] : memref<1x1xf32, #tpu.memory_space<vmem>>, vector<1x1xf32>
    %109 = vector.broadcast %108 : vector<1x1xf32> to vector<8x1xf32>
    %110 = arith.addf %107, %109 : vector<8x1xf32>
    %111 = vector.shape_cast %110 : vector<8x1xf32> to vector<8x1xf32>
    %112 = vector.broadcast %111 : vector<8x1xf32> to vector<8x128xf32>
    %c0_80 = arith.constant 0 : index
    %c0_81 = arith.constant 0 : index
    %113 = vector.load %arg24[%c0_80, %c0_81] : memref<8x128xf32, #tpu.memory_space<vmem>>, vector<8x128xf32>
    tpu.vector_store %arg24[%c0_80, %c0_81], %112 {strides = array<i32>} : memref<8x128xf32, #tpu.memory_space<vmem>>, vector<8x128xf32>,
    return
  }
  func.func @transform_0(%arg0: i32) -> (i32, i32) {
    %c0_i32 = arith.constant 0 : i32
    %c0_i32_0 = arith.constant 0 : i32
    return %arg0, %c0_i32 : i32, i32
  }
  func.func @transform_1(%arg0: i32) -> (i32, i32) {
    %c0_i32 = arith.constant 0 : i32
    %c0_i32_0 = arith.constant 0 : i32
    return %arg0, %c0_i32 : i32, i32
  }
  func.func @transform_2(%arg0: i32) -> (i32, i32) {
    %c0_i32 = arith.constant 0 : i32
    %c0_i32_0 = arith.constant 0 : i32
    return %arg0, %c0_i32 : i32, i32
  }
  func.func @transform_3(%arg0: i32) -> (i32, i32) {
    %c0_i32 = arith.constant 0 : i32
    %c0_i32_0 = arith.constant 0 : i32
    %c0_i32_1 = arith.constant 0 : i32
    return %c0_i32, %c0_i32_0 : i32, i32
  }
  func.func @transform_4(%arg0: i32) -> (i32, i32) {
    %c0_i32 = arith.constant 0 : i32
    %c0_i32_0 = arith.constant 0 : i32
    %c0_i32_1 = arith.constant 0 : i32
    return %c0_i32, %c0_i32_0 : i32, i32
  }
  func.func @transform_5(%arg0: i32) -> (i32, i32) {
    %c0_i32 = arith.constant 0 : i32
    %c0_i32_0 = arith.constant 0 : i32
    %c0_i32_1 = arith.constant 0 : i32
    return %c0_i32, %c0_i32_0 : i32, i32
  }
  func.func @transform_6(%arg0: i32) -> (i32, i32) {
    %c0_i32 = arith.constant 0 : i32
    %c0_i32_0 = arith.constant 0 : i32
    %c0_i32_1 = arith.constant 0 : i32
    return %c0_i32, %c0_i32_0 : i32, i32
  }
  func.func @transform_7(%arg0: i32) -> (i32, i32) {
    %c0_i32 = arith.constant 0 : i32
    %c0_i32_0 = arith.constant 0 : i32
    %c0_i32_1 = arith.constant 0 : i32
    return %c0_i32, %c0_i32_0 : i32, i32
  }
  func.func @transform_8(%arg0: i32) -> (i32, i32) {
    %c0_i32 = arith.constant 0 : i32
    %c0_i32_0 = arith.constant 0 : i32
    %c0_i32_1 = arith.constant 0 : i32
    return %c0_i32, %c0_i32_0 : i32, i32
  }
  func.func @transform_9(%arg0: i32) -> (i32, i32) {
    %c0_i32 = arith.constant 0 : i32
    %c0_i32_0 = arith.constant 0 : i32
    %c0_i32_1 = arith.constant 0 : i32
    return %c0_i32, %c0_i32_0 : i32, i32
  }
  func.func @transform_10(%arg0: i32) -> (i32, i32) {
    %c0_i32 = arith.constant 0 : i32
    %c0_i32_0 = arith.constant 0 : i32
    %c0_i32_1 = arith.constant 0 : i32
    return %c0_i32, %c0_i32_0 : i32, i32
  }
  func.func @transform_11(%arg0: i32) -> (i32, i32) {
    %c0_i32 = arith.constant 0 : i32
    %c0_i32_0 = arith.constant 0 : i32
    %c0_i32_1 = arith.constant 0 : i32
    return %c0_i32, %c0_i32_0 : i32, i32
  }
  func.func @transform_12(%arg0: i32) -> (i32, i32) {
    %c0_i32 = arith.constant 0 : i32
    %c0_i32_0 = arith.constant 0 : i32
    %c0_i32_1 = arith.constant 0 : i32
    return %c0_i32, %c0_i32_0 : i32, i32
  }
  func.func @transform_13(%arg0: i32) -> (i32, i32) {
    %c0_i32 = arith.constant 0 : i32
    %c0_i32_0 = arith.constant 0 : i32
    %c0_i32_1 = arith.constant 0 : i32
    return %c0_i32, %c0_i32_0 : i32, i32
  }
  func.func @transform_14(%arg0: i32) -> (i32, i32) {
    %c0_i32 = arith.constant 0 : i32
    %c0_i32_0 = arith.constant 0 : i32
    %c0_i32_1 = arith.constant 0 : i32
    return %c0_i32, %c0_i32_0 : i32, i32
  }
  func.func @transform_15(%arg0: i32) -> (i32, i32) {
    %c0_i32 = arith.constant 0 : i32
    %c0_i32_0 = arith.constant 0 : i32
    %c0_i32_1 = arith.constant 0 : i32
    return %c0_i32, %c0_i32_0 : i32, i32
  }
  func.func @transform_16(%arg0: i32) -> (i32, i32) {
    %c0_i32 = arith.constant 0 : i32
    %c0_i32_0 = arith.constant 0 : i32
    %c0_i32_1 = arith.constant 0 : i32
    return %c0_i32, %c0_i32_0 : i32, i32
  }
  func.func @transform_17(%arg0: i32) -> (i32, i32) {
    %c0_i32 = arith.constant 0 : i32
    %c0_i32_0 = arith.constant 0 : i32
    %c0_i32_1 = arith.constant 0 : i32
    return %c0_i32, %c0_i32_0 : i32, i32
  }
  func.func @transform_18(%arg0: i32) -> (i32, i32) {
    %c0_i32 = arith.constant 0 : i32
    %c0_i32_0 = arith.constant 0 : i32
    %c0_i32_1 = arith.constant 0 : i32
    return %c0_i32, %c0_i32_0 : i32, i32
  }
  func.func @transform_19(%arg0: i32) -> (i32, i32) {
    %c0_i32 = arith.constant 0 : i32
    %c0_i32_0 = arith.constant 0 : i32
    %c0_i32_1 = arith.constant 0 : i32
    return %c0_i32, %c0_i32_0 : i32, i32
  }
  func.func @transform_20(%arg0: i32) -> (i32, i32) {
    %c0_i32 = arith.constant 0 : i32
    %c0_i32_0 = arith.constant 0 : i32
    %c0_i32_1 = arith.constant 0 : i32
    return %c0_i32, %c0_i32_0 : i32, i32
  }
  func.func @transform_21(%arg0: i32) -> (i32, i32) {
    %c0_i32 = arith.constant 0 : i32
    %c0_i32_0 = arith.constant 0 : i32
    %c0_i32_1 = arith.constant 0 : i32
    return %c0_i32, %c0_i32_0 : i32, i32
  }
  func.func @transform_22(%arg0: i32) -> (i32, i32) {
    %c0_i32 = arith.constant 0 : i32
    %c0_i32_0 = arith.constant 0 : i32
    %c0_i32_1 = arith.constant 0 : i32
    return %c0_i32, %c0_i32_0 : i32, i32
  }
  func.func @transform_23(%arg0: i32) -> (i32, i32) {
    %c0_i32 = arith.constant 0 : i32
    %c0_i32_0 = arith.constant 0 : i32
    return %arg0, %c0_i32 : i32, i32
  }
}

</mosaic_0001>

<llo_original>
// kernel: tpu_custom_call.1
$region0: #{tpu_custom_call.1}
  #allocation0 [shape = 'u32[]', space=smem, size = 0x4, offset = 0x4, fixed_abs, tag = 'smem constant byte address 0x4 - core index']
  #allocation1 [shape = 'u32[144,128]{1,0:T(1,128)}', space=vmem, size = 0x12000, scoped, tag = 'internal scratch']
  #allocation2 [shape = 'f32[1,1]{1,0:T(1,128)S(1)}', space=vmem, size = 0x200, scoped, tag = 'scoped memory for tpu_custom_call.1']
  #allocation3 [shape = 'f32[1,1]{1,0:T(1,128)S(1)}', space=vmem, size = 0x200, scoped, tag = 'scoped memory for tpu_custom_call.1']
  #allocation4 [shape = 'f32[1,1]{1,0:T(1,128)S(1)}', space=vmem, size = 0x200, scoped, tag = 'scoped memory for tpu_custom_call.1']
  #allocation5 [shape = 'f32[1,1]{1,0:T(1,128)S(1)}', space=vmem, size = 0x200, scoped, tag = 'scoped memory for tpu_custom_call.1']
  %s0 = inlined_call_operand.vmem [shape: f32[512,30], index: 0, kind: input, shape index: {}]
  %s1 = inlined_call_operand.vmem [shape: f32[512,10], index: 1, kind: input, shape index: {}]
  %s2 = inlined_call_operand.vmem [shape: f32[512,100], index: 2, kind: input, shape index: {}]
  %s3 = inlined_call_operand.vmem [shape: f32[30,64], index: 3, kind: input, shape index: {}]
  %s4 = inlined_call_operand.vmem [shape: f32[1,64], index: 4, kind: input, shape index: {}]
  %s5 = inlined_call_operand.vmem [shape: f32[64,1], index: 5, kind: input, shape index: {}]
  %s6 = inlined_call_operand.<no memory space> [shape: f32[1,1], index: 6, kind: input, shape index: {}]
  %s7 = inlined_call_operand.vmem [shape: f32[64,64], index: 7, kind: input, shape index: {}]
  %s8 = inlined_call_operand.vmem [shape: f32[1,64], index: 8, kind: input, shape index: {}]
  %s9 = inlined_call_operand.vmem [shape: f32[10,64], index: 9, kind: input, shape index: {}]
  %s10 = inlined_call_operand.vmem [shape: f32[1,64], index: 10, kind: input, shape index: {}]
  %s11 = inlined_call_operand.vmem [shape: f32[64,1], index: 11, kind: input, shape index: {}]
  %s12 = inlined_call_operand.<no memory space> [shape: f32[1,1], index: 12, kind: input, shape index: {}]
  %s13 = inlined_call_operand.vmem [shape: f32[64,64], index: 13, kind: input, shape index: {}]
  %s14 = inlined_call_operand.vmem [shape: f32[1,64], index: 14, kind: input, shape index: {}]
  %s15 = inlined_call_operand.vmem [shape: f32[100,64], index: 15, kind: input, shape index: {}]
  %s16 = inlined_call_operand.vmem [shape: f32[1,64], index: 16, kind: input, shape index: {}]
  %s17 = inlined_call_operand.vmem [shape: f32[64,1], index: 17, kind: input, shape index: {}]
  %s18 = inlined_call_operand.<no memory space> [shape: f32[1,1], index: 18, kind: input, shape index: {}]
  %s19 = inlined_call_operand.vmem [shape: f32[192,64], index: 19, kind: input, shape index: {}]
  %s20 = inlined_call_operand.vmem [shape: f32[1,64], index: 20, kind: input, shape index: {}]
  %s21 = inlined_call_operand.vmem [shape: f32[64,1], index: 21, kind: input, shape index: {}]
  %s22 = inlined_call_operand.<no memory space> [shape: f32[1,1], index: 22, kind: input, shape index: {}]
  %s23 = inlined_call_operand.hbm [shape: f32[8,128], index: 23, kind: output, shape index: {}]
  %s24 = sld [smem:[#allocation0]]
  $region102: #{tpu_custom_call.1} parent=0
    _
  %s26 = ssub.s32 1, %s24
  %s27 = scalar_select 0, %s26, %s24
  %v28 = vstv %s6
  %29 = vst [vmem:[#allocation2] sm:$0x1] %v28
  %v30 = vstv %s12
  %31 = vst [vmem:[#allocation3] sm:$0x1] %v30
  %v32 = vstv %s18
  %33 = vst [vmem:[#allocation4] sm:$0x1] %v32
  %v34 = vstv %s22
  %35 = vst [vmem:[#allocation5] sm:$0x1] %v34
  $region1: #{tpu_custom_call.1} parent=0
    #allocation6 [shape = 'u8[4096]{0}', space=vmem, size = 0x1000, scoped, tag = 'output window, operand 0, single buffered']
    #allocation7 [shape = 's32[1]{0}', space=sflag, size = 0x4, scoped, tag = 'scoped memory for tpu_custom_call.1']
    %36 = vsyncpa [#allocation7], 0
    // Predicated region
    $region2: #{tpu_custom_call.1} parent=1 // pred_check
      _
    $region3: #{tpu_custom_call.1} parent=1 // pred_check_branch
      %38 = sbr.rel (0) target = $region5
    $region4: #{tpu_custom_call.1} parent=1 // pred_region
      _
    $region5: #{tpu_custom_call.1} parent=1 // pred_fallthru
      _
    // Predicated region
    $region6: #{tpu_custom_call.1} parent=1 // pred_check
      _
    $region7: #{tpu_custom_call.1} parent=1 // pred_check_branch
      %40 = sbr.rel (0) target = $region9
    $region8: #{tpu_custom_call.1} parent=1 // pred_region
      _
    $region9: #{tpu_custom_call.1} parent=1 // pred_fallthru
      _
    // Predicated region
    $region10: #{tpu_custom_call.1} parent=1 // pred_check
      _
    $region11: #{tpu_custom_call.1} parent=1 // pred_check_branch
      %42 = sbr.rel (0) target = $region13
    $region12: #{tpu_custom_call.1} parent=1 // pred_region
      _
    $region13: #{tpu_custom_call.1} parent=1 // pred_fallthru
      _
    // Predicated region
    $region14: #{tpu_custom_call.1} parent=1 // pred_check
      _
    $region15: #{tpu_custom_call.1} parent=1 // pred_check_branch
      %44 = sbr.rel (0) target = $region17
    $region16: #{tpu_custom_call.1} parent=1 // pred_region
      _
    $region17: #{tpu_custom_call.1} parent=1 // pred_fallthru
      _
    // Predicated region
    $region18: #{tpu_custom_call.1} parent=1 // pred_check
      _
    $region19: #{tpu_custom_call.1} parent=1 // pred_check_branch
      %46 = sbr.rel (0) target = $region21
    $region20: #{tpu_custom_call.1} parent=1 // pred_region
      _
    $region21: #{tpu_custom_call.1} parent=1 // pred_fallthru
      _
    // Predicated region
    $region22: #{tpu_custom_call.1} parent=1 // pred_check
      _
    $region23: #{tpu_custom_call.1} parent=1 // pred_check_branch
      %48 = sbr.rel (0) target = $region25
    $region24: #{tpu_custom_call.1} parent=1 // pred_region
      _
    $region25: #{tpu_custom_call.1} parent=1 // pred_fallthru
      _
    // Predicated region
    $region26: #{tpu_custom_call.1} parent=1 // pred_check
      _
    $region27: #{tpu_custom_call.1} parent=1 // pred_check_branch
      %50 = sbr.rel (0) target = $region29
    $region28: #{tpu_custom_call.1} parent=1 // pred_region
      _
    $region29: #{tpu_custom_call.1} parent=1 // pred_fallthru
      _
    // Predicated region
    $region30: #{tpu_custom_call.1} parent=1 // pred_check
      _
    $region31: #{tpu_custom_call.1} parent=1 // pred_check_branch
      %52 = sbr.rel (0) target = $region33
    $region32: #{tpu_custom_call.1} parent=1 // pred_region
      _
    $region33: #{tpu_custom_call.1} parent=1 // pred_fallthru
      _
    // Predicated region
    $region34: #{tpu_custom_call.1} parent=1 // pred_check
      _
    $region35: #{tpu_custom_call.1} parent=1 // pred_check_branch
      %54 = sbr.rel (0) target = $region37
    $region36: #{tpu_custom_call.1} parent=1 // pred_region
      _
    $region37: #{tpu_custom_call.1} parent=1 // pred_fallthru
      _
    // Predicated region
    $region38: #{tpu_custom_call.1} parent=1 // pred_check
      _
    $region39: #{tpu_custom_call.1} parent=1 // pred_check_branch
      %56 = sbr.rel (0) target = $region41
    $region40: #{tpu_custom_call.1} parent=1 // pred_region
      _
    $region41: #{tpu_custom_call.1} parent=1 // pred_fallthru
      _
    // Predicated region
    $region42: #{tpu_custom_call.1} parent=1 // pred_check
      _
    $region43: #{tpu_custom_call.1} parent=1 // pred_check_branch
      %58 = sbr.rel (0) target = $region45
    $region44: #{tpu_custom_call.1} parent=1 // pred_region
      _
    $region45: #{tpu_custom_call.1} parent=1 // pred_fallthru
      _
    // Predicated region
    $region46: #{tpu_custom_call.1} parent=1 // pred_check
      _
    $region47: #{tpu_custom_call.1} parent=1 // pred_check_branch
      %60 = sbr.rel (0) target = $region49
    $region48: #{tpu_custom_call.1} parent=1 // pred_region
      _
    $region49: #{tpu_custom_call.1} parent=1 // pred_fallthru
      _
    // Predicated region
    $region50: #{tpu_custom_call.1} parent=1 // pred_check
      _
    $region51: #{tpu_custom_call.1} parent=1 // pred_check_branch
      %62 = sbr.rel (0) target = $region53
    $region52: #{tpu_custom_call.1} parent=1 // pred_region
      _
    $region53: #{tpu_custom_call.1} parent=1 // pred_fallthru
      _
    // Predicated region
    $region54: #{tpu_custom_call.1} parent=1 // pred_check
      _
    $region55: #{tpu_custom_call.1} parent=1 // pred_check_branch
      %64 = sbr.rel (0) target = $region57
    $region56: #{tpu_custom_call.1} parent=1 // pred_region
      _
    $region57: #{tpu_custom_call.1} parent=1 // pred_fallthru
      _
    // Predicated region
    $region58: #{tpu_custom_call.1} parent=1 // pred_check
      _
    $region59: #{tpu_custom_call.1} parent=1 // pred_check_branch
      %66 = sbr.rel (0) target = $region61
    $region60: #{tpu_custom_call.1} parent=1 // pred_region
      _
    $region61: #{tpu_custom_call.1} parent=1 // pred_fallthru
      _
    // Predicated region
    $region62: #{tpu_custom_call.1} parent=1 // pred_check
      _
    $region63: #{tpu_custom_call.1} parent=1 // pred_check_branch
      %68 = sbr.rel (0) target = $region65
    $region64: #{tpu_custom_call.1} parent=1 // pred_region
      _
    $region65: #{tpu_custom_call.1} parent=1 // pred_fallthru
      _
    // Predicated region
    $region66: #{tpu_custom_call.1} parent=1 // pred_check
      _
    $region67: #{tpu_custom_call.1} parent=1 // pred_check_branch
      %70 = sbr.rel (0) target = $region69
    $region68: #{tpu_custom_call.1} parent=1 // pred_region
      _
    $region69: #{tpu_custom_call.1} parent=1 // pred_fallthru
      _
    // Predicated region
    $region70: #{tpu_custom_call.1} parent=1 // pred_check
      _
    $region71: #{tpu_custom_call.1} parent=1 // pred_check_branch
      %72 = sbr.rel (0) target = $region73
    $region72: #{tpu_custom_call.1} parent=1 // pred_region
      _
    $region73: #{tpu_custom_call.1} parent=1 // pred_fallthru
      _
    // Predicated region
    $region74: #{tpu_custom_call.1} parent=1 // pred_check
      _
    $region75: #{tpu_custom_call.1} parent=1 // pred_check_branch
      %74 = sbr.rel (0) target = $region77
    $region76: #{tpu_custom_call.1} parent=1 // pred_region
      _
    $region77: #{tpu_custom_call.1} parent=1 // pred_fallthru
      _
    // Predicated region
    $region78: #{tpu_custom_call.1} parent=1 // pred_check
      _
    $region79: #{tpu_custom_call.1} parent=1 // pred_check_branch
      %76 = sbr.rel (0) target = $region81
    $region80: #{tpu_custom_call.1} parent=1 // pred_region
      _
    $region81: #{tpu_custom_call.1} parent=1 // pred_fallthru
      _
    // Predicated region
    $region82: #{tpu_custom_call.1} parent=1 // pred_check
      _
    $region83: #{tpu_custom_call.1} parent=1 // pred_check_branch
      %78 = sbr.rel (0) target = $region85
    $region84: #{tpu_custom_call.1} parent=1 // pred_region
      _
    $region85: #{tpu_custom_call.1} parent=1 // pred_fallthru
      _
    // Predicated region
    $region86: #{tpu_custom_call.1} parent=1 // pred_check
      _
    $region87: #{tpu_custom_call.1} parent=1 // pred_check_branch
      %80 = sbr.rel (0) target = $region89
    $region88: #{tpu_custom_call.1} parent=1 // pred_region
      _
    $region89: #{tpu_custom_call.1} parent=1 // pred_fallthru
      _
    // Predicated region
    $region90: #{tpu_custom_call.1} parent=1 // pred_check
      _
    $region91: #{tpu_custom_call.1} parent=1 // pred_check_branch
      %82 = sbr.rel (0) target = $region93
    $region92: #{tpu_custom_call.1} parent=1 // pred_region
      _
    $region93: #{tpu_custom_call.1} parent=1 // pred_fallthru
      _
    %v83 = vlaneseq
    %v84 = vand.u32 %v83, 127
    %v85 = vadd.s32 %v84, 128
    %v86 = vadd.s32 %v84, 256
    %v87 = vadd.s32 %v84, 384
    %v88 = vlaneseq
    %v89 = vshrl.u32 %v88, 7
    %v90 = vmul.u32 %v89, 64
    %vm91 = vcmp.ge.s32.totalorder %v84, %v90
    %vm92 = vcmp.ge.s32.totalorder %v85, %v90
    %vm93 = vcmp.ge.s32.totalorder %v86, %v90
    %vm94 = vcmp.ge.s32.totalorder %v87, %v90
    %v95 = vadd.s32 %v90, 64
    %vm96 = vcmp.lt.s32.totalorder %v84, %v95
    %vm97 = vcmp.lt.s32.totalorder %v85, %v95
    %vm98 = vcmp.lt.s32.totalorder %v86, %v95
    %vm99 = vcmp.lt.s32.totalorder %v87, %v95
    %vm100 = vmand %vm91, %vm96
    %vm101 = vmand %vm92, %vm97
    %vm102 = vmand %vm93, %vm98
    %vm103 = vmand %vm94, %vm99
    %v104 = vsel %vm100, 1.0, 0.0
    %v105 = vsel %vm101, 1.0, 0.0
    %v106 = vsel %vm102, 1.0, 0.0
    %v107 = vsel %vm103, 1.0, 0.0
    %v108 = vadd.s32 %v89, 8
    %v109 = vadd.s32 %v89, 16
    %v110 = vadd.s32 %v89, 24
    %v111 = vadd.s32 %v89, 32
    %v112 = vadd.s32 %v89, 40
    %v113 = vadd.s32 %v89, 48
    %v114 = vadd.s32 %v89, 56
    %v115 = vadd.s32 %v89, 64
    %v116 = vadd.s32 %v89, 72
    %v117 = vadd.s32 %v89, 80
    %v118 = vadd.s32 %v89, 88
    %v119 = vadd.s32 %v89, 96
    %v120 = vadd.s32 %v89, 104
    %v121 = vadd.s32 %v89, 112
    %v122 = vadd.s32 %v89, 120
    %v123 = vadd.s32 %v89, 128
    %v124 = vadd.s32 %v89, 136
    %v125 = vadd.s32 %v89, 144
    %v126 = vadd.s32 %v89, 152
    %v127 = vadd.s32 %v89, 160
    %v128 = vadd.s32 %v89, 168
    %v129 = vadd.s32 %v89, 176
    %v130 = vadd.s32 %v89, 184
    %v131 = vadd.s32 %v89, 192
    %v132 = vadd.s32 %v89, 200
    %v133 = vadd.s32 %v89, 208
    %v134 = vadd.s32 %v89, 216
    %v135 = vadd.s32 %v89, 224
    %v136 = vadd.s32 %v89, 232
    %v137 = vadd.s32 %v89, 240
    %v138 = vadd.s32 %v89, 248
    %v139 = vadd.s32 %v89, 256
    %v140 = vadd.s32 %v89, 264
    %v141 = vadd.s32 %v89, 272
    %v142 = vadd.s32 %v89, 280
    %v143 = vadd.s32 %v89, 288
    %v144 = vadd.s32 %v89, 296
    %v145 = vadd.s32 %v89, 304
    %v146 = vadd.s32 %v89, 312
    %v147 = vadd.s32 %v89, 320
    %v148 = vadd.s32 %v89, 328
    %v149 = vadd.s32 %v89, 336
    %v150 = vadd.s32 %v89, 344
    %v151 = vadd.s32 %v89, 352
    %v152 = vadd.s32 %v89, 360
    %v153 = vadd.s32 %v89, 368
    %v154 = vadd.s32 %v89, 376
    %v155 = vadd.s32 %v89, 384
    %v156 = vadd.s32 %v89, 392
    %v157 = vadd.s32 %v89, 400
    %v158 = vadd.s32 %v89, 408
    %v159 = vadd.s32 %v89, 416
    %v160 = vadd.s32 %v89, 424
    %v161 = vadd.s32 %v89, 432
    %v162 = vadd.s32 %v89, 440
    %v163 = vadd.s32 %v89, 448
    %v164 = vadd.s32 %v89, 456
    %v165 = vadd.s32 %v89, 464
    %v166 = vadd.s32 %v89, 472
    %v167 = vadd.s32 %v89, 480
    %v168 = vadd.s32 %v89, 488
    %v169 = vadd.s32 %v89, 496
    %v170 = vadd.s32 %v89, 504
    %v171 = vand.u32 %v89, 63
    %v172 = vand.u32 %v108, 63
    %v173 = vand.u32 %v109, 63
    %v174 = vand.u32 %v110, 63
    %v175 = vand.u32 %v111, 63
    %v176 = vand.u32 %v112, 63
    %v177 = vand.u32 %v113, 63
    %v178 = vand.u32 %v114, 63
    %v179 = vand.u32 %v115, 63
    %v180 = vand.u32 %v116, 63
    %v181 = vand.u32 %v117, 63
    %v182 = vand.u32 %v118, 63
    %v183 = vand.u32 %v119, 63
    %v184 = vand.u32 %v120, 63
    %v185 = vand.u32 %v121, 63
    %v186 = vand.u32 %v122, 63
    %v187 = vand.u32 %v123, 63
    %v188 = vand.u32 %v124, 63
    %v189 = vand.u32 %v125, 63
    %v190 = vand.u32 %v126, 63
    %v191 = vand.u32 %v127, 63
    %v192 = vand.u32 %v128, 63
    %v193 = vand.u32 %v129, 63
    %v194 = vand.u32 %v130, 63
    %v195 = vand.u32 %v131, 63
    %v196 = vand.u32 %v132, 63
    %v197 = vand.u32 %v133, 63
    %v198 = vand.u32 %v134, 63
    %v199 = vand.u32 %v135, 63
    %v200 = vand.u32 %v136, 63
    %v201 = vand.u32 %v137, 63
    %v202 = vand.u32 %v138, 63
    %v203 = vand.u32 %v139, 63
    %v204 = vand.u32 %v140, 63
    %v205 = vand.u32 %v141, 63
    %v206 = vand.u32 %v142, 63
    %v207 = vand.u32 %v143, 63
    %v208 = vand.u32 %v144, 63
    %v209 = vand.u32 %v145, 63
    %v210 = vand.u32 %v146, 63
    %v211 = vand.u32 %v147, 63
    %v212 = vand.u32 %v148, 63
    %v213 = vand.u32 %v149, 63
    %v214 = vand.u32 %v150, 63
    %v215 = vand.u32 %v151, 63
    %v216 = vand.u32 %v152, 63
    %v217 = vand.u32 %v153, 63
    %v218 = vand.u32 %v154, 63
    %v219 = vand.u32 %v155, 63
    %v220 = vand.u32 %v156, 63
    %v221 = vand.u32 %v157, 63
    %v222 = vand.u32 %v158, 63
    %v223 = vand.u32 %v159, 63
    %v224 = vand.u32 %v160, 63
    %v225 = vand.u32 %v161, 63
    %v226 = vand.u32 %v162, 63
    %v227 = vand.u32 %v163, 63
    %v228 = vand.u32 %v164, 63
    %v229 = vand.u32 %v165, 63
    %v230 = vand.u32 %v166, 63
    %v231 = vand.u32 %v167, 63
    %v232 = vand.u32 %v168, 63
    %v233 = vand.u32 %v169, 63
    %v234 = vand.u32 %v170, 63
    %vm235 = vcmp.eq.s32.totalorder %v171, %v84
    %vm236 = vcmp.eq.s32.totalorder %v172, %v84
    %vm237 = vcmp.eq.s32.totalorder %v173, %v84
    %vm238 = vcmp.eq.s32.totalorder %v174, %v84
    %vm239 = vcmp.eq.s32.totalorder %v175, %v84
    %vm240 = vcmp.eq.s32.totalorder %v176, %v84
    %vm241 = vcmp.eq.s32.totalorder %v177, %v84
    %vm242 = vcmp.eq.s32.totalorder %v178, %v84
    %vm243 = vcmp.eq.s32.totalorder %v179, %v84
    %vm244 = vcmp.eq.s32.totalorder %v180, %v84
    %vm245 = vcmp.eq.s32.totalorder %v181, %v84
    %vm246 = vcmp.eq.s32.totalorder %v182, %v84
    %vm247 = vcmp.eq.s32.totalorder %v183, %v84
    %vm248 = vcmp.eq.s32.totalorder %v184, %v84
    %vm249 = vcmp.eq.s32.totalorder %v185, %v84
    %vm250 = vcmp.eq.s32.totalorder %v186, %v84
    %vm251 = vcmp.eq.s32.totalorder %v187, %v84
    %vm252 = vcmp.eq.s32.totalorder %v188, %v84
    %vm253 = vcmp.eq.s32.totalorder %v189, %v84
    %vm254 = vcmp.eq.s32.totalorder %v190, %v84
    %vm255 = vcmp.eq.s32.totalorder %v191, %v84
    %vm256 = vcmp.eq.s32.totalorder %v192, %v84
    %vm257 = vcmp.eq.s32.totalorder %v193, %v84
    %vm258 = vcmp.eq.s32.totalorder %v194, %v84
    %vm259 = vcmp.eq.s32.totalorder %v195, %v84
    %vm260 = vcmp.eq.s32.totalorder %v196, %v84
    %vm261 = vcmp.eq.s32.totalorder %v197, %v84
    %vm262 = vcmp.eq.s32.totalorder %v198, %v84
    %vm263 = vcmp.eq.s32.totalorder %v199, %v84
    %vm264 = vcmp.eq.s32.totalorder %v200, %v84
    %vm265 = vcmp.eq.s32.totalorder %v201, %v84
    %vm266 = vcmp.eq.s32.totalorder %v202, %v84
    %vm267 = vcmp.eq.s32.totalorder %v203, %v84
    %vm268 = vcmp.eq.s32.totalorder %v204, %v84
    %vm269 = vcmp.eq.s32.totalorder %v205, %v84
    %vm270 = vcmp.eq.s32.totalorder %v206, %v84
    %vm271 = vcmp.eq.s32.totalorder %v207, %v84
    %vm272 = vcmp.eq.s32.totalorder %v208, %v84
    %vm273 = vcmp.eq.s32.totalorder %v209, %v84
    %vm274 = vcmp.eq.s32.totalorder %v210, %v84
    %vm275 = vcmp.eq.s32.totalorder %v211, %v84
    %vm276 = vcmp.eq.s32.totalorder %v212, %v84
    %vm277 = vcmp.eq.s32.totalorder %v213, %v84
    %vm278 = vcmp.eq.s32.totalorder %v214, %v84
    %vm279 = vcmp.eq.s32.totalorder %v215, %v84
    %vm280 = vcmp.eq.s32.totalorder %v216, %v84
    %vm281 = vcmp.eq.s32.totalorder %v217, %v84
    %vm282 = vcmp.eq.s32.totalorder %v218, %v84
    %vm283 = vcmp.eq.s32.totalorder %v219, %v84
    %vm284 = vcmp.eq.s32.totalorder %v220, %v84
    %vm285 = vcmp.eq.s32.totalorder %v221, %v84
    %vm286 = vcmp.eq.s32.totalorder %v222, %v84
    %vm287 = vcmp.eq.s32.totalorder %v223, %v84
    %vm288 = vcmp.eq.s32.totalorder %v224, %v84
    %vm289 = vcmp.eq.s32.totalorder %v225, %v84
    %vm290 = vcmp.eq.s32.totalorder %v226, %v84
    %vm291 = vcmp.eq.s32.totalorder %v227, %v84
    %vm292 = vcmp.eq.s32.totalorder %v228, %v84
    %vm293 = vcmp.eq.s32.totalorder %v229, %v84
    %vm294 = vcmp.eq.s32.totalorder %v230, %v84
    %vm295 = vcmp.eq.s32.totalorder %v231, %v84
    %vm296 = vcmp.eq.s32.totalorder %v232, %v84
    %vm297 = vcmp.eq.s32.totalorder %v233, %v84
    %vm298 = vcmp.eq.s32.totalorder %v234, %v84
    %v299 = vsel %vm235, 1.0, 0.0
    %v300 = vsel %vm236, 1.0, 0.0
    %v301 = vsel %vm237, 1.0, 0.0
    %v302 = vsel %vm238, 1.0, 0.0
    %v303 = vsel %vm239, 1.0, 0.0
    %v304 = vsel %vm240, 1.0, 0.0
    %v305 = vsel %vm241, 1.0, 0.0
    %v306 = vsel %vm242, 1.0, 0.0
    %v307 = vsel %vm243, 1.0, 0.0
    %v308 = vsel %vm244, 1.0, 0.0
    %v309 = vsel %vm245, 1.0, 0.0
    %v310 = vsel %vm246, 1.0, 0.0
    %v311 = vsel %vm247, 1.0, 0.0
    %v312 = vsel %vm248, 1.0, 0.0
    %v313 = vsel %vm249, 1.0, 0.0
    %v314 = vsel %vm250, 1.0, 0.0
    %v315 = vsel %vm251, 1.0, 0.0
    %v316 = vsel %vm252, 1.0, 0.0
    %v317 = vsel %vm253, 1.0, 0.0
    %v318 = vsel %vm254, 1.0, 0.0
    %v319 = vsel %vm255, 1.0, 0.0
    %v320 = vsel %vm256, 1.0, 0.0
    %v321 = vsel %vm257, 1.0, 0.0
    %v322 = vsel %vm258, 1.0, 0.0
    %v323 = vsel %vm259, 1.0, 0.0
    %v324 = vsel %vm260, 1.0, 0.0
    %v325 = vsel %vm261, 1.0, 0.0
    %v326 = vsel %vm262, 1.0, 0.0
    %v327 = vsel %vm263, 1.0, 0.0
    %v328 = vsel %vm264, 1.0, 0.0
    %v329 = vsel %vm265, 1.0, 0.0
    %v330 = vsel %vm266, 1.0, 0.0
    %v331 = vsel %vm267, 1.0, 0.0
    %v332 = vsel %vm268, 1.0, 0.0
    %v333 = vsel %vm269, 1.0, 0.0
    %v334 = vsel %vm270, 1.0, 0.0
    %v335 = vsel %vm271, 1.0, 0.0
    %v336 = vsel %vm272, 1.0, 0.0
    %v337 = vsel %vm273, 1.0, 0.0
    %v338 = vsel %vm274, 1.0, 0.0
    %v339 = vsel %vm275, 1.0, 0.0
    %v340 = vsel %vm276, 1.0, 0.0
    %v341 = vsel %vm277, 1.0, 0.0
    %v342 = vsel %vm278, 1.0, 0.0
    %v343 = vsel %vm279, 1.0, 0.0
    %v344 = vsel %vm280, 1.0, 0.0
    %v345 = vsel %vm281, 1.0, 0.0
    %v346 = vsel %vm282, 1.0, 0.0
    %v347 = vsel %vm283, 1.0, 0.0
    %v348 = vsel %vm284, 1.0, 0.0
    %v349 = vsel %vm285, 1.0, 0.0
    %v350 = vsel %vm286, 1.0, 0.0
    %v351 = vsel %vm287, 1.0, 0.0
    %v352 = vsel %vm288, 1.0, 0.0
    %v353 = vsel %vm289, 1.0, 0.0
    %v354 = vsel %vm290, 1.0, 0.0
    %v355 = vsel %vm291, 1.0, 0.0
    %v356 = vsel %vm292, 1.0, 0.0
    %v357 = vsel %vm293, 1.0, 0.0
    %v358 = vsel %vm294, 1.0, 0.0
    %v359 = vsel %vm295, 1.0, 0.0
    %v360 = vsel %vm296, 1.0, 0.0
    %v361 = vsel %vm297, 1.0, 0.0
    %v362 = vsel %vm298, 1.0, 0.0
    %v363 = vld [vmem:[%s0] sm:$0xff]
    %v364 = vld [vmem:[%s0 + $0x8] sm:$0xff]
    %v365 = vld [vmem:[%s0 + $0x10] sm:$0xff]
    %v366 = vld [vmem:[%s0 + $0x18] sm:$0xff]
    %v367 = vld [vmem:[%s0 + $0x20] sm:$0xff]
    %v368 = vld [vmem:[%s0 + $0x28] sm:$0xff]
    %v369 = vld [vmem:[%s0 + $0x30] sm:$0xff]
    %v370 = vld [vmem:[%s0 + $0x38] sm:$0xff]
    %v371 = vld [vmem:[%s0 + $0x40] sm:$0xff]
    %v372 = vld [vmem:[%s0 + $0x48] sm:$0xff]
    %v373 = vld [vmem:[%s0 + $0x50] sm:$0xff]
    %v374 = vld [vmem:[%s0 + $0x58] sm:$0xff]
    %v375 = vld [vmem:[%s0 + $0x60] sm:$0xff]
    %v376 = vld [vmem:[%s0 + $0x68] sm:$0xff]
    %v377 = vld [vmem:[%s0 + $0x70] sm:$0xff]
    %v378 = vld [vmem:[%s0 + $0x78] sm:$0xff]
    %v379 = vld [vmem:[%s0 + $0x80] sm:$0xff]
    %v380 = vld [vmem:[%s0 + $0x88] sm:$0xff]
    %v381 = vld [vmem:[%s0 + $0x90] sm:$0xff]
    %v382 = vld [vmem:[%s0 + $0x98] sm:$0xff]
    %v383 = vld [vmem:[%s0 + $0xa0] sm:$0xff]
    %v384 = vld [vmem:[%s0 + $0xa8] sm:$0xff]
    %v385 = vld [vmem:[%s0 + $0xb0] sm:$0xff]
    %v386 = vld [vmem:[%s0 + $0xb8] sm:$0xff]
    %v387 = vld [vmem:[%s0 + $0xc0] sm:$0xff]
    %v388 = vld [vmem:[%s0 + $0xc8] sm:$0xff]
    %v389 = vld [vmem:[%s0 + $0xd0] sm:$0xff]
    %v390 = vld [vmem:[%s0 + $0xd8] sm:$0xff]
    %v391 = vld [vmem:[%s0 + $0xe0] sm:$0xff]
    %v392 = vld [vmem:[%s0 + $0xe8] sm:$0xff]
    %v393 = vld [vmem:[%s0 + $0xf0] sm:$0xff]
    %v394 = vld [vmem:[%s0 + $0xf8] sm:$0xff]
    %v395 = vld [vmem:[%s0 + $0x100] sm:$0xff]
    %v396 = vld [vmem:[%s0 + $0x108] sm:$0xff]
    %v397 = vld [vmem:[%s0 + $0x110] sm:$0xff]
    %v398 = vld [vmem:[%s0 + $0x118] sm:$0xff]
    %v399 = vld [vmem:[%s0 + $0x120] sm:$0xff]
    %v400 = vld [vmem:[%s0 + $0x128] sm:$0xff]
    %v401 = vld [vmem:[%s0 + $0x130] sm:$0xff]
    %v402 = vld [vmem:[%s0 + $0x138] sm:$0xff]
    %v403 = vld [vmem:[%s0 + $0x140] sm:$0xff]
    %v404 = vld [vmem:[%s0 + $0x148] sm:$0xff]
    %v405 = vld [vmem:[%s0 + $0x150] sm:$0xff]
    %v406 = vld [vmem:[%s0 + $0x158] sm:$0xff]
    %v407 = vld [vmem:[%s0 + $0x160] sm:$0xff]
    %v408 = vld [vmem:[%s0 + $0x168] sm:$0xff]
    %v409 = vld [vmem:[%s0 + $0x170] sm:$0xff]
    %v410 = vld [vmem:[%s0 + $0x178] sm:$0xff]
    %v411 = vld [vmem:[%s0 + $0x180] sm:$0xff]
    %v412 = vld [vmem:[%s0 + $0x188] sm:$0xff]
    %v413 = vld [vmem:[%s0 + $0x190] sm:$0xff]
    %v414 = vld [vmem:[%s0 + $0x198] sm:$0xff]
    %v415 = vld [vmem:[%s0 + $0x1a0] sm:$0xff]
    %v416 = vld [vmem:[%s0 + $0x1a8] sm:$0xff]
    %v417 = vld [vmem:[%s0 + $0x1b0] sm:$0xff]
    %v418 = vld [vmem:[%s0 + $0x1b8] sm:$0xff]
    %v419 = vld [vmem:[%s0 + $0x1c0] sm:$0xff]
    %v420 = vld [vmem:[%s0 + $0x1c8] sm:$0xff]
    %v421 = vld [vmem:[%s0 + $0x1d0] sm:$0xff]
    %v422 = vld [vmem:[%s0 + $0x1d8] sm:$0xff]
    %v423 = vld [vmem:[%s0 + $0x1e0] sm:$0xff]
    %v424 = vld [vmem:[%s0 + $0x1e8] sm:$0xff]
    %v425 = vld [vmem:[%s0 + $0x1f0] sm:$0xff]
    %v426 = vld [vmem:[%s0 + $0x1f8] sm:$0xff]
    %v427 = vld [vmem:[%s3] sm:$0xff]
    %v428 = vld [vmem:[%s3 + $0x8] sm:$0xff]
    %v429 = vld [vmem:[%s3 + $0x10] sm:$0xff]
    %v430 = vld [vmem:[%s3 + $0x18] sm:$0x3f]
    %v431 = vld [vmem:[%s4] sm:$0x1]
    %v433 = vlaneseq
    %v434 = vshrl.u32 %v433, 7
    %v435 = vsub.s32 0, %v434
    %v436 = vrot.slane %v431, %v435
    %vm438 = vcmask 244736
    %v440 = vsel %vm438, %v363, 0
    %v443 = vsel %vm438, %v364, 0
    %v446 = vsel %vm438, %v365, 0
    %v449 = vsel %vm438, %v366, 0
    %v452 = vsel %vm438, %v367, 0
    %v455 = vsel %vm438, %v368, 0
    %v458 = vsel %vm438, %v369, 0
    %v461 = vsel %vm438, %v370, 0
    %v464 = vsel %vm438, %v371, 0
    %v467 = vsel %vm438, %v372, 0
    %v470 = vsel %vm438, %v373, 0
    %v473 = vsel %vm438, %v374, 0
    %v476 = vsel %vm438, %v375, 0
    %v479 = vsel %vm438, %v376, 0
    %v482 = vsel %vm438, %v377, 0
    %v485 = vsel %vm438, %v378, 0
    %v488 = vsel %vm438, %v379, 0
    %v491 = vsel %vm438, %v380, 0
    %v494 = vsel %vm438, %v381, 0
    %v497 = vsel %vm438, %v382, 0
    %v500 = vsel %vm438, %v383, 0
    %v503 = vsel %vm438, %v384, 0
    %v506 = vsel %vm438, %v385, 0
    %v509 = vsel %vm438, %v386, 0
    %v512 = vsel %vm438, %v387, 0
    %v515 = vsel %vm438, %v388, 0
    %v518 = vsel %vm438, %v389, 0
    %v521 = vsel %vm438, %v390, 0
    %v524 = vsel %vm438, %v391, 0
    %v527 = vsel %vm438, %v392, 0
    %v530 = vsel %vm438, %v393, 0
    %v533 = vsel %vm438, %v394, 0
    %v536 = vsel %vm438, %v395, 0
    %v539 = vsel %vm438, %v396, 0
    %v542 = vsel %vm438, %v397, 0
    %v545 = vsel %vm438, %v398, 0
    %v548 = vsel %vm438, %v399, 0
    %v551 = vsel %vm438, %v400, 0
    %v554 = vsel %vm438, %v401, 0
    %v557 = vsel %vm438, %v402, 0
    %v560 = vsel %vm438, %v403, 0
    %v563 = vsel %vm438, %v404, 0
    %v566 = vsel %vm438, %v405, 0
    %v569 = vsel %vm438, %v406, 0
    %v572 = vsel %vm438, %v407, 0
    %v575 = vsel %vm438, %v408, 0
    %v578 = vsel %vm438, %v409, 0
    %v581 = vsel %vm438, %v410, 0
    %v584 = vsel %vm438, %v411, 0
    %v587 = vsel %vm438, %v412, 0
    %v590 = vsel %vm438, %v413, 0
    %v593 = vsel %vm438, %v414, 0
    %v596 = vsel %vm438, %v415, 0
    %v599 = vsel %vm438, %v416, 0
    %v602 = vsel %vm438, %v417, 0
    %v605 = vsel %vm438, %v418, 0
    %v608 = vsel %vm438, %v419, 0
    %v611 = vsel %vm438, %v420, 0
    %v614 = vsel %vm438, %v421, 0
    %v617 = vsel %vm438, %v422, 0
    %v620 = vsel %vm438, %v423, 0
    %v623 = vsel %vm438, %v424, 0
    %v626 = vsel %vm438, %v425, 0
    %v629 = vsel %vm438, %v426, 0
    %vm631 = vcmask 1045504
    %v633 = vsel %vm631, %v430, 0
    %635 = vmatprep.subr.mxu0 0.0
    %636 = vmatpush1.msra.mxu0 0.0
    %637 = vmatprep.subr.mxu0 0.0
    %638 = vmatpush1.msra.mxu0 0.0
    %639 = vmatprep.subr.mxu0 0.0
    %640 = vmatpush1.msra.mxu0 0.0
    %641 = vmatprep.subr.mxu0 0.0
    %642 = vmatpush1.msra.mxu0 0.0
    %643 = vmatprep.subr.mxu0 0.0
    %644 = vmatpush1.msra.mxu0 0.0
    %645 = vmatprep.subr.mxu0 0.0
    %646 = vmatpush1.msra.mxu0 0.0
    %647 = vmatprep.subr.mxu0 0.0
    %648 = vmatpush1.msra.mxu0 0.0
    %649 = vmatprep.subr.mxu0 0.0
    %650 = vmatpush1.msra.mxu0 0.0
    %651 = vmatprep.subr.mxu0 0.0
    %652 = vmatpush1.msra.mxu0 0.0
    %653 = vmatprep.subr.mxu0 0.0
    %654 = vmatpush1.msra.mxu0 0.0
    %655 = vmatprep.subr.mxu0 0.0
    %656 = vmatpush1.msra.mxu0 0.0
    %657 = vmatprep.subr.mxu0 0.0
    %658 = vmatpush1.msra.mxu0 0.0
    %659 = vmatprep.subr.mxu0 0.0
    %660 = vmatpush1.msra.mxu0 %v633
    %661 = vmatprep.subr.mxu0 0.0
    %662 = vmatpush1.msra.mxu0 %v429
    %663 = vmatprep.subr.mxu0 0.0
    %664 = vmatpush1.msra.mxu0 %v428
    %665 = vmatprep.subr.mxu0 0.0
    %666 = vmatpush1.msra.mxu0 %v427
    %667 = vmatprep.subr.mxu0 0.0
    %668 = vmatpush2.msra.mxu0 0.0
    %669 = vmatprep.subr.mxu0 0.0
    %670 = vmatpush2.msra.mxu0 0.0
    %671 = vmatprep.subr.mxu0 0.0
    %672 = vmatpush2.msra.mxu0 0.0
    %673 = vmatprep.subr.mxu0 0.0
    %674 = vmatpush2.msra.mxu0 0.0
    %675 = vmatprep.subr.mxu0 0.0
    %676 = vmatpush2.msra.mxu0 0.0
    %677 = vmatprep.subr.mxu0 0.0
    %678 = vmatpush2.msra.mxu0 0.0
    %679 = vmatprep.subr.mxu0 0.0
    %680 = vmatpush2.msra.mxu0 0.0
    %681 = vmatprep.subr.mxu0 0.0
    %682 = vmatpush2.msra.mxu0 0.0
    %683 = vmatprep.subr.mxu0 0.0
    %684 = vmatpush2.msra.mxu0 0.0
    %685 = vmatprep.subr.mxu0 0.0
    %686 = vmatpush2.msra.mxu0 0.0
    %687 = vmatprep.subr.mxu0 0.0
    %688 = vmatpush2.msra.mxu0 0.0
    %689 = vmatprep.subr.mxu0 0.0
    %690 = vmatpush2.msra.mxu0 0.0
    %691 = vmatprep.subr.mxu0 0.0
    %692 = vmatpush2.msra.mxu0 0.0
    %693 = vmatprep.subr.mxu0 0.0
    %694 = vmatpush2.msra.mxu0 0.0
    %695 = vmatprep.subr.mxu0 0.0
    %696 = vmatpush2.msra.mxu0 0.0
    %697 = vmatprep.subr.mxu0 0.0
    %698 = vmatpush2.msra.mxu0 0.0
    %699 = vmatprep.mubr.f32.mxu0 0.0
    %700 = vmatmul.mubr.f32.gmra.mxu0 %v440
    %v701 = vpop.f32.mrf.mxu0
    %v702 = vadd.f32 %v436, %v701
    %v703 = vpop.f32.mrf.mxu0
    %704 = vmatprep.mubr.f32.mxu0 0.0
    %705 = vmatmul.mubr.f32.gmra.mxu0 %v443
    %v706 = vpop.f32.mrf.mxu0
    %v707 = vadd.f32 %v436, %v706
    %v708 = vpop.f32.mrf.mxu0
    %709 = vmatprep.mubr.f32.mxu0 0.0
    %710 = vmatmul.mubr.f32.gmra.mxu0 %v446
    %v711 = vpop.f32.mrf.mxu0
    %v712 = vadd.f32 %v436, %v711
    %v713 = vpop.f32.mrf.mxu0
    %714 = vmatprep.mubr.f32.mxu0 0.0
    %715 = vmatmul.mubr.f32.gmra.mxu0 %v449
    %v716 = vpop.f32.mrf.mxu0
    %v717 = vadd.f32 %v436, %v716
    %v718 = vpop.f32.mrf.mxu0
    %719 = vmatprep.mubr.f32.mxu0 0.0
    %720 = vmatmul.mubr.f32.gmra.mxu0 %v452
    %v721 = vpop.f32.mrf.mxu0
    %v722 = vadd.f32 %v436, %v721
    %v723 = vpop.f32.mrf.mxu0
    %724 = vmatprep.mubr.f32.mxu0 0.0
    %725 = vmatmul.mubr.f32.gmra.mxu0 %v455
    %v726 = vpop.f32.mrf.mxu0
    %v727 = vadd.f32 %v436, %v726
    %v728 = vpop.f32.mrf.mxu0
    %729 = vmatprep.mubr.f32.mxu0 0.0
    %730 = vmatmul.mubr.f32.gmra.mxu0 %v458
    %v731 = vpop.f32.mrf.mxu0
    %v732 = vadd.f32 %v436, %v731
    %v733 = vpop.f32.mrf.mxu0
    %734 = vmatprep.mubr.f32.mxu0 0.0
    %735 = vmatmul.mubr.f32.gmra.mxu0 %v461
    %v736 = vpop.f32.mrf.mxu0
    %v737 = vadd.f32 %v436, %v736
    %v738 = vpop.f32.mrf.mxu0
    %739 = vmatprep.mubr.f32.mxu0 0.0
    %740 = vmatmul.mubr.f32.gmra.mxu0 %v464
    %v741 = vpop.f32.mrf.mxu0
    %v742 = vadd.f32 %v436, %v741
    %v743 = vpop.f32.mrf.mxu0
    %744 = vmatprep.mubr.f32.mxu0 0.0
    %745 = vmatmul.mubr.f32.gmra.mxu0 %v467
    %v746 = vpop.f32.mrf.mxu0
    %v747 = vadd.f32 %v436, %v746
    %v748 = vpop.f32.mrf.mxu0
    %749 = vmatprep.mubr.f32.mxu0 0.0
    %750 = vmatmul.mubr.f32.gmra.mxu0 %v470
    %v751 = vpop.f32.mrf.mxu0
    %v752 = vadd.f32 %v436, %v751
    %v753 = vpop.f32.mrf.mxu0
    %754 = vmatprep.mubr.f32.mxu0 0.0
    %755 = vmatmul.mubr.f32.gmra.mxu0 %v473
    %v756 = vpop.f32.mrf.mxu0
    %v757 = vadd.f32 %v436, %v756
    %v758 = vpop.f32.mrf.mxu0
    %759 = vmatprep.mubr.f32.mxu0 0.0
    %760 = vmatmul.mubr.f32.gmra.mxu0 %v476
    %v761 = vpop.f32.mrf.mxu0
    %v762 = vadd.f32 %v436, %v761
    %v763 = vpop.f32.mrf.mxu0
    %764 = vmatprep.mubr.f32.mxu0 0.0
    %765 = vmatmul.mubr.f32.gmra.mxu0 %v479
    %v766 = vpop.f32.mrf.mxu0
    %v767 = vadd.f32 %v436, %v766
    %v768 = vpop.f32.mrf.mxu0
    %769 = vmatprep.mubr.f32.mxu0 0.0
    %770 = vmatmul.mubr.f32.gmra.mxu0 %v482
    %v771 = vpop.f32.mrf.mxu0
    %v772 = vadd.f32 %v436, %v771
    %v773 = vpop.f32.mrf.mxu0
    %774 = vmatprep.mubr.f32.mxu0 0.0
    %775 = vmatmul.mubr.f32.gmra.mxu0 %v485
    %v776 = vpop.f32.mrf.mxu0
    %v777 = vadd.f32 %v436, %v776
    %v778 = vpop.f32.mrf.mxu0
    %779 = vmatprep.mubr.f32.mxu0 0.0
    %780 = vmatmul.mubr.f32.gmra.mxu0 %v488
    %v781 = vpop.f32.mrf.mxu0
    %v782 = vadd.f32 %v436, %v781
    %v783 = vpop.f32.mrf.mxu0
    %784 = vmatprep.mubr.f32.mxu0 0.0
    %785 = vmatmul.mubr.f32.gmra.mxu0 %v491
    %v786 = vpop.f32.mrf.mxu0
    %v787 = vadd.f32 %v436, %v786
    %v788 = vpop.f32.mrf.mxu0
    %789 = vmatprep.mubr.f32.mxu0 0.0
    %790 = vmatmul.mubr.f32.gmra.mxu0 %v494
    %v791 = vpop.f32.mrf.mxu0
    %v792 = vadd.f32 %v436, %v791
    %v793 = vpop.f32.mrf.mxu0
    %794 = vmatprep.mubr.f32.mxu0 0.0
    %795 = vmatmul.mubr.f32.gmra.mxu0 %v497
    %v796 = vpop.f32.mrf.mxu0
    %v797 = vadd.f32 %v436, %v796
    %v798 = vpop.f32.mrf.mxu0
    %799 = vmatprep.mubr.f32.mxu0 0.0
    %800 = vmatmul.mubr.f32.gmra.mxu0 %v500
    %v801 = vpop.f32.mrf.mxu0
    %v802 = vadd.f32 %v436, %v801
    %v803 = vpop.f32.mrf.mxu0
    %804 = vmatprep.mubr.f32.mxu0 0.0
    %805 = vmatmul.mubr.f32.gmra.mxu0 %v503
    %v806 = vpop.f32.mrf.mxu0
    %v807 = vadd.f32 %v436, %v806
    %v808 = vpop.f32.mrf.mxu0
    %809 = vmatprep.mubr.f32.mxu0 0.0
    %810 = vmatmul.mubr.f32.gmra.mxu0 %v506
    %v811 = vpop.f32.mrf.mxu0
    %v812 = vadd.f32 %v436, %v811
    %v813 = vpop.f32.mrf.mxu0
    %814 = vmatprep.mubr.f32.mxu0 0.0
    %815 = vmatmul.mubr.f32.gmra.mxu0 %v509
    %v816 = vpop.f32.mrf.mxu0
    %v817 = vadd.f32 %v436, %v816
    %v818 = vpop.f32.mrf.mxu0
    %819 = vmatprep.mubr.f32.mxu0 0.0
    %820 = vmatmul.mubr.f32.gmra.mxu0 %v512
    %v821 = vpop.f32.mrf.mxu0
    %v822 = vadd.f32 %v436, %v821
    %v823 = vpop.f32.mrf.mxu0
    %824 = vmatprep.mubr.f32.mxu0 0.0
    %825 = vmatmul.mubr.f32.gmra.mxu0 %v515
    %v826 = vpop.f32.mrf.mxu0
    %v827 = vadd.f32 %v436, %v826
    %v828 = vpop.f32.mrf.mxu0
    %829 = vmatprep.mubr.f32.mxu0 0.0
    %830 = vmatmul.mubr.f32.gmra.mxu0 %v518
    %v831 = vpop.f32.mrf.mxu0
    %v832 = vadd.f32 %v436, %v831
    %v833 = vpop.f32.mrf.mxu0
    %834 = vmatprep.mubr.f32.mxu0 0.0
    %835 = vmatmul.mubr.f32.gmra.mxu0 %v521
    %v836 = vpop.f32.mrf.mxu0
    %v837 = vadd.f32 %v436, %v836
    %v838 = vpop.f32.mrf.mxu0
    %839 = vmatprep.mubr.f32.mxu0 0.0
    %840 = vmatmul.mubr.f32.gmra.mxu0 %v524
    %v841 = vpop.f32.mrf.mxu0
    %v842 = vadd.f32 %v436, %v841
    %v843 = vpop.f32.mrf.mxu0
    %844 = vmatprep.mubr.f32.mxu0 0.0
    %845 = vmatmul.mubr.f32.gmra.mxu0 %v527
    %v846 = vpop.f32.mrf.mxu0
    %v847 = vadd.f32 %v436, %v846
    %v848 = vpop.f32.mrf.mxu0
    %849 = vmatprep.mubr.f32.mxu0 0.0
    %850 = vmatmul.mubr.f32.gmra.mxu0 %v530
    %v851 = vpop.f32.mrf.mxu0
    %v852 = vadd.f32 %v436, %v851
    %v853 = vpop.f32.mrf.mxu0
    %854 = vmatprep.mubr.f32.mxu0 0.0
    %855 = vmatmul.mubr.f32.gmra.mxu0 %v533
    %v856 = vpop.f32.mrf.mxu0
    %v857 = vadd.f32 %v436, %v856
    %v858 = vpop.f32.mrf.mxu0
    %859 = vmatprep.mubr.f32.mxu0 0.0
    %860 = vmatmul.mubr.f32.gmra.mxu0 %v536
    %v861 = vpop.f32.mrf.mxu0
    %v862 = vadd.f32 %v436, %v861
    %v863 = vpop.f32.mrf.mxu0
    %864 = vmatprep.mubr.f32.mxu0 0.0
    %865 = vmatmul.mubr.f32.gmra.mxu0 %v539
    %v866 = vpop.f32.mrf.mxu0
    %v867 = vadd.f32 %v436, %v866
    %v868 = vpop.f32.mrf.mxu0
    %869 = vmatprep.mubr.f32.mxu0 0.0
    %870 = vmatmul.mubr.f32.gmra.mxu0 %v542
    %v871 = vpop.f32.mrf.mxu0
    %v872 = vadd.f32 %v436, %v871
    %v873 = vpop.f32.mrf.mxu0
    %874 = vmatprep.mubr.f32.mxu0 0.0
    %875 = vmatmul.mubr.f32.gmra.mxu0 %v545
    %v876 = vpop.f32.mrf.mxu0
    %v877 = vadd.f32 %v436, %v876
    %v878 = vpop.f32.mrf.mxu0
    %879 = vmatprep.mubr.f32.mxu0 0.0
    %880 = vmatmul.mubr.f32.gmra.mxu0 %v548
    %v881 = vpop.f32.mrf.mxu0
    %v882 = vadd.f32 %v436, %v881
    %v883 = vpop.f32.mrf.mxu0
    %884 = vmatprep.mubr.f32.mxu0 0.0
    %885 = vmatmul.mubr.f32.gmra.mxu0 %v551
    %v886 = vpop.f32.mrf.mxu0
    %v887 = vadd.f32 %v436, %v886
    %v888 = vpop.f32.mrf.mxu0
    %889 = vmatprep.mubr.f32.mxu0 0.0
    %890 = vmatmul.mubr.f32.gmra.mxu0 %v554
    %v891 = vpop.f32.mrf.mxu0
    %v892 = vadd.f32 %v436, %v891
    %v893 = vpop.f32.mrf.mxu0
    %894 = vmatprep.mubr.f32.mxu0 0.0
    %895 = vmatmul.mubr.f32.gmra.mxu0 %v557
    %v896 = vpop.f32.mrf.mxu0
    %v897 = vadd.f32 %v436, %v896
    %v898 = vpop.f32.mrf.mxu0
    %899 = vmatprep.mubr.f32.mxu0 0.0
    %900 = vmatmul.mubr.f32.gmra.mxu0 %v560
    %v901 = vpop.f32.mrf.mxu0
    %v902 = vadd.f32 %v436, %v901
    %v903 = vpop.f32.mrf.mxu0
    %904 = vmatprep.mubr.f32.mxu0 0.0
    %905 = vmatmul.mubr.f32.gmra.mxu0 %v563
    %v906 = vpop.f32.mrf.mxu0
    %v907 = vadd.f32 %v436, %v906
    %v908 = vpop.f32.mrf.mxu0
    %909 = vmatprep.mubr.f32.mxu0 0.0
    %910 = vmatmul.mubr.f32.gmra.mxu0 %v566
    %v911 = vpop.f32.mrf.mxu0
    %v912 = vadd.f32 %v436, %v911
    %v913 = vpop.f32.mrf.mxu0
    %914 = vmatprep.mubr.f32.mxu0 0.0
    %915 = vmatmul.mubr.f32.gmra.mxu0 %v569
    %v916 = vpop.f32.mrf.mxu0
    %v917 = vadd.f32 %v436, %v916
    %v918 = vpop.f32.mrf.mxu0
    %919 = vmatprep.mubr.f32.mxu0 0.0
    %920 = vmatmul.mubr.f32.gmra.mxu0 %v572
    %v921 = vpop.f32.mrf.mxu0
    %v922 = vadd.f32 %v436, %v921
    %v923 = vpop.f32.mrf.mxu0
    %924 = vmatprep.mubr.f32.mxu0 0.0
    %925 = vmatmul.mubr.f32.gmra.mxu0 %v575
    %v926 = vpop.f32.mrf.mxu0
    %v927 = vadd.f32 %v436, %v926
    %v928 = vpop.f32.mrf.mxu0
    %929 = vmatprep.mubr.f32.mxu0 0.0
    %930 = vmatmul.mubr.f32.gmra.mxu0 %v578
    %v931 = vpop.f32.mrf.mxu0
    %v932 = vadd.f32 %v436, %v931
    %v933 = vpop.f32.mrf.mxu0
    %934 = vmatprep.mubr.f32.mxu0 0.0
    %935 = vmatmul.mubr.f32.gmra.mxu0 %v581
    %v936 = vpop.f32.mrf.mxu0
    %v937 = vadd.f32 %v436, %v936
    %v938 = vpop.f32.mrf.mxu0
    %939 = vmatprep.mubr.f32.mxu0 0.0
    %940 = vmatmul.mubr.f32.gmra.mxu0 %v584
    %v941 = vpop.f32.mrf.mxu0
    %v942 = vadd.f32 %v436, %v941
    %v943 = vpop.f32.mrf.mxu0
    %944 = vmatprep.mubr.f32.mxu0 0.0
    %945 = vmatmul.mubr.f32.gmra.mxu0 %v587
    %v946 = vpop.f32.mrf.mxu0
    %v947 = vadd.f32 %v436, %v946
    %v948 = vpop.f32.mrf.mxu0
    %949 = vmatprep.mubr.f32.mxu0 0.0
    %950 = vmatmul.mubr.f32.gmra.mxu0 %v590
    %v951 = vpop.f32.mrf.mxu0
    %v952 = vadd.f32 %v436, %v951
    %v953 = vpop.f32.mrf.mxu0
    %954 = vmatprep.mubr.f32.mxu0 0.0
    %955 = vmatmul.mubr.f32.gmra.mxu0 %v593
    %v956 = vpop.f32.mrf.mxu0
    %v957 = vadd.f32 %v436, %v956
    %v958 = vpop.f32.mrf.mxu0
    %959 = vmatprep.mubr.f32.mxu0 0.0
    %960 = vmatmul.mubr.f32.gmra.mxu0 %v596
    %v961 = vpop.f32.mrf.mxu0
    %v962 = vadd.f32 %v436, %v961
    %v963 = vpop.f32.mrf.mxu0
    %964 = vmatprep.mubr.f32.mxu0 0.0
    %965 = vmatmul.mubr.f32.gmra.mxu0 %v599
    %v966 = vpop.f32.mrf.mxu0
    %v967 = vadd.f32 %v436, %v966
    %v968 = vpop.f32.mrf.mxu0
    %969 = vmatprep.mubr.f32.mxu0 0.0
    %970 = vmatmul.mubr.f32.gmra.mxu0 %v602
    %v971 = vpop.f32.mrf.mxu0
    %v972 = vadd.f32 %v436, %v971
    %v973 = vpop.f32.mrf.mxu0
    %974 = vmatprep.mubr.f32.mxu0 0.0
    %975 = vmatmul.mubr.f32.gmra.mxu0 %v605
    %v976 = vpop.f32.mrf.mxu0
    %v977 = vadd.f32 %v436, %v976
    %v978 = vpop.f32.mrf.mxu0
    %979 = vmatprep.mubr.f32.mxu0 0.0
    %980 = vmatmul.mubr.f32.gmra.mxu0 %v608
    %v981 = vpop.f32.mrf.mxu0
    %v982 = vadd.f32 %v436, %v981
    %v983 = vpop.f32.mrf.mxu0
    %984 = vmatprep.mubr.f32.mxu0 0.0
    %985 = vmatmul.mubr.f32.gmra.mxu0 %v611
    %v986 = vpop.f32.mrf.mxu0
    %v987 = vadd.f32 %v436, %v986
    %v988 = vpop.f32.mrf.mxu0
    %989 = vmatprep.mubr.f32.mxu0 0.0
    %990 = vmatmul.mubr.f32.gmra.mxu0 %v614
    %v991 = vpop.f32.mrf.mxu0
    %v992 = vadd.f32 %v436, %v991
    %v993 = vpop.f32.mrf.mxu0
    %994 = vmatprep.mubr.f32.mxu0 0.0
    %995 = vmatmul.mubr.f32.gmra.mxu0 %v617
    %v996 = vpop.f32.mrf.mxu0
    %v997 = vadd.f32 %v436, %v996
    %v998 = vpop.f32.mrf.mxu0
    %999 = vmatprep.mubr.f32.mxu0 0.0
    %1000 = vmatmul.mubr.f32.gmra.mxu0 %v620
    %v1001 = vpop.f32.mrf.mxu0
    %v1002 = vadd.f32 %v436, %v1001
    %v1003 = vpop.f32.mrf.mxu0
    %1004 = vmatprep.mubr.f32.mxu0 0.0
    %1005 = vmatmul.mubr.f32.gmra.mxu0 %v623
    %v1006 = vpop.f32.mrf.mxu0
    %v1007 = vadd.f32 %v436, %v1006
    %v1008 = vpop.f32.mrf.mxu0
    %1009 = vmatprep.mubr.f32.mxu0 0.0
    %1010 = vmatmul.mubr.f32.gmra.mxu0 %v626
    %v1011 = vpop.f32.mrf.mxu0
    %v1012 = vadd.f32 %v436, %v1011
    %v1013 = vpop.f32.mrf.mxu0
    %1014 = vmatprep.mubr.f32.mxu0 0.0
    %1015 = vmatmul.mubr.f32.gmra.mxu0 %v629
    %v1016 = vpop.f32.mrf.mxu0
    %v1017 = vadd.f32 %v436, %v1016
    %v1018 = vpop.f32.mrf.mxu0
    %1019 = vdwg.mxu0
    %v1020 = vmax.f32 %v702, 0.0
    %v1021 = vmax.f32 %v707, 0.0
    %v1022 = vmax.f32 %v712, 0.0
    %v1023 = vmax.f32 %v717, 0.0
    %v1024 = vmax.f32 %v722, 0.0
    %v1025 = vmax.f32 %v727, 0.0
    %v1026 = vmax.f32 %v732, 0.0
    %v1027 = vmax.f32 %v737, 0.0
    %v1028 = vmax.f32 %v742, 0.0
    %v1029 = vmax.f32 %v747, 0.0
    %v1030 = vmax.f32 %v752, 0.0
    %v1031 = vmax.f32 %v757, 0.0
    %v1032 = vmax.f32 %v762, 0.0
    %v1033 = vmax.f32 %v767, 0.0
    %v1034 = vmax.f32 %v772, 0.0
    %v1035 = vmax.f32 %v777, 0.0
    %v1036 = vmax.f32 %v782, 0.0
    %v1037 = vmax.f32 %v787, 0.0
    %v1038 = vmax.f32 %v792, 0.0
    %v1039 = vmax.f32 %v797, 0.0
    %v1040 = vmax.f32 %v802, 0.0
    %v1041 = vmax.f32 %v807, 0.0
    %v1042 = vmax.f32 %v812, 0.0
    %v1043 = vmax.f32 %v817, 0.0
    %v1044 = vmax.f32 %v822, 0.0
    %v1045 = vmax.f32 %v827, 0.0
    %v1046 = vmax.f32 %v832, 0.0
    %v1047 = vmax.f32 %v837, 0.0
    %v1048 = vmax.f32 %v842, 0.0
    %v1049 = vmax.f32 %v847, 0.0
    %v1050 = vmax.f32 %v852, 0.0
    %v1051 = vmax.f32 %v857, 0.0
    %v1052 = vmax.f32 %v862, 0.0
    %v1053 = vmax.f32 %v867, 0.0
    %v1054 = vmax.f32 %v872, 0.0
    %v1055 = vmax.f32 %v877, 0.0
    %v1056 = vmax.f32 %v882, 0.0
    %v1057 = vmax.f32 %v887, 0.0
    %v1058 = vmax.f32 %v892, 0.0
    %v1059 = vmax.f32 %v897, 0.0
    %v1060 = vmax.f32 %v902, 0.0
    %v1061 = vmax.f32 %v907, 0.0
    %v1062 = vmax.f32 %v912, 0.0
    %v1063 = vmax.f32 %v917, 0.0
    %v1064 = vmax.f32 %v922, 0.0
    %v1065 = vmax.f32 %v927, 0.0
    %v1066 = vmax.f32 %v932, 0.0
    %v1067 = vmax.f32 %v937, 0.0
    %v1068 = vmax.f32 %v942, 0.0
    %v1069 = vmax.f32 %v947, 0.0
    %v1070 = vmax.f32 %v952, 0.0
    %v1071 = vmax.f32 %v957, 0.0
    %v1072 = vmax.f32 %v962, 0.0
    %v1073 = vmax.f32 %v967, 0.0
    %v1074 = vmax.f32 %v972, 0.0
    %v1075 = vmax.f32 %v977, 0.0
    %v1076 = vmax.f32 %v982, 0.0
    %v1077 = vmax.f32 %v987, 0.0
    %v1078 = vmax.f32 %v992, 0.0
    %v1079 = vmax.f32 %v997, 0.0
    %v1080 = vmax.f32 %v1002, 0.0
    %v1081 = vmax.f32 %v1007, 0.0
    %v1082 = vmax.f32 %v1012, 0.0
    %v1083 = vmax.f32 %v1017, 0.0
    %v1084 = vld [vmem:[%s5] sm:$0xff]
    %v1085 = vld [vmem:[%s5 + $0x8] sm:$0xff]
    %v1086 = vld [vmem:[%s5 + $0x10] sm:$0xff]
    %v1087 = vld [vmem:[%s5 + $0x18] sm:$0xff]
    %v1088 = vld [vmem:[%s5 + $0x20] sm:$0xff]
    %v1089 = vld [vmem:[%s5 + $0x28] sm:$0xff]
    %v1090 = vld [vmem:[%s5 + $0x30] sm:$0xff]
    %v1091 = vld [vmem:[%s5 + $0x38] sm:$0xff]
    %v1092 = vld [vmem:[#allocation2] sm:$0x1]
    %v1094 = vlaneseq
    %v1095 = vshrl.u32 %v1094, 7
    %v1096 = vsub.s32 0, %v1095
    %v1097 = vrot.slane %v1092, %v1096
    %vm1099 = vcmask 523264
    %v1101 = vsel %vm1099, %v1020, 0
    %v1104 = vsel %vm1099, %v1021, 0
    %v1107 = vsel %vm1099, %v1022, 0
    %v1110 = vsel %vm1099, %v1023, 0
    %v1113 = vsel %vm1099, %v1024, 0
    %v1116 = vsel %vm1099, %v1025, 0
    %v1119 = vsel %vm1099, %v1026, 0
    %v1122 = vsel %vm1099, %v1027, 0
    %v1125 = vsel %vm1099, %v1028, 0
    %v1128 = vsel %vm1099, %v1029, 0
    %v1131 = vsel %vm1099, %v1030, 0
    %v1134 = vsel %vm1099, %v1031, 0
    %v1137 = vsel %vm1099, %v1032, 0
    %v1140 = vsel %vm1099, %v1033, 0
    %v1143 = vsel %vm1099, %v1034, 0
    %v1146 = vsel %vm1099, %v1035, 0
    %v1149 = vsel %vm1099, %v1036, 0
    %v1152 = vsel %vm1099, %v1037, 0
    %v1155 = vsel %vm1099, %v1038, 0
    %v1158 = vsel %vm1099, %v1039, 0
    %v1161 = vsel %vm1099, %v1040, 0
    %v1164 = vsel %vm1099, %v1041, 0
    %v1167 = vsel %vm1099, %v1042, 0
    %v1170 = vsel %vm1099, %v1043, 0
    %v1173 = vsel %vm1099, %v1044, 0
    %v1176 = vsel %vm1099, %v1045, 0
    %v1179 = vsel %vm1099, %v1046, 0
    %v1182 = vsel %vm1099, %v1047, 0
    %v1185 = vsel %vm1099, %v1048, 0
    %v1188 = vsel %vm1099, %v1049, 0
    %v1191 = vsel %vm1099, %v1050, 0
    %v1194 = vsel %vm1099, %v1051, 0
    %v1197 = vsel %vm1099, %v1052, 0
    %v1200 = vsel %vm1099, %v1053, 0
    %v1203 = vsel %vm1099, %v1054, 0
    %v1206 = vsel %vm1099, %v1055, 0
    %v1209 = vsel %vm1099, %v1056, 0
    %v1212 = vsel %vm1099, %v1057, 0
    %v1215 = vsel %vm1099, %v1058, 0
    %v1218 = vsel %vm1099, %v1059, 0
    %v1221 = vsel %vm1099, %v1060, 0
    %v1224 = vsel %vm1099, %v1061, 0
    %v1227 = vsel %vm1099, %v1062, 0
    %v1230 = vsel %vm1099, %v1063, 0
    %v1233 = vsel %vm1099, %v1064, 0
    %v1236 = vsel %vm1099, %v1065, 0
    %v1239 = vsel %vm1099, %v1066, 0
    %v1242 = vsel %vm1099, %v1067, 0
    %v1245 = vsel %vm1099, %v1068, 0
    %v1248 = vsel %vm1099, %v1069, 0
    %v1251 = vsel %vm1099, %v1070, 0
    %v1254 = vsel %vm1099, %v1071, 0
    %v1257 = vsel %vm1099, %v1072, 0
    %v1260 = vsel %vm1099, %v1073, 0
    %v1263 = vsel %vm1099, %v1074, 0
    %v1266 = vsel %vm1099, %v1075, 0
    %v1269 = vsel %vm1099, %v1076, 0
    %v1272 = vsel %vm1099, %v1077, 0
    %v1275 = vsel %vm1099, %v1078, 0
    %v1278 = vsel %vm1099, %v1079, 0
    %v1281 = vsel %vm1099, %v1080, 0
    %v1284 = vsel %vm1099, %v1081, 0
    %v1287 = vsel %vm1099, %v1082, 0
    %v1290 = vsel %vm1099, %v1083, 0
    %1292 = vmatprep.subr.mxu0 0.0
    %1293 = vmatpush1.msra.mxu0 0.0
    %1294 = vmatprep.subr.mxu0 0.0
    %1295 = vmatpush1.msra.mxu0 0.0
    %1296 = vmatprep.subr.mxu0 0.0
    %1297 = vmatpush1.msra.mxu0 0.0
    %1298 = vmatprep.subr.mxu0 0.0
    %1299 = vmatpush1.msra.mxu0 0.0
    %1300 = vmatprep.subr.mxu0 0.0
    %1301 = vmatpush1.msra.mxu0 0.0
    %1302 = vmatprep.subr.mxu0 0.0
    %1303 = vmatpush1.msra.mxu0 0.0
    %1304 = vmatprep.subr.mxu0 0.0
    %1305 = vmatpush1.msra.mxu0 0.0
    %1306 = vmatprep.subr.mxu0 0.0
    %1307 = vmatpush1.msra.mxu0 0.0
    %1308 = vmatprep.subr.mxu0 0.0
    %1309 = vmatpush1.msra.mxu0 %v1091
    %1310 = vmatprep.subr.mxu0 0.0
    %1311 = vmatpush1.msra.mxu0 %v1090
    %1312 = vmatprep.subr.mxu0 0.0
    %1313 = vmatpush1.msra.mxu0 %v1089
    %1314 = vmatprep.subr.mxu0 0.0
    %1315 = vmatpush1.msra.mxu0 %v1088
    %1316 = vmatprep.subr.mxu0 0.0
    %1317 = vmatpush1.msra.mxu0 %v1087
    %1318 = vmatprep.subr.mxu0 0.0
    %1319 = vmatpush1.msra.mxu0 %v1086
    %1320 = vmatprep.subr.mxu0 0.0
    %1321 = vmatpush1.msra.mxu0 %v1085
    %1322 = vmatprep.subr.mxu0 0.0
    %1323 = vmatpush1.msra.mxu0 %v1084
    %1324 = vmatprep.subr.mxu0 0.0
    %1325 = vmatpush2.msra.mxu0 0.0
    %1326 = vmatprep.subr.mxu0 0.0
    %1327 = vmatpush2.msra.mxu0 0.0
    %1328 = vmatprep.subr.mxu0 0.0
    %1329 = vmatpush2.msra.mxu0 0.0
    %1330 = vmatprep.subr.mxu0 0.0
    %1331 = vmatpush2.msra.mxu0 0.0
    %1332 = vmatprep.subr.mxu0 0.0
    %1333 = vmatpush2.msra.mxu0 0.0
    %1334 = vmatprep.subr.mxu0 0.0
    %1335 = vmatpush2.msra.mxu0 0.0
    %1336 = vmatprep.subr.mxu0 0.0
    %1337 = vmatpush2.msra.mxu0 0.0
    %1338 = vmatprep.subr.mxu0 0.0
    %1339 = vmatpush2.msra.mxu0 0.0
    %1340 = vmatprep.subr.mxu0 0.0
    %1341 = vmatpush2.msra.mxu0 0.0
    %1342 = vmatprep.subr.mxu0 0.0
    %1343 = vmatpush2.msra.mxu0 0.0
    %1344 = vmatprep.subr.mxu0 0.0
    %1345 = vmatpush2.msra.mxu0 0.0
    %1346 = vmatprep.subr.mxu0 0.0
    %1347 = vmatpush2.msra.mxu0 0.0
    %1348 = vmatprep.subr.mxu0 0.0
    %1349 = vmatpush2.msra.mxu0 0.0
    %1350 = vmatprep.subr.mxu0 0.0
    %1351 = vmatpush2.msra.mxu0 0.0
    %1352 = vmatprep.subr.mxu0 0.0
    %1353 = vmatpush2.msra.mxu0 0.0
    %1354 = vmatprep.subr.mxu0 0.0
    %1355 = vmatpush2.msra.mxu0 0.0
    %1356 = vmatprep.mubr.f32.mxu0 0.0
    %1357 = vmatmul.mubr.f32.gmra.mxu0 %v1101
    %v1358 = vpop.f32.mrf.mxu0
    %v1359 = vadd.f32 %v1097, %v1358
    %v1360 = vpop.f32.mrf.mxu0
    %1361 = vmatprep.mubr.f32.mxu0 0.0
    %1362 = vmatmul.mubr.f32.gmra.mxu0 %v1104
    %v1363 = vpop.f32.mrf.mxu0
    %v1364 = vadd.f32 %v1097, %v1363
    %v1365 = vpop.f32.mrf.mxu0
    %1366 = vmatprep.mubr.f32.mxu0 0.0
    %1367 = vmatmul.mubr.f32.gmra.mxu0 %v1107
    %v1368 = vpop.f32.mrf.mxu0
    %v1369 = vadd.f32 %v1097, %v1368
    %v1370 = vpop.f32.mrf.mxu0
    %1371 = vmatprep.mubr.f32.mxu0 0.0
    %1372 = vmatmul.mubr.f32.gmra.mxu0 %v1110
    %v1373 = vpop.f32.mrf.mxu0
    %v1374 = vadd.f32 %v1097, %v1373
    %v1375 = vpop.f32.mrf.mxu0
    %1376 = vmatprep.mubr.f32.mxu0 0.0
    %1377 = vmatmul.mubr.f32.gmra.mxu0 %v1113
    %v1378 = vpop.f32.mrf.mxu0
    %v1379 = vadd.f32 %v1097, %v1378
    %v1380 = vpop.f32.mrf.mxu0
    %1381 = vmatprep.mubr.f32.mxu0 0.0
    %1382 = vmatmul.mubr.f32.gmra.mxu0 %v1116
    %v1383 = vpop.f32.mrf.mxu0
    %v1384 = vadd.f32 %v1097, %v1383
    %v1385 = vpop.f32.mrf.mxu0
    %1386 = vmatprep.mubr.f32.mxu0 0.0
    %1387 = vmatmul.mubr.f32.gmra.mxu0 %v1119
    %v1388 = vpop.f32.mrf.mxu0
    %v1389 = vadd.f32 %v1097, %v1388
    %v1390 = vpop.f32.mrf.mxu0
    %1391 = vmatprep.mubr.f32.mxu0 0.0
    %1392 = vmatmul.mubr.f32.gmra.mxu0 %v1122
    %v1393 = vpop.f32.mrf.mxu0
    %v1394 = vadd.f32 %v1097, %v1393
    %v1395 = vpop.f32.mrf.mxu0
    %1396 = vmatprep.mubr.f32.mxu0 0.0
    %1397 = vmatmul.mubr.f32.gmra.mxu0 %v1125
    %v1398 = vpop.f32.mrf.mxu0
    %v1399 = vadd.f32 %v1097, %v1398
    %v1400 = vpop.f32.mrf.mxu0
    %1401 = vmatprep.mubr.f32.mxu0 0.0
    %1402 = vmatmul.mubr.f32.gmra.mxu0 %v1128
    %v1403 = vpop.f32.mrf.mxu0
    %v1404 = vadd.f32 %v1097, %v1403
    %v1405 = vpop.f32.mrf.mxu0
    %1406 = vmatprep.mubr.f32.mxu0 0.0
    %1407 = vmatmul.mubr.f32.gmra.mxu0 %v1131
    %v1408 = vpop.f32.mrf.mxu0
    %v1409 = vadd.f32 %v1097, %v1408
    %v1410 = vpop.f32.mrf.mxu0
    %1411 = vmatprep.mubr.f32.mxu0 0.0
    %1412 = vmatmul.mubr.f32.gmra.mxu0 %v1134
    %v1413 = vpop.f32.mrf.mxu0
    %v1414 = vadd.f32 %v1097, %v1413
    %v1415 = vpop.f32.mrf.mxu0
    %1416 = vmatprep.mubr.f32.mxu0 0.0
    %1417 = vmatmul.mubr.f32.gmra.mxu0 %v1137
    %v1418 = vpop.f32.mrf.mxu0
    %v1419 = vadd.f32 %v1097, %v1418
    %v1420 = vpop.f32.mrf.mxu0
    %1421 = vmatprep.mubr.f32.mxu0 0.0
    %1422 = vmatmul.mubr.f32.gmra.mxu0 %v1140
    %v1423 = vpop.f32.mrf.mxu0
    %v1424 = vadd.f32 %v1097, %v1423
    %v1425 = vpop.f32.mrf.mxu0
    %1426 = vmatprep.mubr.f32.mxu0 0.0
    %1427 = vmatmul.mubr.f32.gmra.mxu0 %v1143
    %v1428 = vpop.f32.mrf.mxu0
    %v1429 = vadd.f32 %v1097, %v1428
    %v1430 = vpop.f32.mrf.mxu0
    %1431 = vmatprep.mubr.f32.mxu0 0.0
    %1432 = vmatmul.mubr.f32.gmra.mxu0 %v1146
    %v1433 = vpop.f32.mrf.mxu0
    %v1434 = vadd.f32 %v1097, %v1433
    %v1435 = vpop.f32.mrf.mxu0
    %1436 = vmatprep.mubr.f32.mxu0 0.0
    %1437 = vmatmul.mubr.f32.gmra.mxu0 %v1149
    %v1438 = vpop.f32.mrf.mxu0
    %v1439 = vadd.f32 %v1097, %v1438
    %v1440 = vpop.f32.mrf.mxu0
    %1441 = vmatprep.mubr.f32.mxu0 0.0
    %1442 = vmatmul.mubr.f32.gmra.mxu0 %v1152
    %v1443 = vpop.f32.mrf.mxu0
    %v1444 = vadd.f32 %v1097, %v1443
    %v1445 = vpop.f32.mrf.mxu0
    %1446 = vmatprep.mubr.f32.mxu0 0.0
    %1447 = vmatmul.mubr.f32.gmra.mxu0 %v1155
    %v1448 = vpop.f32.mrf.mxu0
    %v1449 = vadd.f32 %v1097, %v1448
    %v1450 = vpop.f32.mrf.mxu0
    %1451 = vmatprep.mubr.f32.mxu0 0.0
    %1452 = vmatmul.mubr.f32.gmra.mxu0 %v1158
    %v1453 = vpop.f32.mrf.mxu0
    %v1454 = vadd.f32 %v1097, %v1453
    %v1455 = vpop.f32.mrf.mxu0
    %1456 = vmatprep.mubr.f32.mxu0 0.0
    %1457 = vmatmul.mubr.f32.gmra.mxu0 %v1161
    %v1458 = vpop.f32.mrf.mxu0
    %v1459 = vadd.f32 %v1097, %v1458
    %v1460 = vpop.f32.mrf.mxu0
    %1461 = vmatprep.mubr.f32.mxu0 0.0
    %1462 = vmatmul.mubr.f32.gmra.mxu0 %v1164
    %v1463 = vpop.f32.mrf.mxu0
    %v1464 = vadd.f32 %v1097, %v1463
    %v1465 = vpop.f32.mrf.mxu0
    %1466 = vmatprep.mubr.f32.mxu0 0.0
    %1467 = vmatmul.mubr.f32.gmra.mxu0 %v1167
    %v1468 = vpop.f32.mrf.mxu0
    %v1469 = vadd.f32 %v1097, %v1468
    %v1470 = vpop.f32.mrf.mxu0
    %1471 = vmatprep.mubr.f32.mxu0 0.0
    %1472 = vmatmul.mubr.f32.gmra.mxu0 %v1170
    %v1473 = vpop.f32.mrf.mxu0
    %v1474 = vadd.f32 %v1097, %v1473
    %v1475 = vpop.f32.mrf.mxu0
    %1476 = vmatprep.mubr.f32.mxu0 0.0
    %1477 = vmatmul.mubr.f32.gmra.mxu0 %v1173
    %v1478 = vpop.f32.mrf.mxu0
    %v1479 = vadd.f32 %v1097, %v1478
    %v1480 = vpop.f32.mrf.mxu0
    %1481 = vmatprep.mubr.f32.mxu0 0.0
    %1482 = vmatmul.mubr.f32.gmra.mxu0 %v1176
    %v1483 = vpop.f32.mrf.mxu0
    %v1484 = vadd.f32 %v1097, %v1483
    %v1485 = vpop.f32.mrf.mxu0
    %1486 = vmatprep.mubr.f32.mxu0 0.0
    %1487 = vmatmul.mubr.f32.gmra.mxu0 %v1179
    %v1488 = vpop.f32.mrf.mxu0
    %v1489 = vadd.f32 %v1097, %v1488
    %v1490 = vpop.f32.mrf.mxu0
    %1491 = vmatprep.mubr.f32.mxu0 0.0
    %1492 = vmatmul.mubr.f32.gmra.mxu0 %v1182
    %v1493 = vpop.f32.mrf.mxu0
    %v1494 = vadd.f32 %v1097, %v1493
    %v1495 = vpop.f32.mrf.mxu0
    %1496 = vmatprep.mubr.f32.mxu0 0.0
    %1497 = vmatmul.mubr.f32.gmra.mxu0 %v1185
    %v1498 = vpop.f32.mrf.mxu0
    %v1499 = vadd.f32 %v1097, %v1498
    %v1500 = vpop.f32.mrf.mxu0
    %1501 = vmatprep.mubr.f32.mxu0 0.0
    %1502 = vmatmul.mubr.f32.gmra.mxu0 %v1188
    %v1503 = vpop.f32.mrf.mxu0
    %v1504 = vadd.f32 %v1097, %v1503
    %v1505 = vpop.f32.mrf.mxu0
    %1506 = vmatprep.mubr.f32.mxu0 0.0
    %1507 = vmatmul.mubr.f32.gmra.mxu0 %v1191
    %v1508 = vpop.f32.mrf.mxu0
    %v1509 = vadd.f32 %v1097, %v1508
    %v1510 = vpop.f32.mrf.mxu0
    %1511 = vmatprep.mubr.f32.mxu0 0.0
    %1512 = vmatmul.mubr.f32.gmra.mxu0 %v1194
    %v1513 = vpop.f32.mrf.mxu0
    %v1514 = vadd.f32 %v1097, %v1513
    %v1515 = vpop.f32.mrf.mxu0
    %1516 = vmatprep.mubr.f32.mxu0 0.0
    %1517 = vmatmul.mubr.f32.gmra.mxu0 %v1197
    %v1518 = vpop.f32.mrf.mxu0
    %v1519 = vadd.f32 %v1097, %v1518
    %v1520 = vpop.f32.mrf.mxu0
    %1521 = vmatprep.mubr.f32.mxu0 0.0
    %1522 = vmatmul.mubr.f32.gmra.mxu0 %v1200
    %v1523 = vpop.f32.mrf.mxu0
    %v1524 = vadd.f32 %v1097, %v1523
    %v1525 = vpop.f32.mrf.mxu0
    %1526 = vmatprep.mubr.f32.mxu0 0.0
    %1527 = vmatmul.mubr.f32.gmra.mxu0 %v1203
    %v1528 = vpop.f32.mrf.mxu0
    %v1529 = vadd.f32 %v1097, %v1528
    %v1530 = vpop.f32.mrf.mxu0
    %1531 = vmatprep.mubr.f32.mxu0 0.0
    %1532 = vmatmul.mubr.f32.gmra.mxu0 %v1206
    %v1533 = vpop.f32.mrf.mxu0
    %v1534 = vadd.f32 %v1097, %v1533
    %v1535 = vpop.f32.mrf.mxu0
    %1536 = vmatprep.mubr.f32.mxu0 0.0
    %1537 = vmatmul.mubr.f32.gmra.mxu0 %v1209
    %v1538 = vpop.f32.mrf.mxu0
    %v1539 = vadd.f32 %v1097, %v1538
    %v1540 = vpop.f32.mrf.mxu0
    %1541 = vmatprep.mubr.f32.mxu0 0.0
    %1542 = vmatmul.mubr.f32.gmra.mxu0 %v1212
    %v1543 = vpop.f32.mrf.mxu0
    %v1544 = vadd.f32 %v1097, %v1543
    %v1545 = vpop.f32.mrf.mxu0
    %1546 = vmatprep.mubr.f32.mxu0 0.0
    %1547 = vmatmul.mubr.f32.gmra.mxu0 %v1215
    %v1548 = vpop.f32.mrf.mxu0
    %v1549 = vadd.f32 %v1097, %v1548
    %v1550 = vpop.f32.mrf.mxu0
    %1551 = vmatprep.mubr.f32.mxu0 0.0
    %1552 = vmatmul.mubr.f32.gmra.mxu0 %v1218
    %v1553 = vpop.f32.mrf.mxu0
    %v1554 = vadd.f32 %v1097, %v1553
    %v1555 = vpop.f32.mrf.mxu0
    %1556 = vmatprep.mubr.f32.mxu0 0.0
    %1557 = vmatmul.mubr.f32.gmra.mxu0 %v1221
    %v1558 = vpop.f32.mrf.mxu0
    %v1559 = vadd.f32 %v1097, %v1558
    %v1560 = vpop.f32.mrf.mxu0
    %1561 = vmatprep.mubr.f32.mxu0 0.0
    %1562 = vmatmul.mubr.f32.gmra.mxu0 %v1224
    %v1563 = vpop.f32.mrf.mxu0
    %v1564 = vadd.f32 %v1097, %v1563
    %v1565 = vpop.f32.mrf.mxu0
    %1566 = vmatprep.mubr.f32.mxu0 0.0
    %1567 = vmatmul.mubr.f32.gmra.mxu0 %v1227
    %v1568 = vpop.f32.mrf.mxu0
    %v1569 = vadd.f32 %v1097, %v1568
    %v1570 = vpop.f32.mrf.mxu0
    %1571 = vmatprep.mubr.f32.mxu0 0.0
    %1572 = vmatmul.mubr.f32.gmra.mxu0 %v1230
    %v1573 = vpop.f32.mrf.mxu0
    %v1574 = vadd.f32 %v1097, %v1573
    %v1575 = vpop.f32.mrf.mxu0
    %1576 = vmatprep.mubr.f32.mxu0 0.0
    %1577 = vmatmul.mubr.f32.gmra.mxu0 %v1233
    %v1578 = vpop.f32.mrf.mxu0
    %v1579 = vadd.f32 %v1097, %v1578
    %v1580 = vpop.f32.mrf.mxu0
    %1581 = vmatprep.mubr.f32.mxu0 0.0
    %1582 = vmatmul.mubr.f32.gmra.mxu0 %v1236
    %v1583 = vpop.f32.mrf.mxu0
    %v1584 = vadd.f32 %v1097, %v1583
    %v1585 = vpop.f32.mrf.mxu0
    %1586 = vmatprep.mubr.f32.mxu0 0.0
    %1587 = vmatmul.mubr.f32.gmra.mxu0 %v1239
    %v1588 = vpop.f32.mrf.mxu0
    %v1589 = vadd.f32 %v1097, %v1588
    %v1590 = vpop.f32.mrf.mxu0
    %1591 = vmatprep.mubr.f32.mxu0 0.0
    %1592 = vmatmul.mubr.f32.gmra.mxu0 %v1242
    %v1593 = vpop.f32.mrf.mxu0
    %v1594 = vadd.f32 %v1097, %v1593
    %v1595 = vpop.f32.mrf.mxu0
    %1596 = vmatprep.mubr.f32.mxu0 0.0
    %1597 = vmatmul.mubr.f32.gmra.mxu0 %v1245
    %v1598 = vpop.f32.mrf.mxu0
    %v1599 = vadd.f32 %v1097, %v1598
    %v1600 = vpop.f32.mrf.mxu0
    %1601 = vmatprep.mubr.f32.mxu0 0.0
    %1602 = vmatmul.mubr.f32.gmra.mxu0 %v1248
    %v1603 = vpop.f32.mrf.mxu0
    %v1604 = vadd.f32 %v1097, %v1603
    %v1605 = vpop.f32.mrf.mxu0
    %1606 = vmatprep.mubr.f32.mxu0 0.0
    %1607 = vmatmul.mubr.f32.gmra.mxu0 %v1251
    %v1608 = vpop.f32.mrf.mxu0
    %v1609 = vadd.f32 %v1097, %v1608
    %v1610 = vpop.f32.mrf.mxu0
    %1611 = vmatprep.mubr.f32.mxu0 0.0
    %1612 = vmatmul.mubr.f32.gmra.mxu0 %v1254
    %v1613 = vpop.f32.mrf.mxu0
    %v1614 = vadd.f32 %v1097, %v1613
    %v1615 = vpop.f32.mrf.mxu0
    %1616 = vmatprep.mubr.f32.mxu0 0.0
    %1617 = vmatmul.mubr.f32.gmra.mxu0 %v1257
    %v1618 = vpop.f32.mrf.mxu0
    %v1619 = vadd.f32 %v1097, %v1618
    %v1620 = vpop.f32.mrf.mxu0
    %1621 = vmatprep.mubr.f32.mxu0 0.0
    %1622 = vmatmul.mubr.f32.gmra.mxu0 %v1260
    %v1623 = vpop.f32.mrf.mxu0
    %v1624 = vadd.f32 %v1097, %v1623
    %v1625 = vpop.f32.mrf.mxu0
    %1626 = vmatprep.mubr.f32.mxu0 0.0
    %1627 = vmatmul.mubr.f32.gmra.mxu0 %v1263
    %v1628 = vpop.f32.mrf.mxu0
    %v1629 = vadd.f32 %v1097, %v1628
    %v1630 = vpop.f32.mrf.mxu0
    %1631 = vmatprep.mubr.f32.mxu0 0.0
    %1632 = vmatmul.mubr.f32.gmra.mxu0 %v1266
    %v1633 = vpop.f32.mrf.mxu0
    %v1634 = vadd.f32 %v1097, %v1633
    %v1635 = vpop.f32.mrf.mxu0
    %1636 = vmatprep.mubr.f32.mxu0 0.0
    %1637 = vmatmul.mubr.f32.gmra.mxu0 %v1269
    %v1638 = vpop.f32.mrf.mxu0
    %v1639 = vadd.f32 %v1097, %v1638
    %v1640 = vpop.f32.mrf.mxu0
    %1641 = vmatprep.mubr.f32.mxu0 0.0
    %1642 = vmatmul.mubr.f32.gmra.mxu0 %v1272
    %v1643 = vpop.f32.mrf.mxu0
    %v1644 = vadd.f32 %v1097, %v1643
    %v1645 = vpop.f32.mrf.mxu0
    %1646 = vmatprep.mubr.f32.mxu0 0.0
    %1647 = vmatmul.mubr.f32.gmra.mxu0 %v1275
    %v1648 = vpop.f32.mrf.mxu0
    %v1649 = vadd.f32 %v1097, %v1648
    %v1650 = vpop.f32.mrf.mxu0
    %1651 = vmatprep.mubr.f32.mxu0 0.0
    %1652 = vmatmul.mubr.f32.gmra.mxu0 %v1278
    %v1653 = vpop.f32.mrf.mxu0
    %v1654 = vadd.f32 %v1097, %v1653
    %v1655 = vpop.f32.mrf.mxu0
    %1656 = vmatprep.mubr.f32.mxu0 0.0
    %1657 = vmatmul.mubr.f32.gmra.mxu0 %v1281
    %v1658 = vpop.f32.mrf.mxu0
    %v1659 = vadd.f32 %v1097, %v1658
    %v1660 = vpop.f32.mrf.mxu0
    %1661 = vmatprep.mubr.f32.mxu0 0.0
    %1662 = vmatmul.mubr.f32.gmra.mxu0 %v1284
    %v1663 = vpop.f32.mrf.mxu0
    %v1664 = vadd.f32 %v1097, %v1663
    %v1665 = vpop.f32.mrf.mxu0
    %1666 = vmatprep.mubr.f32.mxu0 0.0
    %1667 = vmatmul.mubr.f32.gmra.mxu0 %v1287
    %v1668 = vpop.f32.mrf.mxu0
    %v1669 = vadd.f32 %v1097, %v1668
    %v1670 = vpop.f32.mrf.mxu0
    %1671 = vmatprep.mubr.f32.mxu0 0.0
    %1672 = vmatmul.mubr.f32.gmra.mxu0 %v1290
    %v1673 = vpop.f32.mrf.mxu0
    %v1674 = vadd.f32 %v1097, %v1673
    %v1675 = vpop.f32.mrf.mxu0
    %1676 = vdwg.mxu0
    %v1677 = vmax.f32 %v1359, 0.0
    %v1678 = vmax.f32 %v1364, 0.0
    %v1679 = vmax.f32 %v1369, 0.0
    %v1680 = vmax.f32 %v1374, 0.0
    %v1681 = vmax.f32 %v1379, 0.0
    %v1682 = vmax.f32 %v1384, 0.0
    %v1683 = vmax.f32 %v1389, 0.0
    %v1684 = vmax.f32 %v1394, 0.0
    %v1685 = vmax.f32 %v1399, 0.0
    %v1686 = vmax.f32 %v1404, 0.0
    %v1687 = vmax.f32 %v1409, 0.0
    %v1688 = vmax.f32 %v1414, 0.0
    %v1689 = vmax.f32 %v1419, 0.0
    %v1690 = vmax.f32 %v1424, 0.0
    %v1691 = vmax.f32 %v1429, 0.0
    %v1692 = vmax.f32 %v1434, 0.0
    %v1693 = vmax.f32 %v1439, 0.0
    %v1694 = vmax.f32 %v1444, 0.0
    %v1695 = vmax.f32 %v1449, 0.0
    %v1696 = vmax.f32 %v1454, 0.0
    %v1697 = vmax.f32 %v1459, 0.0
    %v1698 = vmax.f32 %v1464, 0.0
    %v1699 = vmax.f32 %v1469, 0.0
    %v1700 = vmax.f32 %v1474, 0.0
    %v1701 = vmax.f32 %v1479, 0.0
    %v1702 = vmax.f32 %v1484, 0.0
    %v1703 = vmax.f32 %v1489, 0.0
    %v1704 = vmax.f32 %v1494, 0.0
    %v1705 = vmax.f32 %v1499, 0.0
    %v1706 = vmax.f32 %v1504, 0.0
    %v1707 = vmax.f32 %v1509, 0.0
    %v1708 = vmax.f32 %v1514, 0.0
    %v1709 = vmax.f32 %v1519, 0.0
    %v1710 = vmax.f32 %v1524, 0.0
    %v1711 = vmax.f32 %v1529, 0.0
    %v1712 = vmax.f32 %v1534, 0.0
    %v1713 = vmax.f32 %v1539, 0.0
    %v1714 = vmax.f32 %v1544, 0.0
    %v1715 = vmax.f32 %v1549, 0.0
    %v1716 = vmax.f32 %v1554, 0.0
    %v1717 = vmax.f32 %v1559, 0.0
    %v1718 = vmax.f32 %v1564, 0.0
    %v1719 = vmax.f32 %v1569, 0.0
    %v1720 = vmax.f32 %v1574, 0.0
    %v1721 = vmax.f32 %v1579, 0.0
    %v1722 = vmax.f32 %v1584, 0.0
    %v1723 = vmax.f32 %v1589, 0.0
    %v1724 = vmax.f32 %v1594, 0.0
    %v1725 = vmax.f32 %v1599, 0.0
    %v1726 = vmax.f32 %v1604, 0.0
    %v1727 = vmax.f32 %v1609, 0.0
    %v1728 = vmax.f32 %v1614, 0.0
    %v1729 = vmax.f32 %v1619, 0.0
    %v1730 = vmax.f32 %v1624, 0.0
    %v1731 = vmax.f32 %v1629, 0.0
    %v1732 = vmax.f32 %v1634, 0.0
    %v1733 = vmax.f32 %v1639, 0.0
    %v1734 = vmax.f32 %v1644, 0.0
    %v1735 = vmax.f32 %v1649, 0.0
    %v1736 = vmax.f32 %v1654, 0.0
    %v1737 = vmax.f32 %v1659, 0.0
    %v1738 = vmax.f32 %v1664, 0.0
    %v1739 = vmax.f32 %v1669, 0.0
    %v1740 = vmax.f32 %v1674, 0.0
    %1742 = vset.pattern.permute.xlu0 0
    %1743 = vperm.xlu0 %1742, %v1677
    %v1744 = vpop.permute.xlu0 %1743
    %1747 = vset.pattern.permute.xlu0 0
    %1748 = vperm.xlu0 %1747, %v1678
    %v1749 = vpop.permute.xlu0 %1748
    %1752 = vset.pattern.permute.xlu0 0
    %1753 = vperm.xlu0 %1752, %v1679
    %v1754 = vpop.permute.xlu0 %1753
    %1757 = vset.pattern.permute.xlu0 0
    %1758 = vperm.xlu0 %1757, %v1680
    %v1759 = vpop.permute.xlu0 %1758
    %1762 = vset.pattern.permute.xlu0 0
    %1763 = vperm.xlu0 %1762, %v1681
    %v1764 = vpop.permute.xlu0 %1763
    %1767 = vset.pattern.permute.xlu0 0
    %1768 = vperm.xlu0 %1767, %v1682
    %v1769 = vpop.permute.xlu0 %1768
    %1772 = vset.pattern.permute.xlu0 0
    %1773 = vperm.xlu0 %1772, %v1683
    %v1774 = vpop.permute.xlu0 %1773
    %1777 = vset.pattern.permute.xlu0 0
    %1778 = vperm.xlu0 %1777, %v1684
    %v1779 = vpop.permute.xlu0 %1778
    %1782 = vset.pattern.permute.xlu0 0
    %1783 = vperm.xlu0 %1782, %v1685
    %v1784 = vpop.permute.xlu0 %1783
    %1787 = vset.pattern.permute.xlu0 0
    %1788 = vperm.xlu0 %1787, %v1686
    %v1789 = vpop.permute.xlu0 %1788
    %1792 = vset.pattern.permute.xlu0 0
    %1793 = vperm.xlu0 %1792, %v1687
    %v1794 = vpop.permute.xlu0 %1793
    %1797 = vset.pattern.permute.xlu0 0
    %1798 = vperm.xlu0 %1797, %v1688
    %v1799 = vpop.permute.xlu0 %1798
    %1802 = vset.pattern.permute.xlu0 0
    %1803 = vperm.xlu0 %1802, %v1689
    %v1804 = vpop.permute.xlu0 %1803
    %1807 = vset.pattern.permute.xlu0 0
    %1808 = vperm.xlu0 %1807, %v1690
    %v1809 = vpop.permute.xlu0 %1808
    %1812 = vset.pattern.permute.xlu0 0
    %1813 = vperm.xlu0 %1812, %v1691
    %v1814 = vpop.permute.xlu0 %1813
    %1817 = vset.pattern.permute.xlu0 0
    %1818 = vperm.xlu0 %1817, %v1692
    %v1819 = vpop.permute.xlu0 %1818
    %1822 = vset.pattern.permute.xlu0 0
    %1823 = vperm.xlu0 %1822, %v1693
    %v1824 = vpop.permute.xlu0 %1823
    %1827 = vset.pattern.permute.xlu0 0
    %1828 = vperm.xlu0 %1827, %v1694
    %v1829 = vpop.permute.xlu0 %1828
    %1832 = vset.pattern.permute.xlu0 0
    %1833 = vperm.xlu0 %1832, %v1695
    %v1834 = vpop.permute.xlu0 %1833
    %1837 = vset.pattern.permute.xlu0 0
    %1838 = vperm.xlu0 %1837, %v1696
    %v1839 = vpop.permute.xlu0 %1838
    %1842 = vset.pattern.permute.xlu0 0
    %1843 = vperm.xlu0 %1842, %v1697
    %v1844 = vpop.permute.xlu0 %1843
    %1847 = vset.pattern.permute.xlu0 0
    %1848 = vperm.xlu0 %1847, %v1698
    %v1849 = vpop.permute.xlu0 %1848
    %1852 = vset.pattern.permute.xlu0 0
    %1853 = vperm.xlu0 %1852, %v1699
    %v1854 = vpop.permute.xlu0 %1853
    %1857 = vset.pattern.permute.xlu0 0
    %1858 = vperm.xlu0 %1857, %v1700
    %v1859 = vpop.permute.xlu0 %1858
    %1862 = vset.pattern.permute.xlu0 0
    %1863 = vperm.xlu0 %1862, %v1701
    %v1864 = vpop.permute.xlu0 %1863
    %1867 = vset.pattern.permute.xlu0 0
    %1868 = vperm.xlu0 %1867, %v1702
    %v1869 = vpop.permute.xlu0 %1868
    %1872 = vset.pattern.permute.xlu0 0
    %1873 = vperm.xlu0 %1872, %v1703
    %v1874 = vpop.permute.xlu0 %1873
    %1877 = vset.pattern.permute.xlu0 0
    %1878 = vperm.xlu0 %1877, %v1704
    %v1879 = vpop.permute.xlu0 %1878
    %1882 = vset.pattern.permute.xlu0 0
    %1883 = vperm.xlu0 %1882, %v1705
    %v1884 = vpop.permute.xlu0 %1883
    %1887 = vset.pattern.permute.xlu0 0
    %1888 = vperm.xlu0 %1887, %v1706
    %v1889 = vpop.permute.xlu0 %1888
    %1892 = vset.pattern.permute.xlu0 0
    %1893 = vperm.xlu0 %1892, %v1707
    %v1894 = vpop.permute.xlu0 %1893
    %1897 = vset.pattern.permute.xlu0 0
    %1898 = vperm.xlu0 %1897, %v1708
    %v1899 = vpop.permute.xlu0 %1898
    %1902 = vset.pattern.permute.xlu0 0
    %1903 = vperm.xlu0 %1902, %v1709
    %v1904 = vpop.permute.xlu0 %1903
    %1907 = vset.pattern.permute.xlu0 0
    %1908 = vperm.xlu0 %1907, %v1710
    %v1909 = vpop.permute.xlu0 %1908
    %1912 = vset.pattern.permute.xlu0 0
    %1913 = vperm.xlu0 %1912, %v1711
    %v1914 = vpop.permute.xlu0 %1913
    %1917 = vset.pattern.permute.xlu0 0
    %1918 = vperm.xlu0 %1917, %v1712
    %v1919 = vpop.permute.xlu0 %1918
    %1922 = vset.pattern.permute.xlu0 0
    %1923 = vperm.xlu0 %1922, %v1713
    %v1924 = vpop.permute.xlu0 %1923
    %1927 = vset.pattern.permute.xlu0 0
    %1928 = vperm.xlu0 %1927, %v1714
    %v1929 = vpop.permute.xlu0 %1928
    %1932 = vset.pattern.permute.xlu0 0
    %1933 = vperm.xlu0 %1932, %v1715
    %v1934 = vpop.permute.xlu0 %1933
    %1937 = vset.pattern.permute.xlu0 0
    %1938 = vperm.xlu0 %1937, %v1716
    %v1939 = vpop.permute.xlu0 %1938
    %1942 = vset.pattern.permute.xlu0 0
    %1943 = vperm.xlu0 %1942, %v1717
    %v1944 = vpop.permute.xlu0 %1943
    %1947 = vset.pattern.permute.xlu0 0
    %1948 = vperm.xlu0 %1947, %v1718
    %v1949 = vpop.permute.xlu0 %1948
    %1952 = vset.pattern.permute.xlu0 0
    %1953 = vperm.xlu0 %1952, %v1719
    %v1954 = vpop.permute.xlu0 %1953
    %1957 = vset.pattern.permute.xlu0 0
    %1958 = vperm.xlu0 %1957, %v1720
    %v1959 = vpop.permute.xlu0 %1958
    %1962 = vset.pattern.permute.xlu0 0
    %1963 = vperm.xlu0 %1962, %v1721
    %v1964 = vpop.permute.xlu0 %1963
    %1967 = vset.pattern.permute.xlu0 0
    %1968 = vperm.xlu0 %1967, %v1722
    %v1969 = vpop.permute.xlu0 %1968
    %1972 = vset.pattern.permute.xlu0 0
    %1973 = vperm.xlu0 %1972, %v1723
    %v1974 = vpop.permute.xlu0 %1973
    %1977 = vset.pattern.permute.xlu0 0
    %1978 = vperm.xlu0 %1977, %v1724
    %v1979 = vpop.permute.xlu0 %1978
    %1982 = vset.pattern.permute.xlu0 0
    %1983 = vperm.xlu0 %1982, %v1725
    %v1984 = vpop.permute.xlu0 %1983
    %1987 = vset.pattern.permute.xlu0 0
    %1988 = vperm.xlu0 %1987, %v1726
    %v1989 = vpop.permute.xlu0 %1988
    %1992 = vset.pattern.permute.xlu0 0
    %1993 = vperm.xlu0 %1992, %v1727
    %v1994 = vpop.permute.xlu0 %1993
    %1997 = vset.pattern.permute.xlu0 0
    %1998 = vperm.xlu0 %1997, %v1728
    %v1999 = vpop.permute.xlu0 %1998
    %2002 = vset.pattern.permute.xlu0 0
    %2003 = vperm.xlu0 %2002, %v1729
    %v2004 = vpop.permute.xlu0 %2003
    %2007 = vset.pattern.permute.xlu0 0
    %2008 = vperm.xlu0 %2007, %v1730
    %v2009 = vpop.permute.xlu0 %2008
    %2012 = vset.pattern.permute.xlu0 0
    %2013 = vperm.xlu0 %2012, %v1731
    %v2014 = vpop.permute.xlu0 %2013
    %2017 = vset.pattern.permute.xlu0 0
    %2018 = vperm.xlu0 %2017, %v1732
    %v2019 = vpop.permute.xlu0 %2018
    %2022 = vset.pattern.permute.xlu0 0
    %2023 = vperm.xlu0 %2022, %v1733
    %v2024 = vpop.permute.xlu0 %2023
    %2027 = vset.pattern.permute.xlu0 0
    %2028 = vperm.xlu0 %2027, %v1734
    %v2029 = vpop.permute.xlu0 %2028
    %2032 = vset.pattern.permute.xlu0 0
    %2033 = vperm.xlu0 %2032, %v1735
    %v2034 = vpop.permute.xlu0 %2033
    %2037 = vset.pattern.permute.xlu0 0
    %2038 = vperm.xlu0 %2037, %v1736
    %v2039 = vpop.permute.xlu0 %2038
    %2042 = vset.pattern.permute.xlu0 0
    %2043 = vperm.xlu0 %2042, %v1737
    %v2044 = vpop.permute.xlu0 %2043
    %2047 = vset.pattern.permute.xlu0 0
    %2048 = vperm.xlu0 %2047, %v1738
    %v2049 = vpop.permute.xlu0 %2048
    %2052 = vset.pattern.permute.xlu0 0
    %2053 = vperm.xlu0 %2052, %v1739
    %v2054 = vpop.permute.xlu0 %2053
    %2057 = vset.pattern.permute.xlu0 0
    %2058 = vperm.xlu0 %2057, %v1740
    %v2059 = vpop.permute.xlu0 %2058
    %v2061 = vmul.f32 %v1744, %v299
    %v2062 = vmul.f32 %v1749, %v300
    %v2063 = vmul.f32 %v1754, %v301
    %v2064 = vmul.f32 %v1759, %v302
    %v2065 = vmul.f32 %v1764, %v303
    %v2066 = vmul.f32 %v1769, %v304
    %v2067 = vmul.f32 %v1774, %v305
    %v2068 = vmul.f32 %v1779, %v306
    %v2069 = vmul.f32 %v1784, %v307
    %v2070 = vmul.f32 %v1789, %v308
    %v2071 = vmul.f32 %v1794, %v309
    %v2072 = vmul.f32 %v1799, %v310
    %v2073 = vmul.f32 %v1804, %v311
    %v2074 = vmul.f32 %v1809, %v312
    %v2075 = vmul.f32 %v1814, %v313
    %v2076 = vmul.f32 %v1819, %v314
    %v2077 = vmul.f32 %v1824, %v315
    %v2078 = vmul.f32 %v1829, %v316
    %v2079 = vmul.f32 %v1834, %v317
    %v2080 = vmul.f32 %v1839, %v318
    %v2081 = vmul.f32 %v1844, %v319
    %v2082 = vmul.f32 %v1849, %v320
    %v2083 = vmul.f32 %v1854, %v321
    %v2084 = vmul.f32 %v1859, %v322
    %v2085 = vmul.f32 %v1864, %v323
    %v2086 = vmul.f32 %v1869, %v324
    %v2087 = vmul.f32 %v1874, %v325
    %v2088 = vmul.f32 %v1879, %v326
    %v2089 = vmul.f32 %v1884, %v327
    %v2090 = vmul.f32 %v1889, %v328
    %v2091 = vmul.f32 %v1894, %v329
    %v2092 = vmul.f32 %v1899, %v330
    %v2093 = vmul.f32 %v1904, %v331
    %v2094 = vmul.f32 %v1909, %v332
    %v2095 = vmul.f32 %v1914, %v333
    %v2096 = vmul.f32 %v1919, %v334
    %v2097 = vmul.f32 %v1924, %v335
    %v2098 = vmul.f32 %v1929, %v336
    %v2099 = vmul.f32 %v1934, %v337
    %v2100 = vmul.f32 %v1939, %v338
    %v2101 = vmul.f32 %v1944, %v339
    %v2102 = vmul.f32 %v1949, %v340
    %v2103 = vmul.f32 %v1954, %v341
    %v2104 = vmul.f32 %v1959, %v342
    %v2105 = vmul.f32 %v1964, %v343
    %v2106 = vmul.f32 %v1969, %v344
    %v2107 = vmul.f32 %v1974, %v345
    %v2108 = vmul.f32 %v1979, %v346
    %v2109 = vmul.f32 %v1984, %v347
    %v2110 = vmul.f32 %v1989, %v348
    %v2111 = vmul.f32 %v1994, %v349
    %v2112 = vmul.f32 %v1999, %v350
    %v2113 = vmul.f32 %v2004, %v351
    %v2114 = vmul.f32 %v2009, %v352
    %v2115 = vmul.f32 %v2014, %v353
    %v2116 = vmul.f32 %v2019, %v354
    %v2117 = vmul.f32 %v2024, %v355
    %v2118 = vmul.f32 %v2029, %v356
    %v2119 = vmul.f32 %v2034, %v357
    %v2120 = vmul.f32 %v2039, %v358
    %v2121 = vmul.f32 %v2044, %v359
    %v2122 = vmul.f32 %v2049, %v360
    %v2123 = vmul.f32 %v2054, %v361
    %v2124 = vmul.f32 %v2059, %v362
    %2125 = vmatprep.subr.mxu0 0.0
    %2126 = vmatpush1.msra.mxu0 %v2076
    %2127 = vmatprep.subr.mxu0 0.0
    %2128 = vmatpush1.msra.mxu0 %v2075
    %2129 = vmatprep.subr.mxu0 0.0
    %2130 = vmatpush1.msra.mxu0 %v2074
    %2131 = vmatprep.subr.mxu0 0.0
    %2132 = vmatpush1.msra.mxu0 %v2073
    %2133 = vmatprep.subr.mxu0 0.0
    %2134 = vmatpush1.msra.mxu0 %v2072
    %2135 = vmatprep.subr.mxu0 0.0
    %2136 = vmatpush1.msra.mxu0 %v2071
    %2137 = vmatprep.subr.mxu0 0.0
    %2138 = vmatpush1.msra.mxu0 %v2070
    %2139 = vmatprep.subr.mxu0 0.0
    %2140 = vmatpush1.msra.mxu0 %v2069
    %2141 = vmatprep.subr.mxu0 0.0
    %2142 = vmatpush1.msra.mxu0 %v2068
    %2143 = vmatprep.subr.mxu0 0.0
    %2144 = vmatpush1.msra.mxu0 %v2067
    %2145 = vmatprep.subr.mxu0 0.0
    %2146 = vmatpush1.msra.mxu0 %v2066
    %2147 = vmatprep.subr.mxu0 0.0
    %2148 = vmatpush1.msra.mxu0 %v2065
    %2149 = vmatprep.subr.mxu0 0.0
    %2150 = vmatpush1.msra.mxu0 %v2064
    %2151 = vmatprep.subr.mxu0 0.0
    %2152 = vmatpush1.msra.mxu0 %v2063
    %2153 = vmatprep.subr.mxu0 0.0
    %2154 = vmatpush1.msra.mxu0 %v2062
    %2155 = vmatprep.subr.mxu0 0.0
    %2156 = vmatpush1.msra.mxu0 %v2061
    %2157 = vmatprep.subr.mxu0 0.0
    %2158 = vmatpush2.msra.mxu0 %v2092
    %2159 = vmatprep.subr.mxu0 0.0
    %2160 = vmatpush2.msra.mxu0 %v2091
    %2161 = vmatprep.subr.mxu0 0.0
    %2162 = vmatpush2.msra.mxu0 %v2090
    %2163 = vmatprep.subr.mxu0 0.0
    %2164 = vmatpush2.msra.mxu0 %v2089
    %2165 = vmatprep.subr.mxu0 0.0
    %2166 = vmatpush2.msra.mxu0 %v2088
    %2167 = vmatprep.subr.mxu0 0.0
    %2168 = vmatpush2.msra.mxu0 %v2087
    %2169 = vmatprep.subr.mxu0 0.0
    %2170 = vmatpush2.msra.mxu0 %v2086
    %2171 = vmatprep.subr.mxu0 0.0
    %2172 = vmatpush2.msra.mxu0 %v2085
    %2173 = vmatprep.subr.mxu0 0.0
    %2174 = vmatpush2.msra.mxu0 %v2084
    %2175 = vmatprep.subr.mxu0 0.0
    %2176 = vmatpush2.msra.mxu0 %v2083
    %2177 = vmatprep.subr.mxu0 0.0
    %2178 = vmatpush2.msra.mxu0 %v2082
    %2179 = vmatprep.subr.mxu0 0.0
    %2180 = vmatpush2.msra.mxu0 %v2081
    %2181 = vmatprep.subr.mxu0 0.0
    %2182 = vmatpush2.msra.mxu0 %v2080
    %2183 = vmatprep.subr.mxu0 0.0
    %2184 = vmatpush2.msra.mxu0 %v2079
    %2185 = vmatprep.subr.mxu0 0.0
    %2186 = vmatpush2.msra.mxu0 %v2078
    %2187 = vmatprep.subr.mxu0 0.0
    %2188 = vmatpush2.msra.mxu0 %v2077
    %2189 = vmatprep.mubr.f32.mxu0 %v105
    %2190 = vmatmul.mubr.f32.gmra.mxu0 %v104
    %v2191 = vpop.f32.mrf.mxu0
    %v2192 = vadd.f32 0.0, %v2191
    %v2193 = vpop.f32.mrf.mxu0
    %2194 = vdwg.mxu0
    %2195 = vmatprep.subr.mxu0 0.0
    %2196 = vmatpush1.msra.mxu0 %v2108
    %2197 = vmatprep.subr.mxu0 0.0
    %2198 = vmatpush1.msra.mxu0 %v2107
    %2199 = vmatprep.subr.mxu0 0.0
    %2200 = vmatpush1.msra.mxu0 %v2106
    %2201 = vmatprep.subr.mxu0 0.0
    %2202 = vmatpush1.msra.mxu0 %v2105
    %2203 = vmatprep.subr.mxu0 0.0
    %2204 = vmatpush1.msra.mxu0 %v2104
    %2205 = vmatprep.subr.mxu0 0.0
    %2206 = vmatpush1.msra.mxu0 %v2103
    %2207 = vmatprep.subr.mxu0 0.0
    %2208 = vmatpush1.msra.mxu0 %v2102
    %2209 = vmatprep.subr.mxu0 0.0
    %2210 = vmatpush1.msra.mxu0 %v2101
    %2211 = vmatprep.subr.mxu0 0.0
    %2212 = vmatpush1.msra.mxu0 %v2100
    %2213 = vmatprep.subr.mxu0 0.0
    %2214 = vmatpush1.msra.mxu0 %v2099
    %2215 = vmatprep.subr.mxu0 0.0
    %2216 = vmatpush1.msra.mxu0 %v2098
    %2217 = vmatprep.subr.mxu0 0.0
    %2218 = vmatpush1.msra.mxu0 %v2097
    %2219 = vmatprep.subr.mxu0 0.0
    %2220 = vmatpush1.msra.mxu0 %v2096
    %2221 = vmatprep.subr.mxu0 0.0
    %2222 = vmatpush1.msra.mxu0 %v2095
    %2223 = vmatprep.subr.mxu0 0.0
    %2224 = vmatpush1.msra.mxu0 %v2094
    %2225 = vmatprep.subr.mxu0 0.0
    %2226 = vmatpush1.msra.mxu0 %v2093
    %2227 = vmatprep.subr.mxu0 0.0
    %2228 = vmatpush2.msra.mxu0 %v2124
    %2229 = vmatprep.subr.mxu0 0.0
    %2230 = vmatpush2.msra.mxu0 %v2123
    %2231 = vmatprep.subr.mxu0 0.0
    %2232 = vmatpush2.msra.mxu0 %v2122
    %2233 = vmatprep.subr.mxu0 0.0
    %2234 = vmatpush2.msra.mxu0 %v2121
    %2235 = vmatprep.subr.mxu0 0.0
    %2236 = vmatpush2.msra.mxu0 %v2120
    %2237 = vmatprep.subr.mxu0 0.0
    %2238 = vmatpush2.msra.mxu0 %v2119
    %2239 = vmatprep.subr.mxu0 0.0
    %2240 = vmatpush2.msra.mxu0 %v2118
    %2241 = vmatprep.subr.mxu0 0.0
    %2242 = vmatpush2.msra.mxu0 %v2117
    %2243 = vmatprep.subr.mxu0 0.0
    %2244 = vmatpush2.msra.mxu0 %v2116
    %2245 = vmatprep.subr.mxu0 0.0
    %2246 = vmatpush2.msra.mxu0 %v2115
    %2247 = vmatprep.subr.mxu0 0.0
    %2248 = vmatpush2.msra.mxu0 %v2114
    %2249 = vmatprep.subr.mxu0 0.0
    %2250 = vmatpush2.msra.mxu0 %v2113
    %2251 = vmatprep.subr.mxu0 0.0
    %2252 = vmatpush2.msra.mxu0 %v2112
    %2253 = vmatprep.subr.mxu0 0.0
    %2254 = vmatpush2.msra.mxu0 %v2111
    %2255 = vmatprep.subr.mxu0 0.0
    %2256 = vmatpush2.msra.mxu0 %v2110
    %2257 = vmatprep.subr.mxu0 0.0
    %2258 = vmatpush2.msra.mxu0 %v2109
    %2259 = vmatprep.mubr.f32.mxu0 %v107
    %2260 = vmatmul.mubr.f32.gmra.mxu0 %v106
    %v2261 = vpop.f32.mrf.mxu0
    %v2262 = vadd.f32 %v2192, %v2261
    %v2263 = vpop.f32.mrf.mxu0
    %2264 = vdwg.mxu0
    %v2265 = vld [vmem:[%s7] sm:$0xff]
    %v2266 = vld [vmem:[%s7 + $0x8] sm:$0xff]
    %v2267 = vld [vmem:[%s7 + $0x10] sm:$0xff]
    %v2268 = vld [vmem:[%s7 + $0x18] sm:$0xff]
    %v2269 = vld [vmem:[%s7 + $0x20] sm:$0xff]
    %v2270 = vld [vmem:[%s7 + $0x28] sm:$0xff]
    %v2271 = vld [vmem:[%s7 + $0x30] sm:$0xff]
    %v2272 = vld [vmem:[%s7 + $0x38] sm:$0xff]
    %v2273 = vld [vmem:[%s8] sm:$0x1]
    %v2275 = vlaneseq
    %v2276 = vshrl.u32 %v2275, 7
    %v2277 = vsub.s32 0, %v2276
    %v2278 = vrot.slane %v2273, %v2277
    %v2281 = vsel %vm1099, %v2262, 0
    %2283 = vmatprep.subr.mxu0 0.0
    %2284 = vmatpush1.msra.mxu0 0.0
    %2285 = vmatprep.subr.mxu0 0.0
    %2286 = vmatpush1.msra.mxu0 0.0
    %2287 = vmatprep.subr.mxu0 0.0
    %2288 = vmatpush1.msra.mxu0 0.0
    %2289 = vmatprep.subr.mxu0 0.0
    %2290 = vmatpush1.msra.mxu0 0.0
    %2291 = vmatprep.subr.mxu0 0.0
    %2292 = vmatpush1.msra.mxu0 0.0
    %2293 = vmatprep.subr.mxu0 0.0
    %2294 = vmatpush1.msra.mxu0 0.0
    %2295 = vmatprep.subr.mxu0 0.0
    %2296 = vmatpush1.msra.mxu0 0.0
    %2297 = vmatprep.subr.mxu0 0.0
    %2298 = vmatpush1.msra.mxu0 0.0
    %2299 = vmatprep.subr.mxu0 0.0
    %2300 = vmatpush1.msra.mxu0 %v2272
    %2301 = vmatprep.subr.mxu0 0.0
    %2302 = vmatpush1.msra.mxu0 %v2271
    %2303 = vmatprep.subr.mxu0 0.0
    %2304 = vmatpush1.msra.mxu0 %v2270
    %2305 = vmatprep.subr.mxu0 0.0
    %2306 = vmatpush1.msra.mxu0 %v2269
    %2307 = vmatprep.subr.mxu0 0.0
    %2308 = vmatpush1.msra.mxu0 %v2268
    %2309 = vmatprep.subr.mxu0 0.0
    %2310 = vmatpush1.msra.mxu0 %v2267
    %2311 = vmatprep.subr.mxu0 0.0
    %2312 = vmatpush1.msra.mxu0 %v2266
    %2313 = vmatprep.subr.mxu0 0.0
    %2314 = vmatpush1.msra.mxu0 %v2265
    %2315 = vmatprep.subr.mxu0 0.0
    %2316 = vmatpush2.msra.mxu0 0.0
    %2317 = vmatprep.subr.mxu0 0.0
    %2318 = vmatpush2.msra.mxu0 0.0
    %2319 = vmatprep.subr.mxu0 0.0
    %2320 = vmatpush2.msra.mxu0 0.0
    %2321 = vmatprep.subr.mxu0 0.0
    %2322 = vmatpush2.msra.mxu0 0.0
    %2323 = vmatprep.subr.mxu0 0.0
    %2324 = vmatpush2.msra.mxu0 0.0
    %2325 = vmatprep.subr.mxu0 0.0
    %2326 = vmatpush2.msra.mxu0 0.0
    %2327 = vmatprep.subr.mxu0 0.0
    %2328 = vmatpush2.msra.mxu0 0.0
    %2329 = vmatprep.subr.mxu0 0.0
    %2330 = vmatpush2.msra.mxu0 0.0
    %2331 = vmatprep.subr.mxu0 0.0
    %2332 = vmatpush2.msra.mxu0 0.0
    %2333 = vmatprep.subr.mxu0 0.0
    %2334 = vmatpush2.msra.mxu0 0.0
    %2335 = vmatprep.subr.mxu0 0.0
    %2336 = vmatpush2.msra.mxu0 0.0
    %2337 = vmatprep.subr.mxu0 0.0
    %2338 = vmatpush2.msra.mxu0 0.0
    %2339 = vmatprep.subr.mxu0 0.0
    %2340 = vmatpush2.msra.mxu0 0.0
    %2341 = vmatprep.subr.mxu0 0.0
    %2342 = vmatpush2.msra.mxu0 0.0
    %2343 = vmatprep.subr.mxu0 0.0
    %2344 = vmatpush2.msra.mxu0 0.0
    %2345 = vmatprep.subr.mxu0 0.0
    %2346 = vmatpush2.msra.mxu0 0.0
    %2347 = vmatprep.mubr.f32.mxu0 0.0
    %2348 = vmatmul.mubr.f32.gmra.mxu0 %v2281
    %v2349 = vpop.f32.mrf.mxu0
    %v2350 = vadd.f32 %v2278, %v2349
    %v2351 = vpop.f32.mrf.mxu0
    %2352 = vdwg.mxu0
    %v2353 = vmax.f32 %v2350, 0.0
    %v2354 = vld [vmem:[%s1] sm:$0xff]
    %v2355 = vld [vmem:[%s1 + $0x8] sm:$0xff]
    %v2356 = vld [vmem:[%s1 + $0x10] sm:$0xff]
    %v2357 = vld [vmem:[%s1 + $0x18] sm:$0xff]
    %v2358 = vld [vmem:[%s1 + $0x20] sm:$0xff]
    %v2359 = vld [vmem:[%s1 + $0x28] sm:$0xff]
    %v2360 = vld [vmem:[%s1 + $0x30] sm:$0xff]
    %v2361 = vld [vmem:[%s1 + $0x38] sm:$0xff]
    %v2362 = vld [vmem:[%s1 + $0x40] sm:$0xff]
    %v2363 = vld [vmem:[%s1 + $0x48] sm:$0xff]
    %v2364 = vld [vmem:[%s1 + $0x50] sm:$0xff]
    %v2365 = vld [vmem:[%s1 + $0x58] sm:$0xff]
    %v2366 = vld [vmem:[%s1 + $0x60] sm:$0xff]
    %v2367 = vld [vmem:[%s1 + $0x68] sm:$0xff]
    %v2368 = vld [vmem:[%s1 + $0x70] sm:$0xff]
    %v2369 = vld [vmem:[%s1 + $0x78] sm:$0xff]
    %v2370 = vld [vmem:[%s1 + $0x80] sm:$0xff]
    %v2371 = vld [vmem:[%s1 + $0x88] sm:$0xff]
    %v2372 = vld [vmem:[%s1 + $0x90] sm:$0xff]
    %v2373 = vld [vmem:[%s1 + $0x98] sm:$0xff]
    %v2374 = vld [vmem:[%s1 + $0xa0] sm:$0xff]
    %v2375 = vld [vmem:[%s1 + $0xa8] sm:$0xff]
    %v2376 = vld [vmem:[%s1 + $0xb0] sm:$0xff]
    %v2377 = vld [vmem:[%s1 + $0xb8] sm:$0xff]
    %v2378 = vld [vmem:[%s1 + $0xc0] sm:$0xff]
    %v2379 = vld [vmem:[%s1 + $0xc8] sm:$0xff]
    %v2380 = vld [vmem:[%s1 + $0xd0] sm:$0xff]
    %v2381 = vld [vmem:[%s1 + $0xd8] sm:$0xff]
    %v2382 = vld [vmem:[%s1 + $0xe0] sm:$0xff]
    %v2383 = vld [vmem:[%s1 + $0xe8] sm:$0xff]
    %v2384 = vld [vmem:[%s1 + $0xf0] sm:$0xff]
    %v2385 = vld [vmem:[%s1 + $0xf8] sm:$0xff]
    %v2386 = vld [vmem:[%s1 + $0x100] sm:$0xff]
    %v2387 = vld [vmem:[%s1 + $0x108] sm:$0xff]
    %v2388 = vld [vmem:[%s1 + $0x110] sm:$0xff]
    %v2389 = vld [vmem:[%s1 + $0x118] sm:$0xff]
    %v2390 = vld [vmem:[%s1 + $0x120] sm:$0xff]
    %v2391 = vld [vmem:[%s1 + $0x128] sm:$0xff]
    %v2392 = vld [vmem:[%s1 + $0x130] sm:$0xff]
    %v2393 = vld [vmem:[%s1 + $0x138] sm:$0xff]
    %v2394 = vld [vmem:[%s1 + $0x140] sm:$0xff]
    %v2395 = vld [vmem:[%s1 + $0x148] sm:$0xff]
    %v2396 = vld [vmem:[%s1 + $0x150] sm:$0xff]
    %v2397 = vld [vmem:[%s1 + $0x158] sm:$0xff]
    %v2398 = vld [vmem:[%s1 + $0x160] sm:$0xff]
    %v2399 = vld [vmem:[%s1 + $0x168] sm:$0xff]
    %v2400 = vld [vmem:[%s1 + $0x170] sm:$0xff]
    %v2401 = vld [vmem:[%s1 + $0x178] sm:$0xff]
    %v2402 = vld [vmem:[%s1 + $0x180] sm:$0xff]
    %v2403 = vld [vmem:[%s1 + $0x188] sm:$0xff]
    %v2404 = vld [vmem:[%s1 + $0x190] sm:$0xff]
    %v2405 = vld [vmem:[%s1 + $0x198] sm:$0xff]
    %v2406 = vld [vmem:[%s1 + $0x1a0] sm:$0xff]
    %v2407 = vld [vmem:[%s1 + $0x1a8] sm:$0xff]
    %v2408 = vld [vmem:[%s1 + $0x1b0] sm:$0xff]
    %v2409 = vld [vmem:[%s1 + $0x1b8] sm:$0xff]
    %v2410 = vld [vmem:[%s1 + $0x1c0] sm:$0xff]
    %v2411 = vld [vmem:[%s1 + $0x1c8] sm:$0xff]
    %v2412 = vld [vmem:[%s1 + $0x1d0] sm:$0xff]
    %v2413 = vld [vmem:[%s1 + $0x1d8] sm:$0xff]
    %v2414 = vld [vmem:[%s1 + $0x1e0] sm:$0xff]
    %v2415 = vld [vmem:[%s1 + $0x1e8] sm:$0xff]
    %v2416 = vld [vmem:[%s1 + $0x1f0] sm:$0xff]
    %v2417 = vld [vmem:[%s1 + $0x1f8] sm:$0xff]
    %v2418 = vld [vmem:[%s9] sm:$0xff]
    %v2419 = vld [vmem:[%s9 + $0x8] sm:$0x3]
    %v2420 = vld [vmem:[%s10] sm:$0x1]
    %v2422 = vlaneseq
    %v2423 = vshrl.u32 %v2422, 7
    %v2424 = vsub.s32 0, %v2423
    %v2425 = vrot.slane %v2420, %v2424
    %vm2427 = vcmask 80896
    %v2429 = vsel %vm2427, %v2354, 0
    %v2432 = vsel %vm2427, %v2355, 0
    %v2435 = vsel %vm2427, %v2356, 0
    %v2438 = vsel %vm2427, %v2357, 0
    %v2441 = vsel %vm2427, %v2358, 0
    %v2444 = vsel %vm2427, %v2359, 0
    %v2447 = vsel %vm2427, %v2360, 0
    %v2450 = vsel %vm2427, %v2361, 0
    %v2453 = vsel %vm2427, %v2362, 0
    %v2456 = vsel %vm2427, %v2363, 0
    %v2459 = vsel %vm2427, %v2364, 0
    %v2462 = vsel %vm2427, %v2365, 0
    %v2465 = vsel %vm2427, %v2366, 0
    %v2468 = vsel %vm2427, %v2367, 0
    %v2471 = vsel %vm2427, %v2368, 0
    %v2474 = vsel %vm2427, %v2369, 0
    %v2477 = vsel %vm2427, %v2370, 0
    %v2480 = vsel %vm2427, %v2371, 0
    %v2483 = vsel %vm2427, %v2372, 0
    %v2486 = vsel %vm2427, %v2373, 0
    %v2489 = vsel %vm2427, %v2374, 0
    %v2492 = vsel %vm2427, %v2375, 0
    %v2495 = vsel %vm2427, %v2376, 0
    %v2498 = vsel %vm2427, %v2377, 0
    %v2501 = vsel %vm2427, %v2378, 0
    %v2504 = vsel %vm2427, %v2379, 0
    %v2507 = vsel %vm2427, %v2380, 0
    %v2510 = vsel %vm2427, %v2381, 0
    %v2513 = vsel %vm2427, %v2382, 0
    %v2516 = vsel %vm2427, %v2383, 0
    %v2519 = vsel %vm2427, %v2384, 0
    %v2522 = vsel %vm2427, %v2385, 0
    %v2525 = vsel %vm2427, %v2386, 0
    %v2528 = vsel %vm2427, %v2387, 0
    %v2531 = vsel %vm2427, %v2388, 0
    %v2534 = vsel %vm2427, %v2389, 0
    %v2537 = vsel %vm2427, %v2390, 0
    %v2540 = vsel %vm2427, %v2391, 0
    %v2543 = vsel %vm2427, %v2392, 0
    %v2546 = vsel %vm2427, %v2393, 0
    %v2549 = vsel %vm2427, %v2394, 0
    %v2552 = vsel %vm2427, %v2395, 0
    %v2555 = vsel %vm2427, %v2396, 0
    %v2558 = vsel %vm2427, %v2397, 0
    %v2561 = vsel %vm2427, %v2398, 0
    %v2564 = vsel %vm2427, %v2399, 0
    %v2567 = vsel %vm2427, %v2400, 0
    %v2570 = vsel %vm2427, %v2401, 0
    %v2573 = vsel %vm2427, %v2402, 0
    %v2576 = vsel %vm2427, %v2403, 0
    %v2579 = vsel %vm2427, %v2404, 0
    %v2582 = vsel %vm2427, %v2405, 0
    %v2585 = vsel %vm2427, %v2406, 0
    %v2588 = vsel %vm2427, %v2407, 0
    %v2591 = vsel %vm2427, %v2408, 0
    %v2594 = vsel %vm2427, %v2409, 0
    %v2597 = vsel %vm2427, %v2410, 0
    %v2600 = vsel %vm2427, %v2411, 0
    %v2603 = vsel %vm2427, %v2412, 0
    %v2606 = vsel %vm2427, %v2413, 0
    %v2609 = vsel %vm2427, %v2414, 0
    %v2612 = vsel %vm2427, %v2415, 0
    %v2615 = vsel %vm2427, %v2416, 0
    %v2618 = vsel %vm2427, %v2417, 0
    %vm2620 = vcmask 1041408
    %v2622 = vsel %vm2620, %v2419, 0
    %2624 = vmatprep.subr.mxu0 0.0
    %2625 = vmatpush1.msra.mxu0 0.0
    %2626 = vmatprep.subr.mxu0 0.0
    %2627 = vmatpush1.msra.mxu0 0.0
    %2628 = vmatprep.subr.mxu0 0.0
    %2629 = vmatpush1.msra.mxu0 0.0
    %2630 = vmatprep.subr.mxu0 0.0
    %2631 = vmatpush1.msra.mxu0 0.0
    %2632 = vmatprep.subr.mxu0 0.0
    %2633 = vmatpush1.msra.mxu0 0.0
    %2634 = vmatprep.subr.mxu0 0.0
    %2635 = vmatpush1.msra.mxu0 0.0
    %2636 = vmatprep.subr.mxu0 0.0
    %2637 = vmatpush1.msra.mxu0 0.0
    %2638 = vmatprep.subr.mxu0 0.0
    %2639 = vmatpush1.msra.mxu0 0.0
    %2640 = vmatprep.subr.mxu0 0.0
    %2641 = vmatpush1.msra.mxu0 0.0
    %2642 = vmatprep.subr.mxu0 0.0
    %2643 = vmatpush1.msra.mxu0 0.0
    %2644 = vmatprep.subr.mxu0 0.0
    %2645 = vmatpush1.msra.mxu0 0.0
    %2646 = vmatprep.subr.mxu0 0.0
    %2647 = vmatpush1.msra.mxu0 0.0
    %2648 = vmatprep.subr.mxu0 0.0
    %2649 = vmatpush1.msra.mxu0 0.0
    %2650 = vmatprep.subr.mxu0 0.0
    %2651 = vmatpush1.msra.mxu0 0.0
    %2652 = vmatprep.subr.mxu0 0.0
    %2653 = vmatpush1.msra.mxu0 %v2622
    %2654 = vmatprep.subr.mxu0 0.0
    %2655 = vmatpush1.msra.mxu0 %v2418
    %2656 = vmatprep.subr.mxu0 0.0
    %2657 = vmatpush2.msra.mxu0 0.0
    %2658 = vmatprep.subr.mxu0 0.0
    %2659 = vmatpush2.msra.mxu0 0.0
    %2660 = vmatprep.subr.mxu0 0.0
    %2661 = vmatpush2.msra.mxu0 0.0
    %2662 = vmatprep.subr.mxu0 0.0
    %2663 = vmatpush2.msra.mxu0 0.0
    %2664 = vmatprep.subr.mxu0 0.0
    %2665 = vmatpush2.msra.mxu0 0.0
    %2666 = vmatprep.subr.mxu0 0.0
    %2667 = vmatpush2.msra.mxu0 0.0
    %2668 = vmatprep.subr.mxu0 0.0
    %2669 = vmatpush2.msra.mxu0 0.0
    %2670 = vmatprep.subr.mxu0 0.0
    %2671 = vmatpush2.msra.mxu0 0.0
    %2672 = vmatprep.subr.mxu0 0.0
    %2673 = vmatpush2.msra.mxu0 0.0
    %2674 = vmatprep.subr.mxu0 0.0
    %2675 = vmatpush2.msra.mxu0 0.0
    %2676 = vmatprep.subr.mxu0 0.0
    %2677 = vmatpush2.msra.mxu0 0.0
    %2678 = vmatprep.subr.mxu0 0.0
    %2679 = vmatpush2.msra.mxu0 0.0
    %2680 = vmatprep.subr.mxu0 0.0
    %2681 = vmatpush2.msra.mxu0 0.0
    %2682 = vmatprep.subr.mxu0 0.0
    %2683 = vmatpush2.msra.mxu0 0.0
    %2684 = vmatprep.subr.mxu0 0.0
    %2685 = vmatpush2.msra.mxu0 0.0
    %2686 = vmatprep.subr.mxu0 0.0
    %2687 = vmatpush2.msra.mxu0 0.0
    %2688 = vmatprep.mubr.f32.mxu0 0.0
    %2689 = vmatmul.mubr.f32.gmra.mxu0 %v2429
    %v2690 = vpop.f32.mrf.mxu0
    %v2691 = vadd.f32 %v2425, %v2690
    %v2692 = vpop.f32.mrf.mxu0
    %2693 = vmatprep.mubr.f32.mxu0 0.0
    %2694 = vmatmul.mubr.f32.gmra.mxu0 %v2432
    %v2695 = vpop.f32.mrf.mxu0
    %v2696 = vadd.f32 %v2425, %v2695
    %v2697 = vpop.f32.mrf.mxu0
    %2698 = vmatprep.mubr.f32.mxu0 0.0
    %2699 = vmatmul.mubr.f32.gmra.mxu0 %v2435
    %v2700 = vpop.f32.mrf.mxu0
    %v2701 = vadd.f32 %v2425, %v2700
    %v2702 = vpop.f32.mrf.mxu0
    %2703 = vmatprep.mubr.f32.mxu0 0.0
    %2704 = vmatmul.mubr.f32.gmra.mxu0 %v2438
    %v2705 = vpop.f32.mrf.mxu0
    %v2706 = vadd.f32 %v2425, %v2705
    %v2707 = vpop.f32.mrf.mxu0
    %2708 = vmatprep.mubr.f32.mxu0 0.0
    %2709 = vmatmul.mubr.f32.gmra.mxu0 %v2441
    %v2710 = vpop.f32.mrf.mxu0
    %v2711 = vadd.f32 %v2425, %v2710
    %v2712 = vpop.f32.mrf.mxu0
    %2713 = vmatprep.mubr.f32.mxu0 0.0
    %2714 = vmatmul.mubr.f32.gmra.mxu0 %v2444
    %v2715 = vpop.f32.mrf.mxu0
    %v2716 = vadd.f32 %v2425, %v2715
    %v2717 = vpop.f32.mrf.mxu0
    %2718 = vmatprep.mubr.f32.mxu0 0.0
    %2719 = vmatmul.mubr.f32.gmra.mxu0 %v2447
    %v2720 = vpop.f32.mrf.mxu0
    %v2721 = vadd.f32 %v2425, %v2720
    %v2722 = vpop.f32.mrf.mxu0
    %2723 = vmatprep.mubr.f32.mxu0 0.0
    %2724 = vmatmul.mubr.f32.gmra.mxu0 %v2450
    %v2725 = vpop.f32.mrf.mxu0
    %v2726 = vadd.f32 %v2425, %v2725
    %v2727 = vpop.f32.mrf.mxu0
    %2728 = vmatprep.mubr.f32.mxu0 0.0
    %2729 = vmatmul.mubr.f32.gmra.mxu0 %v2453
    %v2730 = vpop.f32.mrf.mxu0
    %v2731 = vadd.f32 %v2425, %v2730
    %v2732 = vpop.f32.mrf.mxu0
    %2733 = vmatprep.mubr.f32.mxu0 0.0
    %2734 = vmatmul.mubr.f32.gmra.mxu0 %v2456
    %v2735 = vpop.f32.mrf.mxu0
    %v2736 = vadd.f32 %v2425, %v2735
    %v2737 = vpop.f32.mrf.mxu0
    %2738 = vmatprep.mubr.f32.mxu0 0.0
    %2739 = vmatmul.mubr.f32.gmra.mxu0 %v2459
    %v2740 = vpop.f32.mrf.mxu0
    %v2741 = vadd.f32 %v2425, %v2740
    %v2742 = vpop.f32.mrf.mxu0
    %2743 = vmatprep.mubr.f32.mxu0 0.0
    %2744 = vmatmul.mubr.f32.gmra.mxu0 %v2462
    %v2745 = vpop.f32.mrf.mxu0
    %v2746 = vadd.f32 %v2425, %v2745
    %v2747 = vpop.f32.mrf.mxu0
    %2748 = vmatprep.mubr.f32.mxu0 0.0
    %2749 = vmatmul.mubr.f32.gmra.mxu0 %v2465
    %v2750 = vpop.f32.mrf.mxu0
    %v2751 = vadd.f32 %v2425, %v2750
    %v2752 = vpop.f32.mrf.mxu0
    %2753 = vmatprep.mubr.f32.mxu0 0.0
    %2754 = vmatmul.mubr.f32.gmra.mxu0 %v2468
    %v2755 = vpop.f32.mrf.mxu0
    %v2756 = vadd.f32 %v2425, %v2755
    %v2757 = vpop.f32.mrf.mxu0
    %2758 = vmatprep.mubr.f32.mxu0 0.0
    %2759 = vmatmul.mubr.f32.gmra.mxu0 %v2471
    %v2760 = vpop.f32.mrf.mxu0
    %v2761 = vadd.f32 %v2425, %v2760
    %v2762 = vpop.f32.mrf.mxu0
    %2763 = vmatprep.mubr.f32.mxu0 0.0
    %2764 = vmatmul.mubr.f32.gmra.mxu0 %v2474
    %v2765 = vpop.f32.mrf.mxu0
    %v2766 = vadd.f32 %v2425, %v2765
    %v2767 = vpop.f32.mrf.mxu0
    %2768 = vmatprep.mubr.f32.mxu0 0.0
    %2769 = vmatmul.mubr.f32.gmra.mxu0 %v2477
    %v2770 = vpop.f32.mrf.mxu0
    %v2771 = vadd.f32 %v2425, %v2770
    %v2772 = vpop.f32.mrf.mxu0
    %2773 = vmatprep.mubr.f32.mxu0 0.0
    %2774 = vmatmul.mubr.f32.gmra.mxu0 %v2480
    %v2775 = vpop.f32.mrf.mxu0
    %v2776 = vadd.f32 %v2425, %v2775
    %v2777 = vpop.f32.mrf.mxu0
    %2778 = vmatprep.mubr.f32.mxu0 0.0
    %2779 = vmatmul.mubr.f32.gmra.mxu0 %v2483
    %v2780 = vpop.f32.mrf.mxu0
    %v2781 = vadd.f32 %v2425, %v2780
    %v2782 = vpop.f32.mrf.mxu0
    %2783 = vmatprep.mubr.f32.mxu0 0.0
    %2784 = vmatmul.mubr.f32.gmra.mxu0 %v2486
    %v2785 = vpop.f32.mrf.mxu0
    %v2786 = vadd.f32 %v2425, %v2785
    %v2787 = vpop.f32.mrf.mxu0
    %2788 = vmatprep.mubr.f32.mxu0 0.0
    %2789 = vmatmul.mubr.f32.gmra.mxu0 %v2489
    %v2790 = vpop.f32.mrf.mxu0
    %v2791 = vadd.f32 %v2425, %v2790
    %v2792 = vpop.f32.mrf.mxu0
    %2793 = vmatprep.mubr.f32.mxu0 0.0
    %2794 = vmatmul.mubr.f32.gmra.mxu0 %v2492
    %v2795 = vpop.f32.mrf.mxu0
    %v2796 = vadd.f32 %v2425, %v2795
    %v2797 = vpop.f32.mrf.mxu0
    %2798 = vmatprep.mubr.f32.mxu0 0.0
    %2799 = vmatmul.mubr.f32.gmra.mxu0 %v2495
    %v2800 = vpop.f32.mrf.mxu0
    %v2801 = vadd.f32 %v2425, %v2800
    %v2802 = vpop.f32.mrf.mxu0
    %2803 = vmatprep.mubr.f32.mxu0 0.0
    %2804 = vmatmul.mubr.f32.gmra.mxu0 %v2498
    %v2805 = vpop.f32.mrf.mxu0
    %v2806 = vadd.f32 %v2425, %v2805
    %v2807 = vpop.f32.mrf.mxu0
    %2808 = vmatprep.mubr.f32.mxu0 0.0
    %2809 = vmatmul.mubr.f32.gmra.mxu0 %v2501
    %v2810 = vpop.f32.mrf.mxu0
    %v2811 = vadd.f32 %v2425, %v2810
    %v2812 = vpop.f32.mrf.mxu0
    %2813 = vmatprep.mubr.f32.mxu0 0.0
    %2814 = vmatmul.mubr.f32.gmra.mxu0 %v2504
    %v2815 = vpop.f32.mrf.mxu0
    %v2816 = vadd.f32 %v2425, %v2815
    %v2817 = vpop.f32.mrf.mxu0
    %2818 = vmatprep.mubr.f32.mxu0 0.0
    %2819 = vmatmul.mubr.f32.gmra.mxu0 %v2507
    %v2820 = vpop.f32.mrf.mxu0
    %v2821 = vadd.f32 %v2425, %v2820
    %v2822 = vpop.f32.mrf.mxu0
    %2823 = vmatprep.mubr.f32.mxu0 0.0
    %2824 = vmatmul.mubr.f32.gmra.mxu0 %v2510
    %v2825 = vpop.f32.mrf.mxu0
    %v2826 = vadd.f32 %v2425, %v2825
    %v2827 = vpop.f32.mrf.mxu0
    %2828 = vmatprep.mubr.f32.mxu0 0.0
    %2829 = vmatmul.mubr.f32.gmra.mxu0 %v2513
    %v2830 = vpop.f32.mrf.mxu0
    %v2831 = vadd.f32 %v2425, %v2830
    %v2832 = vpop.f32.mrf.mxu0
    %2833 = vmatprep.mubr.f32.mxu0 0.0
    %2834 = vmatmul.mubr.f32.gmra.mxu0 %v2516
    %v2835 = vpop.f32.mrf.mxu0
    %v2836 = vadd.f32 %v2425, %v2835
    %v2837 = vpop.f32.mrf.mxu0
    %2838 = vmatprep.mubr.f32.mxu0 0.0
    %2839 = vmatmul.mubr.f32.gmra.mxu0 %v2519
    %v2840 = vpop.f32.mrf.mxu0
    %v2841 = vadd.f32 %v2425, %v2840
    %v2842 = vpop.f32.mrf.mxu0
    %2843 = vmatprep.mubr.f32.mxu0 0.0
    %2844 = vmatmul.mubr.f32.gmra.mxu0 %v2522
    %v2845 = vpop.f32.mrf.mxu0
    %v2846 = vadd.f32 %v2425, %v2845
    %v2847 = vpop.f32.mrf.mxu0
    %2848 = vmatprep.mubr.f32.mxu0 0.0
    %2849 = vmatmul.mubr.f32.gmra.mxu0 %v2525
    %v2850 = vpop.f32.mrf.mxu0
    %v2851 = vadd.f32 %v2425, %v2850
    %v2852 = vpop.f32.mrf.mxu0
    %2853 = vmatprep.mubr.f32.mxu0 0.0
    %2854 = vmatmul.mubr.f32.gmra.mxu0 %v2528
    %v2855 = vpop.f32.mrf.mxu0
    %v2856 = vadd.f32 %v2425, %v2855
    %v2857 = vpop.f32.mrf.mxu0
    %2858 = vmatprep.mubr.f32.mxu0 0.0
    %2859 = vmatmul.mubr.f32.gmra.mxu0 %v2531
    %v2860 = vpop.f32.mrf.mxu0
    %v2861 = vadd.f32 %v2425, %v2860
    %v2862 = vpop.f32.mrf.mxu0
    %2863 = vmatprep.mubr.f32.mxu0 0.0
    %2864 = vmatmul.mubr.f32.gmra.mxu0 %v2534
    %v2865 = vpop.f32.mrf.mxu0
    %v2866 = vadd.f32 %v2425, %v2865
    %v2867 = vpop.f32.mrf.mxu0
    %2868 = vmatprep.mubr.f32.mxu0 0.0
    %2869 = vmatmul.mubr.f32.gmra.mxu0 %v2537
    %v2870 = vpop.f32.mrf.mxu0
    %v2871 = vadd.f32 %v2425, %v2870
    %v2872 = vpop.f32.mrf.mxu0
    %2873 = vmatprep.mubr.f32.mxu0 0.0
    %2874 = vmatmul.mubr.f32.gmra.mxu0 %v2540
    %v2875 = vpop.f32.mrf.mxu0
    %v2876 = vadd.f32 %v2425, %v2875
    %v2877 = vpop.f32.mrf.mxu0
    %2878 = vmatprep.mubr.f32.mxu0 0.0
    %2879 = vmatmul.mubr.f32.gmra.mxu0 %v2543
    %v2880 = vpop.f32.mrf.mxu0
    %v2881 = vadd.f32 %v2425, %v2880
    %v2882 = vpop.f32.mrf.mxu0
    %2883 = vmatprep.mubr.f32.mxu0 0.0
    %2884 = vmatmul.mubr.f32.gmra.mxu0 %v2546
    %v2885 = vpop.f32.mrf.mxu0
    %v2886 = vadd.f32 %v2425, %v2885
    %v2887 = vpop.f32.mrf.mxu0
    %2888 = vmatprep.mubr.f32.mxu0 0.0
    %2889 = vmatmul.mubr.f32.gmra.mxu0 %v2549
    %v2890 = vpop.f32.mrf.mxu0
    %v2891 = vadd.f32 %v2425, %v2890
    %v2892 = vpop.f32.mrf.mxu0
    %2893 = vmatprep.mubr.f32.mxu0 0.0
    %2894 = vmatmul.mubr.f32.gmra.mxu0 %v2552
    %v2895 = vpop.f32.mrf.mxu0
    %v2896 = vadd.f32 %v2425, %v2895
    %v2897 = vpop.f32.mrf.mxu0
    %2898 = vmatprep.mubr.f32.mxu0 0.0
    %2899 = vmatmul.mubr.f32.gmra.mxu0 %v2555
    %v2900 = vpop.f32.mrf.mxu0
    %v2901 = vadd.f32 %v2425, %v2900
    %v2902 = vpop.f32.mrf.mxu0
    %2903 = vmatprep.mubr.f32.mxu0 0.0
    %2904 = vmatmul.mubr.f32.gmra.mxu0 %v2558
    %v2905 = vpop.f32.mrf.mxu0
    %v2906 = vadd.f32 %v2425, %v2905
    %v2907 = vpop.f32.mrf.mxu0
    %2908 = vmatprep.mubr.f32.mxu0 0.0
    %2909 = vmatmul.mubr.f32.gmra.mxu0 %v2561
    %v2910 = vpop.f32.mrf.mxu0
    %v2911 = vadd.f32 %v2425, %v2910
    %v2912 = vpop.f32.mrf.mxu0
    %2913 = vmatprep.mubr.f32.mxu0 0.0
    %2914 = vmatmul.mubr.f32.gmra.mxu0 %v2564
    %v2915 = vpop.f32.mrf.mxu0
    %v2916 = vadd.f32 %v2425, %v2915
    %v2917 = vpop.f32.mrf.mxu0
    %2918 = vmatprep.mubr.f32.mxu0 0.0
    %2919 = vmatmul.mubr.f32.gmra.mxu0 %v2567
    %v2920 = vpop.f32.mrf.mxu0
    %v2921 = vadd.f32 %v2425, %v2920
    %v2922 = vpop.f32.mrf.mxu0
    %2923 = vmatprep.mubr.f32.mxu0 0.0
    %2924 = vmatmul.mubr.f32.gmra.mxu0 %v2570
    %v2925 = vpop.f32.mrf.mxu0
    %v2926 = vadd.f32 %v2425, %v2925
    %v2927 = vpop.f32.mrf.mxu0
    %2928 = vmatprep.mubr.f32.mxu0 0.0
    %2929 = vmatmul.mubr.f32.gmra.mxu0 %v2573
    %v2930 = vpop.f32.mrf.mxu0
    %v2931 = vadd.f32 %v2425, %v2930
    %v2932 = vpop.f32.mrf.mxu0
    %2933 = vmatprep.mubr.f32.mxu0 0.0
    %2934 = vmatmul.mubr.f32.gmra.mxu0 %v2576
    %v2935 = vpop.f32.mrf.mxu0
    %v2936 = vadd.f32 %v2425, %v2935
    %v2937 = vpop.f32.mrf.mxu0
    %2938 = vmatprep.mubr.f32.mxu0 0.0
    %2939 = vmatmul.mubr.f32.gmra.mxu0 %v2579
    %v2940 = vpop.f32.mrf.mxu0
    %v2941 = vadd.f32 %v2425, %v2940
    %v2942 = vpop.f32.mrf.mxu0
    %2943 = vmatprep.mubr.f32.mxu0 0.0
    %2944 = vmatmul.mubr.f32.gmra.mxu0 %v2582
    %v2945 = vpop.f32.mrf.mxu0
    %v2946 = vadd.f32 %v2425, %v2945
    %v2947 = vpop.f32.mrf.mxu0
    %2948 = vmatprep.mubr.f32.mxu0 0.0
    %2949 = vmatmul.mubr.f32.gmra.mxu0 %v2585
    %v2950 = vpop.f32.mrf.mxu0
    %v2951 = vadd.f32 %v2425, %v2950
    %v2952 = vpop.f32.mrf.mxu0
    %2953 = vmatprep.mubr.f32.mxu0 0.0
    %2954 = vmatmul.mubr.f32.gmra.mxu0 %v2588
    %v2955 = vpop.f32.mrf.mxu0
    %v2956 = vadd.f32 %v2425, %v2955
    %v2957 = vpop.f32.mrf.mxu0
    %2958 = vmatprep.mubr.f32.mxu0 0.0
    %2959 = vmatmul.mubr.f32.gmra.mxu0 %v2591
    %v2960 = vpop.f32.mrf.mxu0
    %v2961 = vadd.f32 %v2425, %v2960
    %v2962 = vpop.f32.mrf.mxu0
    %2963 = vmatprep.mubr.f32.mxu0 0.0
    %2964 = vmatmul.mubr.f32.gmra.mxu0 %v2594
    %v2965 = vpop.f32.mrf.mxu0
    %v2966 = vadd.f32 %v2425, %v2965
    %v2967 = vpop.f32.mrf.mxu0
    %2968 = vmatprep.mubr.f32.mxu0 0.0
    %2969 = vmatmul.mubr.f32.gmra.mxu0 %v2597
    %v2970 = vpop.f32.mrf.mxu0
    %v2971 = vadd.f32 %v2425, %v2970
    %v2972 = vpop.f32.mrf.mxu0
    %2973 = vmatprep.mubr.f32.mxu0 0.0
    %2974 = vmatmul.mubr.f32.gmra.mxu0 %v2600
    %v2975 = vpop.f32.mrf.mxu0
    %v2976 = vadd.f32 %v2425, %v2975
    %v2977 = vpop.f32.mrf.mxu0
    %2978 = vmatprep.mubr.f32.mxu0 0.0
    %2979 = vmatmul.mubr.f32.gmra.mxu0 %v2603
    %v2980 = vpop.f32.mrf.mxu0
    %v2981 = vadd.f32 %v2425, %v2980
    %v2982 = vpop.f32.mrf.mxu0
    %2983 = vmatprep.mubr.f32.mxu0 0.0
    %2984 = vmatmul.mubr.f32.gmra.mxu0 %v2606
    %v2985 = vpop.f32.mrf.mxu0
    %v2986 = vadd.f32 %v2425, %v2985
    %v2987 = vpop.f32.mrf.mxu0
    %2988 = vmatprep.mubr.f32.mxu0 0.0
    %2989 = vmatmul.mubr.f32.gmra.mxu0 %v2609
    %v2990 = vpop.f32.mrf.mxu0
    %v2991 = vadd.f32 %v2425, %v2990
    %v2992 = vpop.f32.mrf.mxu0
    %2993 = vmatprep.mubr.f32.mxu0 0.0
    %2994 = vmatmul.mubr.f32.gmra.mxu0 %v2612
    %v2995 = vpop.f32.mrf.mxu0
    %v2996 = vadd.f32 %v2425, %v2995
    %v2997 = vpop.f32.mrf.mxu0
    %2998 = vmatprep.mubr.f32.mxu0 0.0
    %2999 = vmatmul.mubr.f32.gmra.mxu0 %v2615
    %v3000 = vpop.f32.mrf.mxu0
    %v3001 = vadd.f32 %v2425, %v3000
    %v3002 = vpop.f32.mrf.mxu0
    %3003 = vmatprep.mubr.f32.mxu0 0.0
    %3004 = vmatmul.mubr.f32.gmra.mxu0 %v2618
    %v3005 = vpop.f32.mrf.mxu0
    %v3006 = vadd.f32 %v2425, %v3005
    %v3007 = vpop.f32.mrf.mxu0
    %3008 = vdwg.mxu0
    %v3009 = vmax.f32 %v2691, 0.0
    %v3010 = vmax.f32 %v2696, 0.0
    %v3011 = vmax.f32 %v2701, 0.0
    %v3012 = vmax.f32 %v2706, 0.0
    %v3013 = vmax.f32 %v2711, 0.0
    %v3014 = vmax.f32 %v2716, 0.0
    %v3015 = vmax.f32 %v2721, 0.0
    %v3016 = vmax.f32 %v2726, 0.0
    %v3017 = vmax.f32 %v2731, 0.0
    %v3018 = vmax.f32 %v2736, 0.0
    %v3019 = vmax.f32 %v2741, 0.0
    %v3020 = vmax.f32 %v2746, 0.0
    %v3021 = vmax.f32 %v2751, 0.0
    %v3022 = vmax.f32 %v2756, 0.0
    %v3023 = vmax.f32 %v2761, 0.0
    %v3024 = vmax.f32 %v2766, 0.0
    %v3025 = vmax.f32 %v2771, 0.0
    %v3026 = vmax.f32 %v2776, 0.0
    %v3027 = vmax.f32 %v2781, 0.0
    %v3028 = vmax.f32 %v2786, 0.0
    %v3029 = vmax.f32 %v2791, 0.0
    %v3030 = vmax.f32 %v2796, 0.0
    %v3031 = vmax.f32 %v2801, 0.0
    %v3032 = vmax.f32 %v2806, 0.0
    %v3033 = vmax.f32 %v2811, 0.0
    %v3034 = vmax.f32 %v2816, 0.0
    %v3035 = vmax.f32 %v2821, 0.0
    %v3036 = vmax.f32 %v2826, 0.0
    %v3037 = vmax.f32 %v2831, 0.0
    %v3038 = vmax.f32 %v2836, 0.0
    %v3039 = vmax.f32 %v2841, 0.0
    %v3040 = vmax.f32 %v2846, 0.0
    %v3041 = vmax.f32 %v2851, 0.0
    %v3042 = vmax.f32 %v2856, 0.0
    %v3043 = vmax.f32 %v2861, 0.0
    %v3044 = vmax.f32 %v2866, 0.0
    %v3045 = vmax.f32 %v2871, 0.0
    %v3046 = vmax.f32 %v2876, 0.0
    %v3047 = vmax.f32 %v2881, 0.0
    %v3048 = vmax.f32 %v2886, 0.0
    %v3049 = vmax.f32 %v2891, 0.0
    %v3050 = vmax.f32 %v2896, 0.0
    %v3051 = vmax.f32 %v2901, 0.0
    %v3052 = vmax.f32 %v2906, 0.0
    %v3053 = vmax.f32 %v2911, 0.0
    %v3054 = vmax.f32 %v2916, 0.0
    %v3055 = vmax.f32 %v2921, 0.0
    %v3056 = vmax.f32 %v2926, 0.0
    %v3057 = vmax.f32 %v2931, 0.0
    %v3058 = vmax.f32 %v2936, 0.0
    %v3059 = vmax.f32 %v2941, 0.0
    %v3060 = vmax.f32 %v2946, 0.0
    %v3061 = vmax.f32 %v2951, 0.0
    %v3062 = vmax.f32 %v2956, 0.0
    %v3063 = vmax.f32 %v2961, 0.0
    %v3064 = vmax.f32 %v2966, 0.0
    %v3065 = vmax.f32 %v2971, 0.0
    %v3066 = vmax.f32 %v2976, 0.0
    %v3067 = vmax.f32 %v2981, 0.0
    %v3068 = vmax.f32 %v2986, 0.0
    %v3069 = vmax.f32 %v2991, 0.0
    %v3070 = vmax.f32 %v2996, 0.0
    %v3071 = vmax.f32 %v3001, 0.0
    %v3072 = vmax.f32 %v3006, 0.0
    %v3073 = vld [vmem:[%s11] sm:$0xff]
    %v3074 = vld [vmem:[%s11 + $0x8] sm:$0xff]
    %v3075 = vld [vmem:[%s11 + $0x10] sm:$0xff]
    %v3076 = vld [vmem:[%s11 + $0x18] sm:$0xff]
    %v3077 = vld [vmem:[%s11 + $0x20] sm:$0xff]
    %v3078 = vld [vmem:[%s11 + $0x28] sm:$0xff]
    %v3079 = vld [vmem:[%s11 + $0x30] sm:$0xff]
    %v3080 = vld [vmem:[%s11 + $0x38] sm:$0xff]
    %v3081 = vld [vmem:[#allocation3] sm:$0x1]
    %v3083 = vlaneseq
    %v3084 = vshrl.u32 %v3083, 7
    %v3085 = vsub.s32 0, %v3084
    %v3086 = vrot.slane %v3081, %v3085
    %v3089 = vsel %vm1099, %v3009, 0
    %v3092 = vsel %vm1099, %v3010, 0
    %v3095 = vsel %vm1099, %v3011, 0
    %v3098 = vsel %vm1099, %v3012, 0
    %v3101 = vsel %vm1099, %v3013, 0
    %v3104 = vsel %vm1099, %v3014, 0
    %v3107 = vsel %vm1099, %v3015, 0
    %v3110 = vsel %vm1099, %v3016, 0
    %v3113 = vsel %vm1099, %v3017, 0
    %v3116 = vsel %vm1099, %v3018, 0
    %v3119 = vsel %vm1099, %v3019, 0
    %v3122 = vsel %vm1099, %v3020, 0
    %v3125 = vsel %vm1099, %v3021, 0
    %v3128 = vsel %vm1099, %v3022, 0
    %v3131 = vsel %vm1099, %v3023, 0
    %v3134 = vsel %vm1099, %v3024, 0
    %v3137 = vsel %vm1099, %v3025, 0
    %v3140 = vsel %vm1099, %v3026, 0
    %v3143 = vsel %vm1099, %v3027, 0
    %v3146 = vsel %vm1099, %v3028, 0
    %v3149 = vsel %vm1099, %v3029, 0
    %v3152 = vsel %vm1099, %v3030, 0
    %v3155 = vsel %vm1099, %v3031, 0
    %v3158 = vsel %vm1099, %v3032, 0
    %v3161 = vsel %vm1099, %v3033, 0
    %v3164 = vsel %vm1099, %v3034, 0
    %v3167 = vsel %vm1099, %v3035, 0
    %v3170 = vsel %vm1099, %v3036, 0
    %v3173 = vsel %vm1099, %v3037, 0
    %v3176 = vsel %vm1099, %v3038, 0
    %v3179 = vsel %vm1099, %v3039, 0
    %v3182 = vsel %vm1099, %v3040, 0
    %v3185 = vsel %vm1099, %v3041, 0
    %v3188 = vsel %vm1099, %v3042, 0
    %v3191 = vsel %vm1099, %v3043, 0
    %v3194 = vsel %vm1099, %v3044, 0
    %v3197 = vsel %vm1099, %v3045, 0
    %v3200 = vsel %vm1099, %v3046, 0
    %v3203 = vsel %vm1099, %v3047, 0
    %v3206 = vsel %vm1099, %v3048, 0
    %v3209 = vsel %vm1099, %v3049, 0
    %v3212 = vsel %vm1099, %v3050, 0
    %v3215 = vsel %vm1099, %v3051, 0
    %v3218 = vsel %vm1099, %v3052, 0
    %v3221 = vsel %vm1099, %v3053, 0
    %v3224 = vsel %vm1099, %v3054, 0
    %v3227 = vsel %vm1099, %v3055, 0
    %v3230 = vsel %vm1099, %v3056, 0
    %v3233 = vsel %vm1099, %v3057, 0
    %v3236 = vsel %vm1099, %v3058, 0
    %v3239 = vsel %vm1099, %v3059, 0
    %v3242 = vsel %vm1099, %v3060, 0
    %v3245 = vsel %vm1099, %v3061, 0
    %v3248 = vsel %vm1099, %v3062, 0
    %v3251 = vsel %vm1099, %v3063, 0
    %v3254 = vsel %vm1099, %v3064, 0
    %v3257 = vsel %vm1099, %v3065, 0
    %v3260 = vsel %vm1099, %v3066, 0
    %v3263 = vsel %vm1099, %v3067, 0
    %v3266 = vsel %vm1099, %v3068, 0
    %v3269 = vsel %vm1099, %v3069, 0
    %v3272 = vsel %vm1099, %v3070, 0
    %v3275 = vsel %vm1099, %v3071, 0
    %v3278 = vsel %vm1099, %v3072, 0
    %3280 = vmatprep.subr.mxu0 0.0
    %3281 = vmatpush1.msra.mxu0 0.0
    %3282 = vmatprep.subr.mxu0 0.0
    %3283 = vmatpush1.msra.mxu0 0.0
    %3284 = vmatprep.subr.mxu0 0.0
    %3285 = vmatpush1.msra.mxu0 0.0
    %3286 = vmatprep.subr.mxu0 0.0
    %3287 = vmatpush1.msra.mxu0 0.0
    %3288 = vmatprep.subr.mxu0 0.0
    %3289 = vmatpush1.msra.mxu0 0.0
    %3290 = vmatprep.subr.mxu0 0.0
    %3291 = vmatpush1.msra.mxu0 0.0
    %3292 = vmatprep.subr.mxu0 0.0
    %3293 = vmatpush1.msra.mxu0 0.0
    %3294 = vmatprep.subr.mxu0 0.0
    %3295 = vmatpush1.msra.mxu0 0.0
    %3296 = vmatprep.subr.mxu0 0.0
    %3297 = vmatpush1.msra.mxu0 %v3080
    %3298 = vmatprep.subr.mxu0 0.0
    %3299 = vmatpush1.msra.mxu0 %v3079
    %3300 = vmatprep.subr.mxu0 0.0
    %3301 = vmatpush1.msra.mxu0 %v3078
    %3302 = vmatprep.subr.mxu0 0.0
    %3303 = vmatpush1.msra.mxu0 %v3077
    %3304 = vmatprep.subr.mxu0 0.0
    %3305 = vmatpush1.msra.mxu0 %v3076
    %3306 = vmatprep.subr.mxu0 0.0
    %3307 = vmatpush1.msra.mxu0 %v3075
    %3308 = vmatprep.subr.mxu0 0.0
    %3309 = vmatpush1.msra.mxu0 %v3074
    %3310 = vmatprep.subr.mxu0 0.0
    %3311 = vmatpush1.msra.mxu0 %v3073
    %3312 = vmatprep.subr.mxu0 0.0
    %3313 = vmatpush2.msra.mxu0 0.0
    %3314 = vmatprep.subr.mxu0 0.0
    %3315 = vmatpush2.msra.mxu0 0.0
    %3316 = vmatprep.subr.mxu0 0.0
    %3317 = vmatpush2.msra.mxu0 0.0
    %3318 = vmatprep.subr.mxu0 0.0
    %3319 = vmatpush2.msra.mxu0 0.0
    %3320 = vmatprep.subr.mxu0 0.0
    %3321 = vmatpush2.msra.mxu0 0.0
    %3322 = vmatprep.subr.mxu0 0.0
    %3323 = vmatpush2.msra.mxu0 0.0
    %3324 = vmatprep.subr.mxu0 0.0
    %3325 = vmatpush2.msra.mxu0 0.0
    %3326 = vmatprep.subr.mxu0 0.0
    %3327 = vmatpush2.msra.mxu0 0.0
    %3328 = vmatprep.subr.mxu0 0.0
    %3329 = vmatpush2.msra.mxu0 0.0
    %3330 = vmatprep.subr.mxu0 0.0
    %3331 = vmatpush2.msra.mxu0 0.0
    %3332 = vmatprep.subr.mxu0 0.0
    %3333 = vmatpush2.msra.mxu0 0.0
    %3334 = vmatprep.subr.mxu0 0.0
    %3335 = vmatpush2.msra.mxu0 0.0
    %3336 = vmatprep.subr.mxu0 0.0
    %3337 = vmatpush2.msra.mxu0 0.0
    %3338 = vmatprep.subr.mxu0 0.0
    %3339 = vmatpush2.msra.mxu0 0.0
    %3340 = vmatprep.subr.mxu0 0.0
    %3341 = vmatpush2.msra.mxu0 0.0
    %3342 = vmatprep.subr.mxu0 0.0
    %3343 = vmatpush2.msra.mxu0 0.0
    %3344 = vmatprep.mubr.f32.mxu0 0.0
    %3345 = vmatmul.mubr.f32.gmra.mxu0 %v3089
    %v3346 = vpop.f32.mrf.mxu0
    %v3347 = vadd.f32 %v3086, %v3346
    %v3348 = vpop.f32.mrf.mxu0
    %3349 = vmatprep.mubr.f32.mxu0 0.0
    %3350 = vmatmul.mubr.f32.gmra.mxu0 %v3092
    %v3351 = vpop.f32.mrf.mxu0
    %v3352 = vadd.f32 %v3086, %v3351
    %v3353 = vpop.f32.mrf.mxu0
    %3354 = vmatprep.mubr.f32.mxu0 0.0
    %3355 = vmatmul.mubr.f32.gmra.mxu0 %v3095
    %v3356 = vpop.f32.mrf.mxu0
    %v3357 = vadd.f32 %v3086, %v3356
    %v3358 = vpop.f32.mrf.mxu0
    %3359 = vmatprep.mubr.f32.mxu0 0.0
    %3360 = vmatmul.mubr.f32.gmra.mxu0 %v3098
    %v3361 = vpop.f32.mrf.mxu0
    %v3362 = vadd.f32 %v3086, %v3361
    %v3363 = vpop.f32.mrf.mxu0
    %3364 = vmatprep.mubr.f32.mxu0 0.0
    %3365 = vmatmul.mubr.f32.gmra.mxu0 %v3101
    %v3366 = vpop.f32.mrf.mxu0
    %v3367 = vadd.f32 %v3086, %v3366
    %v3368 = vpop.f32.mrf.mxu0
    %3369 = vmatprep.mubr.f32.mxu0 0.0
    %3370 = vmatmul.mubr.f32.gmra.mxu0 %v3104
    %v3371 = vpop.f32.mrf.mxu0
    %v3372 = vadd.f32 %v3086, %v3371
    %v3373 = vpop.f32.mrf.mxu0
    %3374 = vmatprep.mubr.f32.mxu0 0.0
    %3375 = vmatmul.mubr.f32.gmra.mxu0 %v3107
    %v3376 = vpop.f32.mrf.mxu0
    %v3377 = vadd.f32 %v3086, %v3376
    %v3378 = vpop.f32.mrf.mxu0
    %3379 = vmatprep.mubr.f32.mxu0 0.0
    %3380 = vmatmul.mubr.f32.gmra.mxu0 %v3110
    %v3381 = vpop.f32.mrf.mxu0
    %v3382 = vadd.f32 %v3086, %v3381
    %v3383 = vpop.f32.mrf.mxu0
    %3384 = vmatprep.mubr.f32.mxu0 0.0
    %3385 = vmatmul.mubr.f32.gmra.mxu0 %v3113
    %v3386 = vpop.f32.mrf.mxu0
    %v3387 = vadd.f32 %v3086, %v3386
    %v3388 = vpop.f32.mrf.mxu0
    %3389 = vmatprep.mubr.f32.mxu0 0.0
    %3390 = vmatmul.mubr.f32.gmra.mxu0 %v3116
    %v3391 = vpop.f32.mrf.mxu0
    %v3392 = vadd.f32 %v3086, %v3391
    %v3393 = vpop.f32.mrf.mxu0
    %3394 = vmatprep.mubr.f32.mxu0 0.0
    %3395 = vmatmul.mubr.f32.gmra.mxu0 %v3119
    %v3396 = vpop.f32.mrf.mxu0
    %v3397 = vadd.f32 %v3086, %v3396
    %v3398 = vpop.f32.mrf.mxu0
    %3399 = vmatprep.mubr.f32.mxu0 0.0
    %3400 = vmatmul.mubr.f32.gmra.mxu0 %v3122
    %v3401 = vpop.f32.mrf.mxu0
    %v3402 = vadd.f32 %v3086, %v3401
    %v3403 = vpop.f32.mrf.mxu0
    %3404 = vmatprep.mubr.f32.mxu0 0.0
    %3405 = vmatmul.mubr.f32.gmra.mxu0 %v3125
    %v3406 = vpop.f32.mrf.mxu0
    %v3407 = vadd.f32 %v3086, %v3406
    %v3408 = vpop.f32.mrf.mxu0
    %3409 = vmatprep.mubr.f32.mxu0 0.0
    %3410 = vmatmul.mubr.f32.gmra.mxu0 %v3128
    %v3411 = vpop.f32.mrf.mxu0
    %v3412 = vadd.f32 %v3086, %v3411
    %v3413 = vpop.f32.mrf.mxu0
    %3414 = vmatprep.mubr.f32.mxu0 0.0
    %3415 = vmatmul.mubr.f32.gmra.mxu0 %v3131
    %v3416 = vpop.f32.mrf.mxu0
    %v3417 = vadd.f32 %v3086, %v3416
    %v3418 = vpop.f32.mrf.mxu0
    %3419 = vmatprep.mubr.f32.mxu0 0.0
    %3420 = vmatmul.mubr.f32.gmra.mxu0 %v3134
    %v3421 = vpop.f32.mrf.mxu0
    %v3422 = vadd.f32 %v3086, %v3421
    %v3423 = vpop.f32.mrf.mxu0
    %3424 = vmatprep.mubr.f32.mxu0 0.0
    %3425 = vmatmul.mubr.f32.gmra.mxu0 %v3137
    %v3426 = vpop.f32.mrf.mxu0
    %v3427 = vadd.f32 %v3086, %v3426
    %v3428 = vpop.f32.mrf.mxu0
    %3429 = vmatprep.mubr.f32.mxu0 0.0
    %3430 = vmatmul.mubr.f32.gmra.mxu0 %v3140
    %v3431 = vpop.f32.mrf.mxu0
    %v3432 = vadd.f32 %v3086, %v3431
    %v3433 = vpop.f32.mrf.mxu0
    %3434 = vmatprep.mubr.f32.mxu0 0.0
    %3435 = vmatmul.mubr.f32.gmra.mxu0 %v3143
    %v3436 = vpop.f32.mrf.mxu0
    %v3437 = vadd.f32 %v3086, %v3436
    %v3438 = vpop.f32.mrf.mxu0
    %3439 = vmatprep.mubr.f32.mxu0 0.0
    %3440 = vmatmul.mubr.f32.gmra.mxu0 %v3146
    %v3441 = vpop.f32.mrf.mxu0
    %v3442 = vadd.f32 %v3086, %v3441
    %v3443 = vpop.f32.mrf.mxu0
    %3444 = vmatprep.mubr.f32.mxu0 0.0
    %3445 = vmatmul.mubr.f32.gmra.mxu0 %v3149
    %v3446 = vpop.f32.mrf.mxu0
    %v3447 = vadd.f32 %v3086, %v3446
    %v3448 = vpop.f32.mrf.mxu0
    %3449 = vmatprep.mubr.f32.mxu0 0.0
    %3450 = vmatmul.mubr.f32.gmra.mxu0 %v3152
    %v3451 = vpop.f32.mrf.mxu0
    %v3452 = vadd.f32 %v3086, %v3451
    %v3453 = vpop.f32.mrf.mxu0
    %3454 = vmatprep.mubr.f32.mxu0 0.0
    %3455 = vmatmul.mubr.f32.gmra.mxu0 %v3155
    %v3456 = vpop.f32.mrf.mxu0
    %v3457 = vadd.f32 %v3086, %v3456
    %v3458 = vpop.f32.mrf.mxu0
    %3459 = vmatprep.mubr.f32.mxu0 0.0
    %3460 = vmatmul.mubr.f32.gmra.mxu0 %v3158
    %v3461 = vpop.f32.mrf.mxu0
    %v3462 = vadd.f32 %v3086, %v3461
    %v3463 = vpop.f32.mrf.mxu0
    %3464 = vmatprep.mubr.f32.mxu0 0.0
    %3465 = vmatmul.mubr.f32.gmra.mxu0 %v3161
    %v3466 = vpop.f32.mrf.mxu0
    %v3467 = vadd.f32 %v3086, %v3466
    %v3468 = vpop.f32.mrf.mxu0
    %3469 = vmatprep.mubr.f32.mxu0 0.0
    %3470 = vmatmul.mubr.f32.gmra.mxu0 %v3164
    %v3471 = vpop.f32.mrf.mxu0
    %v3472 = vadd.f32 %v3086, %v3471
    %v3473 = vpop.f32.mrf.mxu0
    %3474 = vmatprep.mubr.f32.mxu0 0.0
    %3475 = vmatmul.mubr.f32.gmra.mxu0 %v3167
    %v3476 = vpop.f32.mrf.mxu0
    %v3477 = vadd.f32 %v3086, %v3476
    %v3478 = vpop.f32.mrf.mxu0
    %3479 = vmatprep.mubr.f32.mxu0 0.0
    %3480 = vmatmul.mubr.f32.gmra.mxu0 %v3170
    %v3481 = vpop.f32.mrf.mxu0
    %v3482 = vadd.f32 %v3086, %v3481
    %v3483 = vpop.f32.mrf.mxu0
    %3484 = vmatprep.mubr.f32.mxu0 0.0
    %3485 = vmatmul.mubr.f32.gmra.mxu0 %v3173
    %v3486 = vpop.f32.mrf.mxu0
    %v3487 = vadd.f32 %v3086, %v3486
    %v3488 = vpop.f32.mrf.mxu0
    %3489 = vmatprep.mubr.f32.mxu0 0.0
    %3490 = vmatmul.mubr.f32.gmra.mxu0 %v3176
    %v3491 = vpop.f32.mrf.mxu0
    %v3492 = vadd.f32 %v3086, %v3491
    %v3493 = vpop.f32.mrf.mxu0
    %3494 = vmatprep.mubr.f32.mxu0 0.0
    %3495 = vmatmul.mubr.f32.gmra.mxu0 %v3179
    %v3496 = vpop.f32.mrf.mxu0
    %v3497 = vadd.f32 %v3086, %v3496
    %v3498 = vpop.f32.mrf.mxu0
    %3499 = vmatprep.mubr.f32.mxu0 0.0
    %3500 = vmatmul.mubr.f32.gmra.mxu0 %v3182
    %v3501 = vpop.f32.mrf.mxu0
    %v3502 = vadd.f32 %v3086, %v3501
    %v3503 = vpop.f32.mrf.mxu0
    %3504 = vmatprep.mubr.f32.mxu0 0.0
    %3505 = vmatmul.mubr.f32.gmra.mxu0 %v3185
    %v3506 = vpop.f32.mrf.mxu0
    %v3507 = vadd.f32 %v3086, %v3506
    %v3508 = vpop.f32.mrf.mxu0
    %3509 = vmatprep.mubr.f32.mxu0 0.0
    %3510 = vmatmul.mubr.f32.gmra.mxu0 %v3188
    %v3511 = vpop.f32.mrf.mxu0
    %v3512 = vadd.f32 %v3086, %v3511
    %v3513 = vpop.f32.mrf.mxu0
    %3514 = vmatprep.mubr.f32.mxu0 0.0
    %3515 = vmatmul.mubr.f32.gmra.mxu0 %v3191
    %v3516 = vpop.f32.mrf.mxu0
    %v3517 = vadd.f32 %v3086, %v3516
    %v3518 = vpop.f32.mrf.mxu0
    %3519 = vmatprep.mubr.f32.mxu0 0.0
    %3520 = vmatmul.mubr.f32.gmra.mxu0 %v3194
    %v3521 = vpop.f32.mrf.mxu0
    %v3522 = vadd.f32 %v3086, %v3521
    %v3523 = vpop.f32.mrf.mxu0
    %3524 = vmatprep.mubr.f32.mxu0 0.0
    %3525 = vmatmul.mubr.f32.gmra.mxu0 %v3197
    %v3526 = vpop.f32.mrf.mxu0
    %v3527 = vadd.f32 %v3086, %v3526
    %v3528 = vpop.f32.mrf.mxu0
    %3529 = vmatprep.mubr.f32.mxu0 0.0
    %3530 = vmatmul.mubr.f32.gmra.mxu0 %v3200
    %v3531 = vpop.f32.mrf.mxu0
    %v3532 = vadd.f32 %v3086, %v3531
    %v3533 = vpop.f32.mrf.mxu0
    %3534 = vmatprep.mubr.f32.mxu0 0.0
    %3535 = vmatmul.mubr.f32.gmra.mxu0 %v3203
    %v3536 = vpop.f32.mrf.mxu0
    %v3537 = vadd.f32 %v3086, %v3536
    %v3538 = vpop.f32.mrf.mxu0
    %3539 = vmatprep.mubr.f32.mxu0 0.0
    %3540 = vmatmul.mubr.f32.gmra.mxu0 %v3206
    %v3541 = vpop.f32.mrf.mxu0
    %v3542 = vadd.f32 %v3086, %v3541
    %v3543 = vpop.f32.mrf.mxu0
    %3544 = vmatprep.mubr.f32.mxu0 0.0
    %3545 = vmatmul.mubr.f32.gmra.mxu0 %v3209
    %v3546 = vpop.f32.mrf.mxu0
    %v3547 = vadd.f32 %v3086, %v3546
    %v3548 = vpop.f32.mrf.mxu0
    %3549 = vmatprep.mubr.f32.mxu0 0.0
    %3550 = vmatmul.mubr.f32.gmra.mxu0 %v3212
    %v3551 = vpop.f32.mrf.mxu0
    %v3552 = vadd.f32 %v3086, %v3551
    %v3553 = vpop.f32.mrf.mxu0
    %3554 = vmatprep.mubr.f32.mxu0 0.0
    %3555 = vmatmul.mubr.f32.gmra.mxu0 %v3215
    %v3556 = vpop.f32.mrf.mxu0
    %v3557 = vadd.f32 %v3086, %v3556
    %v3558 = vpop.f32.mrf.mxu0
    %3559 = vmatprep.mubr.f32.mxu0 0.0
    %3560 = vmatmul.mubr.f32.gmra.mxu0 %v3218
    %v3561 = vpop.f32.mrf.mxu0
    %v3562 = vadd.f32 %v3086, %v3561
    %v3563 = vpop.f32.mrf.mxu0
    %3564 = vmatprep.mubr.f32.mxu0 0.0
    %3565 = vmatmul.mubr.f32.gmra.mxu0 %v3221
    %v3566 = vpop.f32.mrf.mxu0
    %v3567 = vadd.f32 %v3086, %v3566
    %v3568 = vpop.f32.mrf.mxu0
    %3569 = vmatprep.mubr.f32.mxu0 0.0
    %3570 = vmatmul.mubr.f32.gmra.mxu0 %v3224
    %v3571 = vpop.f32.mrf.mxu0
    %v3572 = vadd.f32 %v3086, %v3571
    %v3573 = vpop.f32.mrf.mxu0
    %3574 = vmatprep.mubr.f32.mxu0 0.0
    %3575 = vmatmul.mubr.f32.gmra.mxu0 %v3227
    %v3576 = vpop.f32.mrf.mxu0
    %v3577 = vadd.f32 %v3086, %v3576
    %v3578 = vpop.f32.mrf.mxu0
    %3579 = vmatprep.mubr.f32.mxu0 0.0
    %3580 = vmatmul.mubr.f32.gmra.mxu0 %v3230
    %v3581 = vpop.f32.mrf.mxu0
    %v3582 = vadd.f32 %v3086, %v3581
    %v3583 = vpop.f32.mrf.mxu0
    %3584 = vmatprep.mubr.f32.mxu0 0.0
    %3585 = vmatmul.mubr.f32.gmra.mxu0 %v3233
    %v3586 = vpop.f32.mrf.mxu0
    %v3587 = vadd.f32 %v3086, %v3586
    %v3588 = vpop.f32.mrf.mxu0
    %3589 = vmatprep.mubr.f32.mxu0 0.0
    %3590 = vmatmul.mubr.f32.gmra.mxu0 %v3236
    %v3591 = vpop.f32.mrf.mxu0
    %v3592 = vadd.f32 %v3086, %v3591
    %v3593 = vpop.f32.mrf.mxu0
    %3594 = vmatprep.mubr.f32.mxu0 0.0
    %3595 = vmatmul.mubr.f32.gmra.mxu0 %v3239
    %v3596 = vpop.f32.mrf.mxu0
    %v3597 = vadd.f32 %v3086, %v3596
    %v3598 = vpop.f32.mrf.mxu0
    %3599 = vmatprep.mubr.f32.mxu0 0.0
    %3600 = vmatmul.mubr.f32.gmra.mxu0 %v3242
    %v3601 = vpop.f32.mrf.mxu0
    %v3602 = vadd.f32 %v3086, %v3601
    %v3603 = vpop.f32.mrf.mxu0
    %3604 = vmatprep.mubr.f32.mxu0 0.0
    %3605 = vmatmul.mubr.f32.gmra.mxu0 %v3245
    %v3606 = vpop.f32.mrf.mxu0
    %v3607 = vadd.f32 %v3086, %v3606
    %v3608 = vpop.f32.mrf.mxu0
    %3609 = vmatprep.mubr.f32.mxu0 0.0
    %3610 = vmatmul.mubr.f32.gmra.mxu0 %v3248
    %v3611 = vpop.f32.mrf.mxu0
    %v3612 = vadd.f32 %v3086, %v3611
    %v3613 = vpop.f32.mrf.mxu0
    %3614 = vmatprep.mubr.f32.mxu0 0.0
    %3615 = vmatmul.mubr.f32.gmra.mxu0 %v3251
    %v3616 = vpop.f32.mrf.mxu0
    %v3617 = vadd.f32 %v3086, %v3616
    %v3618 = vpop.f32.mrf.mxu0
    %3619 = vmatprep.mubr.f32.mxu0 0.0
    %3620 = vmatmul.mubr.f32.gmra.mxu0 %v3254
    %v3621 = vpop.f32.mrf.mxu0
    %v3622 = vadd.f32 %v3086, %v3621
    %v3623 = vpop.f32.mrf.mxu0
    %3624 = vmatprep.mubr.f32.mxu0 0.0
    %3625 = vmatmul.mubr.f32.gmra.mxu0 %v3257
    %v3626 = vpop.f32.mrf.mxu0
    %v3627 = vadd.f32 %v3086, %v3626
    %v3628 = vpop.f32.mrf.mxu0
    %3629 = vmatprep.mubr.f32.mxu0 0.0
    %3630 = vmatmul.mubr.f32.gmra.mxu0 %v3260
    %v3631 = vpop.f32.mrf.mxu0
    %v3632 = vadd.f32 %v3086, %v3631
    %v3633 = vpop.f32.mrf.mxu0
    %3634 = vmatprep.mubr.f32.mxu0 0.0
    %3635 = vmatmul.mubr.f32.gmra.mxu0 %v3263
    %v3636 = vpop.f32.mrf.mxu0
    %v3637 = vadd.f32 %v3086, %v3636
    %v3638 = vpop.f32.mrf.mxu0
    %3639 = vmatprep.mubr.f32.mxu0 0.0
    %3640 = vmatmul.mubr.f32.gmra.mxu0 %v3266
    %v3641 = vpop.f32.mrf.mxu0
    %v3642 = vadd.f32 %v3086, %v3641
    %v3643 = vpop.f32.mrf.mxu0
    %3644 = vmatprep.mubr.f32.mxu0 0.0
    %3645 = vmatmul.mubr.f32.gmra.mxu0 %v3269
    %v3646 = vpop.f32.mrf.mxu0
    %v3647 = vadd.f32 %v3086, %v3646
    %v3648 = vpop.f32.mrf.mxu0
    %3649 = vmatprep.mubr.f32.mxu0 0.0
    %3650 = vmatmul.mubr.f32.gmra.mxu0 %v3272
    %v3651 = vpop.f32.mrf.mxu0
    %v3652 = vadd.f32 %v3086, %v3651
    %v3653 = vpop.f32.mrf.mxu0
    %3654 = vmatprep.mubr.f32.mxu0 0.0
    %3655 = vmatmul.mubr.f32.gmra.mxu0 %v3275
    %v3656 = vpop.f32.mrf.mxu0
    %v3657 = vadd.f32 %v3086, %v3656
    %v3658 = vpop.f32.mrf.mxu0
    %3659 = vmatprep.mubr.f32.mxu0 0.0
    %3660 = vmatmul.mubr.f32.gmra.mxu0 %v3278
    %v3661 = vpop.f32.mrf.mxu0
    %v3662 = vadd.f32 %v3086, %v3661
    %v3663 = vpop.f32.mrf.mxu0
    %3664 = vdwg.mxu0
    %v3665 = vmax.f32 %v3347, 0.0
    %v3666 = vmax.f32 %v3352, 0.0
    %v3667 = vmax.f32 %v3357, 0.0
    %v3668 = vmax.f32 %v3362, 0.0
    %v3669 = vmax.f32 %v3367, 0.0
    %v3670 = vmax.f32 %v3372, 0.0
    %v3671 = vmax.f32 %v3377, 0.0
    %v3672 = vmax.f32 %v3382, 0.0
    %v3673 = vmax.f32 %v3387, 0.0
    %v3674 = vmax.f32 %v3392, 0.0
    %v3675 = vmax.f32 %v3397, 0.0
    %v3676 = vmax.f32 %v3402, 0.0
    %v3677 = vmax.f32 %v3407, 0.0
    %v3678 = vmax.f32 %v3412, 0.0
    %v3679 = vmax.f32 %v3417, 0.0
    %v3680 = vmax.f32 %v3422, 0.0
    %v3681 = vmax.f32 %v3427, 0.0
    %v3682 = vmax.f32 %v3432, 0.0
    %v3683 = vmax.f32 %v3437, 0.0
    %v3684 = vmax.f32 %v3442, 0.0
    %v3685 = vmax.f32 %v3447, 0.0
    %v3686 = vmax.f32 %v3452, 0.0
    %v3687 = vmax.f32 %v3457, 0.0
    %v3688 = vmax.f32 %v3462, 0.0
    %v3689 = vmax.f32 %v3467, 0.0
    %v3690 = vmax.f32 %v3472, 0.0
    %v3691 = vmax.f32 %v3477, 0.0
    %v3692 = vmax.f32 %v3482, 0.0
    %v3693 = vmax.f32 %v3487, 0.0
    %v3694 = vmax.f32 %v3492, 0.0
    %v3695 = vmax.f32 %v3497, 0.0
    %v3696 = vmax.f32 %v3502, 0.0
    %v3697 = vmax.f32 %v3507, 0.0
    %v3698 = vmax.f32 %v3512, 0.0
    %v3699 = vmax.f32 %v3517, 0.0
    %v3700 = vmax.f32 %v3522, 0.0
    %v3701 = vmax.f32 %v3527, 0.0
    %v3702 = vmax.f32 %v3532, 0.0
    %v3703 = vmax.f32 %v3537, 0.0
    %v3704 = vmax.f32 %v3542, 0.0
    %v3705 = vmax.f32 %v3547, 0.0
    %v3706 = vmax.f32 %v3552, 0.0
    %v3707 = vmax.f32 %v3557, 0.0
    %v3708 = vmax.f32 %v3562, 0.0
    %v3709 = vmax.f32 %v3567, 0.0
    %v3710 = vmax.f32 %v3572, 0.0
    %v3711 = vmax.f32 %v3577, 0.0
    %v3712 = vmax.f32 %v3582, 0.0
    %v3713 = vmax.f32 %v3587, 0.0
    %v3714 = vmax.f32 %v3592, 0.0
    %v3715 = vmax.f32 %v3597, 0.0
    %v3716 = vmax.f32 %v3602, 0.0
    %v3717 = vmax.f32 %v3607, 0.0
    %v3718 = vmax.f32 %v3612, 0.0
    %v3719 = vmax.f32 %v3617, 0.0
    %v3720 = vmax.f32 %v3622, 0.0
    %v3721 = vmax.f32 %v3627, 0.0
    %v3722 = vmax.f32 %v3632, 0.0
    %v3723 = vmax.f32 %v3637, 0.0
    %v3724 = vmax.f32 %v3642, 0.0
    %v3725 = vmax.f32 %v3647, 0.0
    %v3726 = vmax.f32 %v3652, 0.0
    %v3727 = vmax.f32 %v3657, 0.0
    %v3728 = vmax.f32 %v3662, 0.0
    %3730 = vset.pattern.permute.xlu0 0
    %3731 = vperm.xlu0 %3730, %v3665
    %v3732 = vpop.permute.xlu0 %3731
    %3735 = vset.pattern.permute.xlu0 0
    %3736 = vperm.xlu0 %3735, %v3666
    %v3737 = vpop.permute.xlu0 %3736
    %3740 = vset.pattern.permute.xlu0 0
    %3741 = vperm.xlu0 %3740, %v3667
    %v3742 = vpop.permute.xlu0 %3741
    %3745 = vset.pattern.permute.xlu0 0
    %3746 = vperm.xlu0 %3745, %v3668
    %v3747 = vpop.permute.xlu0 %3746
    %3750 = vset.pattern.permute.xlu0 0
    %3751 = vperm.xlu0 %3750, %v3669
    %v3752 = vpop.permute.xlu0 %3751
    %3755 = vset.pattern.permute.xlu0 0
    %3756 = vperm.xlu0 %3755, %v3670
    %v3757 = vpop.permute.xlu0 %3756
    %3760 = vset.pattern.permute.xlu0 0
    %3761 = vperm.xlu0 %3760, %v3671
    %v3762 = vpop.permute.xlu0 %3761
    %3765 = vset.pattern.permute.xlu0 0
    %3766 = vperm.xlu0 %3765, %v3672
    %v3767 = vpop.permute.xlu0 %3766
    %3770 = vset.pattern.permute.xlu0 0
    %3771 = vperm.xlu0 %3770, %v3673
    %v3772 = vpop.permute.xlu0 %3771
    %3775 = vset.pattern.permute.xlu0 0
    %3776 = vperm.xlu0 %3775, %v3674
    %v3777 = vpop.permute.xlu0 %3776
    %3780 = vset.pattern.permute.xlu0 0
    %3781 = vperm.xlu0 %3780, %v3675
    %v3782 = vpop.permute.xlu0 %3781
    %3785 = vset.pattern.permute.xlu0 0
    %3786 = vperm.xlu0 %3785, %v3676
    %v3787 = vpop.permute.xlu0 %3786
    %3790 = vset.pattern.permute.xlu0 0
    %3791 = vperm.xlu0 %3790, %v3677
    %v3792 = vpop.permute.xlu0 %3791
    %3795 = vset.pattern.permute.xlu0 0
    %3796 = vperm.xlu0 %3795, %v3678
    %v3797 = vpop.permute.xlu0 %3796
    %3800 = vset.pattern.permute.xlu0 0
    %3801 = vperm.xlu0 %3800, %v3679
    %v3802 = vpop.permute.xlu0 %3801
    %3805 = vset.pattern.permute.xlu0 0
    %3806 = vperm.xlu0 %3805, %v3680
    %v3807 = vpop.permute.xlu0 %3806
    %3810 = vset.pattern.permute.xlu0 0
    %3811 = vperm.xlu0 %3810, %v3681
    %v3812 = vpop.permute.xlu0 %3811
    %3815 = vset.pattern.permute.xlu0 0
    %3816 = vperm.xlu0 %3815, %v3682
    %v3817 = vpop.permute.xlu0 %3816
    %3820 = vset.pattern.permute.xlu0 0
    %3821 = vperm.xlu0 %3820, %v3683
    %v3822 = vpop.permute.xlu0 %3821
    %3825 = vset.pattern.permute.xlu0 0
    %3826 = vperm.xlu0 %3825, %v3684
    %v3827 = vpop.permute.xlu0 %3826
    %3830 = vset.pattern.permute.xlu0 0
    %3831 = vperm.xlu0 %3830, %v3685
    %v3832 = vpop.permute.xlu0 %3831
    %3835 = vset.pattern.permute.xlu0 0
    %3836 = vperm.xlu0 %3835, %v3686
    %v3837 = vpop.permute.xlu0 %3836
    %3840 = vset.pattern.permute.xlu0 0
    %3841 = vperm.xlu0 %3840, %v3687
    %v3842 = vpop.permute.xlu0 %3841
    %3845 = vset.pattern.permute.xlu0 0
    %3846 = vperm.xlu0 %3845, %v3688
    %v3847 = vpop.permute.xlu0 %3846
    %3850 = vset.pattern.permute.xlu0 0
    %3851 = vperm.xlu0 %3850, %v3689
    %v3852 = vpop.permute.xlu0 %3851
    %3855 = vset.pattern.permute.xlu0 0
    %3856 = vperm.xlu0 %3855, %v3690
    %v3857 = vpop.permute.xlu0 %3856
    %3860 = vset.pattern.permute.xlu0 0
    %3861 = vperm.xlu0 %3860, %v3691
    %v3862 = vpop.permute.xlu0 %3861
    %3865 = vset.pattern.permute.xlu0 0
    %3866 = vperm.xlu0 %3865, %v3692
    %v3867 = vpop.permute.xlu0 %3866
    %3870 = vset.pattern.permute.xlu0 0
    %3871 = vperm.xlu0 %3870, %v3693
    %v3872 = vpop.permute.xlu0 %3871
    %3875 = vset.pattern.permute.xlu0 0
    %3876 = vperm.xlu0 %3875, %v3694
    %v3877 = vpop.permute.xlu0 %3876
    %3880 = vset.pattern.permute.xlu0 0
    %3881 = vperm.xlu0 %3880, %v3695
    %v3882 = vpop.permute.xlu0 %3881
    %3885 = vset.pattern.permute.xlu0 0
    %3886 = vperm.xlu0 %3885, %v3696
    %v3887 = vpop.permute.xlu0 %3886
    %3890 = vset.pattern.permute.xlu0 0
    %3891 = vperm.xlu0 %3890, %v3697
    %v3892 = vpop.permute.xlu0 %3891
    %3895 = vset.pattern.permute.xlu0 0
    %3896 = vperm.xlu0 %3895, %v3698
    %v3897 = vpop.permute.xlu0 %3896
    %3900 = vset.pattern.permute.xlu0 0
    %3901 = vperm.xlu0 %3900, %v3699
    %v3902 = vpop.permute.xlu0 %3901
    %3905 = vset.pattern.permute.xlu0 0
    %3906 = vperm.xlu0 %3905, %v3700
    %v3907 = vpop.permute.xlu0 %3906
    %3910 = vset.pattern.permute.xlu0 0
    %3911 = vperm.xlu0 %3910, %v3701
    %v3912 = vpop.permute.xlu0 %3911
    %3915 = vset.pattern.permute.xlu0 0
    %3916 = vperm.xlu0 %3915, %v3702
    %v3917 = vpop.permute.xlu0 %3916
    %3920 = vset.pattern.permute.xlu0 0
    %3921 = vperm.xlu0 %3920, %v3703
    %v3922 = vpop.permute.xlu0 %3921
    %3925 = vset.pattern.permute.xlu0 0
    %3926 = vperm.xlu0 %3925, %v3704
    %v3927 = vpop.permute.xlu0 %3926
    %3930 = vset.pattern.permute.xlu0 0
    %3931 = vperm.xlu0 %3930, %v3705
    %v3932 = vpop.permute.xlu0 %3931
    %3935 = vset.pattern.permute.xlu0 0
    %3936 = vperm.xlu0 %3935, %v3706
    %v3937 = vpop.permute.xlu0 %3936
    %3940 = vset.pattern.permute.xlu0 0
    %3941 = vperm.xlu0 %3940, %v3707
    %v3942 = vpop.permute.xlu0 %3941
    %3945 = vset.pattern.permute.xlu0 0
    %3946 = vperm.xlu0 %3945, %v3708
    %v3947 = vpop.permute.xlu0 %3946
    %3950 = vset.pattern.permute.xlu0 0
    %3951 = vperm.xlu0 %3950, %v3709
    %v3952 = vpop.permute.xlu0 %3951
    %3955 = vset.pattern.permute.xlu0 0
    %3956 = vperm.xlu0 %3955, %v3710
    %v3957 = vpop.permute.xlu0 %3956
    %3960 = vset.pattern.permute.xlu0 0
    %3961 = vperm.xlu0 %3960, %v3711
    %v3962 = vpop.permute.xlu0 %3961
    %3965 = vset.pattern.permute.xlu0 0
    %3966 = vperm.xlu0 %3965, %v3712
    %v3967 = vpop.permute.xlu0 %3966
    %3970 = vset.pattern.permute.xlu0 0
    %3971 = vperm.xlu0 %3970, %v3713
    %v3972 = vpop.permute.xlu0 %3971
    %3975 = vset.pattern.permute.xlu0 0
    %3976 = vperm.xlu0 %3975, %v3714
    %v3977 = vpop.permute.xlu0 %3976
    %3980 = vset.pattern.permute.xlu0 0
    %3981 = vperm.xlu0 %3980, %v3715
    %v3982 = vpop.permute.xlu0 %3981
    %3985 = vset.pattern.permute.xlu0 0
    %3986 = vperm.xlu0 %3985, %v3716
    %v3987 = vpop.permute.xlu0 %3986
    %3990 = vset.pattern.permute.xlu0 0
    %3991 = vperm.xlu0 %3990, %v3717
    %v3992 = vpop.permute.xlu0 %3991
    %3995 = vset.pattern.permute.xlu0 0
    %3996 = vperm.xlu0 %3995, %v3718
    %v3997 = vpop.permute.xlu0 %3996
    %4000 = vset.pattern.permute.xlu0 0
    %4001 = vperm.xlu0 %4000, %v3719
    %v4002 = vpop.permute.xlu0 %4001
    %4005 = vset.pattern.permute.xlu0 0
    %4006 = vperm.xlu0 %4005, %v3720
    %v4007 = vpop.permute.xlu0 %4006
    %4010 = vset.pattern.permute.xlu0 0
    %4011 = vperm.xlu0 %4010, %v3721
    %v4012 = vpop.permute.xlu0 %4011
    %4015 = vset.pattern.permute.xlu0 0
    %4016 = vperm.xlu0 %4015, %v3722
    %v4017 = vpop.permute.xlu0 %4016
    %4020 = vset.pattern.permute.xlu0 0
    %4021 = vperm.xlu0 %4020, %v3723
    %v4022 = vpop.permute.xlu0 %4021
    %4025 = vset.pattern.permute.xlu0 0
    %4026 = vperm.xlu0 %4025, %v3724
    %v4027 = vpop.permute.xlu0 %4026
    %4030 = vset.pattern.permute.xlu0 0
    %4031 = vperm.xlu0 %4030, %v3725
    %v4032 = vpop.permute.xlu0 %4031
    %4035 = vset.pattern.permute.xlu0 0
    %4036 = vperm.xlu0 %4035, %v3726
    %v4037 = vpop.permute.xlu0 %4036
    %4040 = vset.pattern.permute.xlu0 0
    %4041 = vperm.xlu0 %4040, %v3727
    %v4042 = vpop.permute.xlu0 %4041
    %4045 = vset.pattern.permute.xlu0 0
    %4046 = vperm.xlu0 %4045, %v3728
    %v4047 = vpop.permute.xlu0 %4046
    %v4049 = vmul.f32 %v3732, %v299
    %v4050 = vmul.f32 %v3737, %v300
    %v4051 = vmul.f32 %v3742, %v301
    %v4052 = vmul.f32 %v3747, %v302
    %v4053 = vmul.f32 %v3752, %v303
    %v4054 = vmul.f32 %v3757, %v304
    %v4055 = vmul.f32 %v3762, %v305
    %v4056 = vmul.f32 %v3767, %v306
    %v4057 = vmul.f32 %v3772, %v307
    %v4058 = vmul.f32 %v3777, %v308
    %v4059 = vmul.f32 %v3782, %v309
    %v4060 = vmul.f32 %v3787, %v310
    %v4061 = vmul.f32 %v3792, %v311
    %v4062 = vmul.f32 %v3797, %v312
    %v4063 = vmul.f32 %v3802, %v313
    %v4064 = vmul.f32 %v3807, %v314
    %v4065 = vmul.f32 %v3812, %v315
    %v4066 = vmul.f32 %v3817, %v316
    %v4067 = vmul.f32 %v3822, %v317
    %v4068 = vmul.f32 %v3827, %v318
    %v4069 = vmul.f32 %v3832, %v319
    %v4070 = vmul.f32 %v3837, %v320
    %v4071 = vmul.f32 %v3842, %v321
    %v4072 = vmul.f32 %v3847, %v322
    %v4073 = vmul.f32 %v3852, %v323
    %v4074 = vmul.f32 %v3857, %v324
    %v4075 = vmul.f32 %v3862, %v325
    %v4076 = vmul.f32 %v3867, %v326
    %v4077 = vmul.f32 %v3872, %v327
    %v4078 = vmul.f32 %v3877, %v328
    %v4079 = vmul.f32 %v3882, %v329
    %v4080 = vmul.f32 %v3887, %v330
    %v4081 = vmul.f32 %v3892, %v331
    %v4082 = vmul.f32 %v3897, %v332
    %v4083 = vmul.f32 %v3902, %v333
    %v4084 = vmul.f32 %v3907, %v334
    %v4085 = vmul.f32 %v3912, %v335
    %v4086 = vmul.f32 %v3917, %v336
    %v4087 = vmul.f32 %v3922, %v337
    %v4088 = vmul.f32 %v3927, %v338
    %v4089 = vmul.f32 %v3932, %v339
    %v4090 = vmul.f32 %v3937, %v340
    %v4091 = vmul.f32 %v3942, %v341
    %v4092 = vmul.f32 %v3947, %v342
    %v4093 = vmul.f32 %v3952, %v343
    %v4094 = vmul.f32 %v3957, %v344
    %v4095 = vmul.f32 %v3962, %v345
    %v4096 = vmul.f32 %v3967, %v346
    %v4097 = vmul.f32 %v3972, %v347
    %v4098 = vmul.f32 %v3977, %v348
    %v4099 = vmul.f32 %v3982, %v349
    %v4100 = vmul.f32 %v3987, %v350
    %v4101 = vmul.f32 %v3992, %v351
    %v4102 = vmul.f32 %v3997, %v352
    %v4103 = vmul.f32 %v4002, %v353
    %v4104 = vmul.f32 %v4007, %v354
    %v4105 = vmul.f32 %v4012, %v355
    %v4106 = vmul.f32 %v4017, %v356
    %v4107 = vmul.f32 %v4022, %v357
    %v4108 = vmul.f32 %v4027, %v358
    %v4109 = vmul.f32 %v4032, %v359
    %v4110 = vmul.f32 %v4037, %v360
    %v4111 = vmul.f32 %v4042, %v361
    %v4112 = vmul.f32 %v4047, %v362
    %4113 = vmatprep.subr.mxu0 0.0
    %4114 = vmatpush1.msra.mxu0 %v4064
    %4115 = vmatprep.subr.mxu0 0.0
    %4116 = vmatpush1.msra.mxu0 %v4063
    %4117 = vmatprep.subr.mxu0 0.0
    %4118 = vmatpush1.msra.mxu0 %v4062
    %4119 = vmatprep.subr.mxu0 0.0
    %4120 = vmatpush1.msra.mxu0 %v4061
    %4121 = vmatprep.subr.mxu0 0.0
    %4122 = vmatpush1.msra.mxu0 %v4060
    %4123 = vmatprep.subr.mxu0 0.0
    %4124 = vmatpush1.msra.mxu0 %v4059
    %4125 = vmatprep.subr.mxu0 0.0
    %4126 = vmatpush1.msra.mxu0 %v4058
    %4127 = vmatprep.subr.mxu0 0.0
    %4128 = vmatpush1.msra.mxu0 %v4057
    %4129 = vmatprep.subr.mxu0 0.0
    %4130 = vmatpush1.msra.mxu0 %v4056
    %4131 = vmatprep.subr.mxu0 0.0
    %4132 = vmatpush1.msra.mxu0 %v4055
    %4133 = vmatprep.subr.mxu0 0.0
    %4134 = vmatpush1.msra.mxu0 %v4054
    %4135 = vmatprep.subr.mxu0 0.0
    %4136 = vmatpush1.msra.mxu0 %v4053
    %4137 = vmatprep.subr.mxu0 0.0
    %4138 = vmatpush1.msra.mxu0 %v4052
    %4139 = vmatprep.subr.mxu0 0.0
    %4140 = vmatpush1.msra.mxu0 %v4051
    %4141 = vmatprep.subr.mxu0 0.0
    %4142 = vmatpush1.msra.mxu0 %v4050
    %4143 = vmatprep.subr.mxu0 0.0
    %4144 = vmatpush1.msra.mxu0 %v4049
    %4145 = vmatprep.subr.mxu0 0.0
    %4146 = vmatpush2.msra.mxu0 %v4080
    %4147 = vmatprep.subr.mxu0 0.0
    %4148 = vmatpush2.msra.mxu0 %v4079
    %4149 = vmatprep.subr.mxu0 0.0
    %4150 = vmatpush2.msra.mxu0 %v4078
    %4151 = vmatprep.subr.mxu0 0.0
    %4152 = vmatpush2.msra.mxu0 %v4077
    %4153 = vmatprep.subr.mxu0 0.0
    %4154 = vmatpush2.msra.mxu0 %v4076
    %4155 = vmatprep.subr.mxu0 0.0
    %4156 = vmatpush2.msra.mxu0 %v4075
    %4157 = vmatprep.subr.mxu0 0.0
    %4158 = vmatpush2.msra.mxu0 %v4074
    %4159 = vmatprep.subr.mxu0 0.0
    %4160 = vmatpush2.msra.mxu0 %v4073
    %4161 = vmatprep.subr.mxu0 0.0
    %4162 = vmatpush2.msra.mxu0 %v4072
    %4163 = vmatprep.subr.mxu0 0.0
    %4164 = vmatpush2.msra.mxu0 %v4071
    %4165 = vmatprep.subr.mxu0 0.0
    %4166 = vmatpush2.msra.mxu0 %v4070
    %4167 = vmatprep.subr.mxu0 0.0
    %4168 = vmatpush2.msra.mxu0 %v4069
    %4169 = vmatprep.subr.mxu0 0.0
    %4170 = vmatpush2.msra.mxu0 %v4068
    %4171 = vmatprep.subr.mxu0 0.0
    %4172 = vmatpush2.msra.mxu0 %v4067
    %4173 = vmatprep.subr.mxu0 0.0
    %4174 = vmatpush2.msra.mxu0 %v4066
    %4175 = vmatprep.subr.mxu0 0.0
    %4176 = vmatpush2.msra.mxu0 %v4065
    %4177 = vmatprep.mubr.f32.mxu0 %v105
    %4178 = vmatmul.mubr.f32.gmra.mxu0 %v104
    %v4179 = vpop.f32.mrf.mxu0
    %v4180 = vadd.f32 0.0, %v4179
    %v4181 = vpop.f32.mrf.mxu0
    %4182 = vdwg.mxu0
    %4183 = vmatprep.subr.mxu0 0.0
    %4184 = vmatpush1.msra.mxu0 %v4096
    %4185 = vmatprep.subr.mxu0 0.0
    %4186 = vmatpush1.msra.mxu0 %v4095
    %4187 = vmatprep.subr.mxu0 0.0
    %4188 = vmatpush1.msra.mxu0 %v4094
    %4189 = vmatprep.subr.mxu0 0.0
    %4190 = vmatpush1.msra.mxu0 %v4093
    %4191 = vmatprep.subr.mxu0 0.0
    %4192 = vmatpush1.msra.mxu0 %v4092
    %4193 = vmatprep.subr.mxu0 0.0
    %4194 = vmatpush1.msra.mxu0 %v4091
    %4195 = vmatprep.subr.mxu0 0.0
    %4196 = vmatpush1.msra.mxu0 %v4090
    %4197 = vmatprep.subr.mxu0 0.0
    %4198 = vmatpush1.msra.mxu0 %v4089
    %4199 = vmatprep.subr.mxu0 0.0
    %4200 = vmatpush1.msra.mxu0 %v4088
    %4201 = vmatprep.subr.mxu0 0.0
    %4202 = vmatpush1.msra.mxu0 %v4087
    %4203 = vmatprep.subr.mxu0 0.0
    %4204 = vmatpush1.msra.mxu0 %v4086
    %4205 = vmatprep.subr.mxu0 0.0
    %4206 = vmatpush1.msra.mxu0 %v4085
    %4207 = vmatprep.subr.mxu0 0.0
    %4208 = vmatpush1.msra.mxu0 %v4084
    %4209 = vmatprep.subr.mxu0 0.0
    %4210 = vmatpush1.msra.mxu0 %v4083
    %4211 = vmatprep.subr.mxu0 0.0
    %4212 = vmatpush1.msra.mxu0 %v4082
    %4213 = vmatprep.subr.mxu0 0.0
    %4214 = vmatpush1.msra.mxu0 %v4081
    %4215 = vmatprep.subr.mxu0 0.0
    %4216 = vmatpush2.msra.mxu0 %v4112
    %4217 = vmatprep.subr.mxu0 0.0
    %4218 = vmatpush2.msra.mxu0 %v4111
    %4219 = vmatprep.subr.mxu0 0.0
    %4220 = vmatpush2.msra.mxu0 %v4110
    %4221 = vmatprep.subr.mxu0 0.0
    %4222 = vmatpush2.msra.mxu0 %v4109
    %4223 = vmatprep.subr.mxu0 0.0
    %4224 = vmatpush2.msra.mxu0 %v4108
    %4225 = vmatprep.subr.mxu0 0.0
    %4226 = vmatpush2.msra.mxu0 %v4107
    %4227 = vmatprep.subr.mxu0 0.0
    %4228 = vmatpush2.msra.mxu0 %v4106
    %4229 = vmatprep.subr.mxu0 0.0
    %4230 = vmatpush2.msra.mxu0 %v4105
    %4231 = vmatprep.subr.mxu0 0.0
    %4232 = vmatpush2.msra.mxu0 %v4104
    %4233 = vmatprep.subr.mxu0 0.0
    %4234 = vmatpush2.msra.mxu0 %v4103
    %4235 = vmatprep.subr.mxu0 0.0
    %4236 = vmatpush2.msra.mxu0 %v4102
    %4237 = vmatprep.subr.mxu0 0.0
    %4238 = vmatpush2.msra.mxu0 %v4101
    %4239 = vmatprep.subr.mxu0 0.0
    %4240 = vmatpush2.msra.mxu0 %v4100
    %4241 = vmatprep.subr.mxu0 0.0
    %4242 = vmatpush2.msra.mxu0 %v4099
    %4243 = vmatprep.subr.mxu0 0.0
    %4244 = vmatpush2.msra.mxu0 %v4098
    %4245 = vmatprep.subr.mxu0 0.0
    %4246 = vmatpush2.msra.mxu0 %v4097
    %4247 = vmatprep.mubr.f32.mxu0 %v107
    %4248 = vmatmul.mubr.f32.gmra.mxu0 %v106
    %v4249 = vpop.f32.mrf.mxu0
    %v4250 = vadd.f32 %v4180, %v4249
    %v4251 = vpop.f32.mrf.mxu0
    %4252 = vdwg.mxu0
    %v4253 = vld [vmem:[%s13] sm:$0xff]
    %v4254 = vld [vmem:[%s13 + $0x8] sm:$0xff]
    %v4255 = vld [vmem:[%s13 + $0x10] sm:$0xff]
    %v4256 = vld [vmem:[%s13 + $0x18] sm:$0xff]
    %v4257 = vld [vmem:[%s13 + $0x20] sm:$0xff]
    %v4258 = vld [vmem:[%s13 + $0x28] sm:$0xff]
    %v4259 = vld [vmem:[%s13 + $0x30] sm:$0xff]
    %v4260 = vld [vmem:[%s13 + $0x38] sm:$0xff]
    %v4261 = vld [vmem:[%s14] sm:$0x1]
    %v4263 = vlaneseq
    %v4264 = vshrl.u32 %v4263, 7
    %v4265 = vsub.s32 0, %v4264
    %v4266 = vrot.slane %v4261, %v4265
    %v4269 = vsel %vm1099, %v4250, 0
    %4271 = vmatprep.subr.mxu0 0.0
    %4272 = vmatpush1.msra.mxu0 0.0
    %4273 = vmatprep.subr.mxu0 0.0
    %4274 = vmatpush1.msra.mxu0 0.0
    %4275 = vmatprep.subr.mxu0 0.0
    %4276 = vmatpush1.msra.mxu0 0.0
    %4277 = vmatprep.subr.mxu0 0.0
    %4278 = vmatpush1.msra.mxu0 0.0
    %4279 = vmatprep.subr.mxu0 0.0
    %4280 = vmatpush1.msra.mxu0 0.0
    %4281 = vmatprep.subr.mxu0 0.0
    %4282 = vmatpush1.msra.mxu0 0.0
    %4283 = vmatprep.subr.mxu0 0.0
    %4284 = vmatpush1.msra.mxu0 0.0
    %4285 = vmatprep.subr.mxu0 0.0
    %4286 = vmatpush1.msra.mxu0 0.0
    %4287 = vmatprep.subr.mxu0 0.0
    %4288 = vmatpush1.msra.mxu0 %v4260
    %4289 = vmatprep.subr.mxu0 0.0
    %4290 = vmatpush1.msra.mxu0 %v4259
    %4291 = vmatprep.subr.mxu0 0.0
    %4292 = vmatpush1.msra.mxu0 %v4258
    %4293 = vmatprep.subr.mxu0 0.0
    %4294 = vmatpush1.msra.mxu0 %v4257
    %4295 = vmatprep.subr.mxu0 0.0
    %4296 = vmatpush1.msra.mxu0 %v4256
    %4297 = vmatprep.subr.mxu0 0.0
    %4298 = vmatpush1.msra.mxu0 %v4255
    %4299 = vmatprep.subr.mxu0 0.0
    %4300 = vmatpush1.msra.mxu0 %v4254
    %4301 = vmatprep.subr.mxu0 0.0
    %4302 = vmatpush1.msra.mxu0 %v4253
    %4303 = vmatprep.subr.mxu0 0.0
    %4304 = vmatpush2.msra.mxu0 0.0
    %4305 = vmatprep.subr.mxu0 0.0
    %4306 = vmatpush2.msra.mxu0 0.0
    %4307 = vmatprep.subr.mxu0 0.0
    %4308 = vmatpush2.msra.mxu0 0.0
    %4309 = vmatprep.subr.mxu0 0.0
    %4310 = vmatpush2.msra.mxu0 0.0
    %4311 = vmatprep.subr.mxu0 0.0
    %4312 = vmatpush2.msra.mxu0 0.0
    %4313 = vmatprep.subr.mxu0 0.0
    %4314 = vmatpush2.msra.mxu0 0.0
    %4315 = vmatprep.subr.mxu0 0.0
    %4316 = vmatpush2.msra.mxu0 0.0
    %4317 = vmatprep.subr.mxu0 0.0
    %4318 = vmatpush2.msra.mxu0 0.0
    %4319 = vmatprep.subr.mxu0 0.0
    %4320 = vmatpush2.msra.mxu0 0.0
    %4321 = vmatprep.subr.mxu0 0.0
    %4322 = vmatpush2.msra.mxu0 0.0
    %4323 = vmatprep.subr.mxu0 0.0
    %4324 = vmatpush2.msra.mxu0 0.0
    %4325 = vmatprep.subr.mxu0 0.0
    %4326 = vmatpush2.msra.mxu0 0.0
    %4327 = vmatprep.subr.mxu0 0.0
    %4328 = vmatpush2.msra.mxu0 0.0
    %4329 = vmatprep.subr.mxu0 0.0
    %4330 = vmatpush2.msra.mxu0 0.0
    %4331 = vmatprep.subr.mxu0 0.0
    %4332 = vmatpush2.msra.mxu0 0.0
    %4333 = vmatprep.subr.mxu0 0.0
    %4334 = vmatpush2.msra.mxu0 0.0
    %4335 = vmatprep.mubr.f32.mxu0 0.0
    %4336 = vmatmul.mubr.f32.gmra.mxu0 %v4269
    %v4337 = vpop.f32.mrf.mxu0
    %v4338 = vadd.f32 %v4266, %v4337
    %v4339 = vpop.f32.mrf.mxu0
    %4340 = vdwg.mxu0
    %v4341 = vmax.f32 %v4338, 0.0
    %v4342 = vld [vmem:[%s2] sm:$0xff]
    %v4343 = vld [vmem:[%s2 + $0x8] sm:$0xff]
    %v4344 = vld [vmem:[%s2 + $0x10] sm:$0xff]
    %v4345 = vld [vmem:[%s2 + $0x18] sm:$0xff]
    %v4346 = vld [vmem:[%s2 + $0x20] sm:$0xff]
    %v4347 = vld [vmem:[%s2 + $0x28] sm:$0xff]
    %v4348 = vld [vmem:[%s2 + $0x30] sm:$0xff]
    %v4349 = vld [vmem:[%s2 + $0x38] sm:$0xff]
    %v4350 = vld [vmem:[%s2 + $0x40] sm:$0xff]
    %v4351 = vld [vmem:[%s2 + $0x48] sm:$0xff]
    %v4352 = vld [vmem:[%s2 + $0x50] sm:$0xff]
    %v4353 = vld [vmem:[%s2 + $0x58] sm:$0xff]
    %v4354 = vld [vmem:[%s2 + $0x60] sm:$0xff]
    %v4355 = vld [vmem:[%s2 + $0x68] sm:$0xff]
    %v4356 = vld [vmem:[%s2 + $0x70] sm:$0xff]
    %v4357 = vld [vmem:[%s2 + $0x78] sm:$0xff]
    %v4358 = vld [vmem:[%s2 + $0x80] sm:$0xff]
    %v4359 = vld [vmem:[%s2 + $0x88] sm:$0xff]
    %v4360 = vld [vmem:[%s2 + $0x90] sm:$0xff]
    %v4361 = vld [vmem:[%s2 + $0x98] sm:$0xff]
    %v4362 = vld [vmem:[%s2 + $0xa0] sm:$0xff]
    %v4363 = vld [vmem:[%s2 + $0xa8] sm:$0xff]
    %v4364 = vld [vmem:[%s2 + $0xb0] sm:$0xff]
    %v4365 = vld [vmem:[%s2 + $0xb8] sm:$0xff]
    %v4366 = vld [vmem:[%s2 + $0xc0] sm:$0xff]
    %v4367 = vld [vmem:[%s2 + $0xc8] sm:$0xff]
    %v4368 = vld [vmem:[%s2 + $0xd0] sm:$0xff]
    %v4369 = vld [vmem:[%s2 + $0xd8] sm:$0xff]
    %v4370 = vld [vmem:[%s2 + $0xe0] sm:$0xff]
    %v4371 = vld [vmem:[%s2 + $0xe8] sm:$0xff]
    %v4372 = vld [vmem:[%s2 + $0xf0] sm:$0xff]
    %v4373 = vld [vmem:[%s2 + $0xf8] sm:$0xff]
    %v4374 = vld [vmem:[%s2 + $0x100] sm:$0xff]
    %v4375 = vld [vmem:[%s2 + $0x108] sm:$0xff]
    %v4376 = vld [vmem:[%s2 + $0x110] sm:$0xff]
    %v4377 = vld [vmem:[%s2 + $0x118] sm:$0xff]
    %v4378 = vld [vmem:[%s2 + $0x120] sm:$0xff]
    %v4379 = vld [vmem:[%s2 + $0x128] sm:$0xff]
    %v4380 = vld [vmem:[%s2 + $0x130] sm:$0xff]
    %v4381 = vld [vmem:[%s2 + $0x138] sm:$0xff]
    %v4382 = vld [vmem:[%s2 + $0x140] sm:$0xff]
    %v4383 = vld [vmem:[%s2 + $0x148] sm:$0xff]
    %v4384 = vld [vmem:[%s2 + $0x150] sm:$0xff]
    %v4385 = vld [vmem:[%s2 + $0x158] sm:$0xff]
    %v4386 = vld [vmem:[%s2 + $0x160] sm:$0xff]
    %v4387 = vld [vmem:[%s2 + $0x168] sm:$0xff]
    %v4388 = vld [vmem:[%s2 + $0x170] sm:$0xff]
    %v4389 = vld [vmem:[%s2 + $0x178] sm:$0xff]
    %v4390 = vld [vmem:[%s2 + $0x180] sm:$0xff]
    %v4391 = vld [vmem:[%s2 + $0x188] sm:$0xff]
    %v4392 = vld [vmem:[%s2 + $0x190] sm:$0xff]
    %v4393 = vld [vmem:[%s2 + $0x198] sm:$0xff]
    %v4394 = vld [vmem:[%s2 + $0x1a0] sm:$0xff]
    %v4395 = vld [vmem:[%s2 + $0x1a8] sm:$0xff]
    %v4396 = vld [vmem:[%s2 + $0x1b0] sm:$0xff]
    %v4397 = vld [vmem:[%s2 + $0x1b8] sm:$0xff]
    %v4398 = vld [vmem:[%s2 + $0x1c0] sm:$0xff]
    %v4399 = vld [vmem:[%s2 + $0x1c8] sm:$0xff]
    %v4400 = vld [vmem:[%s2 + $0x1d0] sm:$0xff]
    %v4401 = vld [vmem:[%s2 + $0x1d8] sm:$0xff]
    %v4402 = vld [vmem:[%s2 + $0x1e0] sm:$0xff]
    %v4403 = vld [vmem:[%s2 + $0x1e8] sm:$0xff]
    %v4404 = vld [vmem:[%s2 + $0x1f0] sm:$0xff]
    %v4405 = vld [vmem:[%s2 + $0x1f8] sm:$0xff]
    %v4406 = vld [vmem:[%s15] sm:$0xff]
    %v4407 = vld [vmem:[%s15 + $0x8] sm:$0xff]
    %v4408 = vld [vmem:[%s15 + $0x10] sm:$0xff]
    %v4409 = vld [vmem:[%s15 + $0x18] sm:$0xff]
    %v4410 = vld [vmem:[%s15 + $0x20] sm:$0xff]
    %v4411 = vld [vmem:[%s15 + $0x28] sm:$0xff]
    %v4412 = vld [vmem:[%s15 + $0x30] sm:$0xff]
    %v4413 = vld [vmem:[%s15 + $0x38] sm:$0xff]
    %v4414 = vld [vmem:[%s15 + $0x40] sm:$0xff]
    %v4415 = vld [vmem:[%s15 + $0x48] sm:$0xff]
    %v4416 = vld [vmem:[%s15 + $0x50] sm:$0xff]
    %v4417 = vld [vmem:[%s15 + $0x58] sm:$0xff]
    %v4418 = vld [vmem:[%s15 + $0x60] sm:$0xf]
    %v4419 = vld [vmem:[%s16] sm:$0x1]
    %v4421 = vlaneseq
    %v4422 = vshrl.u32 %v4421, 7
    %v4423 = vsub.s32 0, %v4422
    %v4424 = vrot.slane %v4419, %v4423
    %vm4426 = vcmask 818176
    %v4428 = vsel %vm4426, %v4342, 0
    %v4431 = vsel %vm4426, %v4343, 0
    %v4434 = vsel %vm4426, %v4344, 0
    %v4437 = vsel %vm4426, %v4345, 0
    %v4440 = vsel %vm4426, %v4346, 0
    %v4443 = vsel %vm4426, %v4347, 0
    %v4446 = vsel %vm4426, %v4348, 0
    %v4449 = vsel %vm4426, %v4349, 0
    %v4452 = vsel %vm4426, %v4350, 0
    %v4455 = vsel %vm4426, %v4351, 0
    %v4458 = vsel %vm4426, %v4352, 0
    %v4461 = vsel %vm4426, %v4353, 0
    %v4464 = vsel %vm4426, %v4354, 0
    %v4467 = vsel %vm4426, %v4355, 0
    %v4470 = vsel %vm4426, %v4356, 0
    %v4473 = vsel %vm4426, %v4357, 0
    %v4476 = vsel %vm4426, %v4358, 0
    %v4479 = vsel %vm4426, %v4359, 0
    %v4482 = vsel %vm4426, %v4360, 0
    %v4485 = vsel %vm4426, %v4361, 0
    %v4488 = vsel %vm4426, %v4362, 0
    %v4491 = vsel %vm4426, %v4363, 0
    %v4494 = vsel %vm4426, %v4364, 0
    %v4497 = vsel %vm4426, %v4365, 0
    %v4500 = vsel %vm4426, %v4366, 0
    %v4503 = vsel %vm4426, %v4367, 0
    %v4506 = vsel %vm4426, %v4368, 0
    %v4509 = vsel %vm4426, %v4369, 0
    %v4512 = vsel %vm4426, %v4370, 0
    %v4515 = vsel %vm4426, %v4371, 0
    %v4518 = vsel %vm4426, %v4372, 0
    %v4521 = vsel %vm4426, %v4373, 0
    %v4524 = vsel %vm4426, %v4374, 0
    %v4527 = vsel %vm4426, %v4375, 0
    %v4530 = vsel %vm4426, %v4376, 0
    %v4533 = vsel %vm4426, %v4377, 0
    %v4536 = vsel %vm4426, %v4378, 0
    %v4539 = vsel %vm4426, %v4379, 0
    %v4542 = vsel %vm4426, %v4380, 0
    %v4545 = vsel %vm4426, %v4381, 0
    %v4548 = vsel %vm4426, %v4382, 0
    %v4551 = vsel %vm4426, %v4383, 0
    %v4554 = vsel %vm4426, %v4384, 0
    %v4557 = vsel %vm4426, %v4385, 0
    %v4560 = vsel %vm4426, %v4386, 0
    %v4563 = vsel %vm4426, %v4387, 0
    %v4566 = vsel %vm4426, %v4388, 0
    %v4569 = vsel %vm4426, %v4389, 0
    %v4572 = vsel %vm4426, %v4390, 0
    %v4575 = vsel %vm4426, %v4391, 0
    %v4578 = vsel %vm4426, %v4392, 0
    %v4581 = vsel %vm4426, %v4393, 0
    %v4584 = vsel %vm4426, %v4394, 0
    %v4587 = vsel %vm4426, %v4395, 0
    %v4590 = vsel %vm4426, %v4396, 0
    %v4593 = vsel %vm4426, %v4397, 0
    %v4596 = vsel %vm4426, %v4398, 0
    %v4599 = vsel %vm4426, %v4399, 0
    %v4602 = vsel %vm4426, %v4400, 0
    %v4605 = vsel %vm4426, %v4401, 0
    %v4608 = vsel %vm4426, %v4402, 0
    %v4611 = vsel %vm4426, %v4403, 0
    %v4614 = vsel %vm4426, %v4404, 0
    %v4617 = vsel %vm4426, %v4405, 0
    %vm4619 = vcmask 1043456
    %v4621 = vsel %vm4619, %v4418, 0
    %4623 = vmatprep.subr.mxu0 0.0
    %4624 = vmatpush1.msra.mxu0 0.0
    %4625 = vmatprep.subr.mxu0 0.0
    %4626 = vmatpush1.msra.mxu0 0.0
    %4627 = vmatprep.subr.mxu0 0.0
    %4628 = vmatpush1.msra.mxu0 0.0
    %4629 = vmatprep.subr.mxu0 0.0
    %4630 = vmatpush1.msra.mxu0 %v4621
    %4631 = vmatprep.subr.mxu0 0.0
    %4632 = vmatpush1.msra.mxu0 %v4417
    %4633 = vmatprep.subr.mxu0 0.0
    %4634 = vmatpush1.msra.mxu0 %v4416
    %4635 = vmatprep.subr.mxu0 0.0
    %4636 = vmatpush1.msra.mxu0 %v4415
    %4637 = vmatprep.subr.mxu0 0.0
    %4638 = vmatpush1.msra.mxu0 %v4414
    %4639 = vmatprep.subr.mxu0 0.0
    %4640 = vmatpush1.msra.mxu0 %v4413
    %4641 = vmatprep.subr.mxu0 0.0
    %4642 = vmatpush1.msra.mxu0 %v4412
    %4643 = vmatprep.subr.mxu0 0.0
    %4644 = vmatpush1.msra.mxu0 %v4411
    %4645 = vmatprep.subr.mxu0 0.0
    %4646 = vmatpush1.msra.mxu0 %v4410
    %4647 = vmatprep.subr.mxu0 0.0
    %4648 = vmatpush1.msra.mxu0 %v4409
    %4649 = vmatprep.subr.mxu0 0.0
    %4650 = vmatpush1.msra.mxu0 %v4408
    %4651 = vmatprep.subr.mxu0 0.0
    %4652 = vmatpush1.msra.mxu0 %v4407
    %4653 = vmatprep.subr.mxu0 0.0
    %4654 = vmatpush1.msra.mxu0 %v4406
    %4655 = vmatprep.subr.mxu0 0.0
    %4656 = vmatpush2.msra.mxu0 0.0
    %4657 = vmatprep.subr.mxu0 0.0
    %4658 = vmatpush2.msra.mxu0 0.0
    %4659 = vmatprep.subr.mxu0 0.0
    %4660 = vmatpush2.msra.mxu0 0.0
    %4661 = vmatprep.subr.mxu0 0.0
    %4662 = vmatpush2.msra.mxu0 0.0
    %4663 = vmatprep.subr.mxu0 0.0
    %4664 = vmatpush2.msra.mxu0 0.0
    %4665 = vmatprep.subr.mxu0 0.0
    %4666 = vmatpush2.msra.mxu0 0.0
    %4667 = vmatprep.subr.mxu0 0.0
    %4668 = vmatpush2.msra.mxu0 0.0
    %4669 = vmatprep.subr.mxu0 0.0
    %4670 = vmatpush2.msra.mxu0 0.0
    %4671 = vmatprep.subr.mxu0 0.0
    %4672 = vmatpush2.msra.mxu0 0.0
    %4673 = vmatprep.subr.mxu0 0.0
    %4674 = vmatpush2.msra.mxu0 0.0
    %4675 = vmatprep.subr.mxu0 0.0
    %4676 = vmatpush2.msra.mxu0 0.0
    %4677 = vmatprep.subr.mxu0 0.0
    %4678 = vmatpush2.msra.mxu0 0.0
    %4679 = vmatprep.subr.mxu0 0.0
    %4680 = vmatpush2.msra.mxu0 0.0
    %4681 = vmatprep.subr.mxu0 0.0
    %4682 = vmatpush2.msra.mxu0 0.0
    %4683 = vmatprep.subr.mxu0 0.0
    %4684 = vmatpush2.msra.mxu0 0.0
    %4685 = vmatprep.subr.mxu0 0.0
    %4686 = vmatpush2.msra.mxu0 0.0
    %4687 = vmatprep.mubr.f32.mxu0 0.0
    %4688 = vmatmul.mubr.f32.gmra.mxu0 %v4428
    %v4689 = vpop.f32.mrf.mxu0
    %v4690 = vadd.f32 %v4424, %v4689
    %v4691 = vpop.f32.mrf.mxu0
    %4692 = vmatprep.mubr.f32.mxu0 0.0
    %4693 = vmatmul.mubr.f32.gmra.mxu0 %v4431
    %v4694 = vpop.f32.mrf.mxu0
    %v4695 = vadd.f32 %v4424, %v4694
    %v4696 = vpop.f32.mrf.mxu0
    %4697 = vmatprep.mubr.f32.mxu0 0.0
    %4698 = vmatmul.mubr.f32.gmra.mxu0 %v4434
    %v4699 = vpop.f32.mrf.mxu0
    %v4700 = vadd.f32 %v4424, %v4699
    %v4701 = vpop.f32.mrf.mxu0
    %4702 = vmatprep.mubr.f32.mxu0 0.0
    %4703 = vmatmul.mubr.f32.gmra.mxu0 %v4437
    %v4704 = vpop.f32.mrf.mxu0
    %v4705 = vadd.f32 %v4424, %v4704
    %v4706 = vpop.f32.mrf.mxu0
    %4707 = vmatprep.mubr.f32.mxu0 0.0
    %4708 = vmatmul.mubr.f32.gmra.mxu0 %v4440
    %v4709 = vpop.f32.mrf.mxu0
    %v4710 = vadd.f32 %v4424, %v4709
    %v4711 = vpop.f32.mrf.mxu0
    %4712 = vmatprep.mubr.f32.mxu0 0.0
    %4713 = vmatmul.mubr.f32.gmra.mxu0 %v4443
    %v4714 = vpop.f32.mrf.mxu0
    %v4715 = vadd.f32 %v4424, %v4714
    %v4716 = vpop.f32.mrf.mxu0
    %4717 = vmatprep.mubr.f32.mxu0 0.0
    %4718 = vmatmul.mubr.f32.gmra.mxu0 %v4446
    %v4719 = vpop.f32.mrf.mxu0
    %v4720 = vadd.f32 %v4424, %v4719
    %v4721 = vpop.f32.mrf.mxu0
    %4722 = vmatprep.mubr.f32.mxu0 0.0
    %4723 = vmatmul.mubr.f32.gmra.mxu0 %v4449
    %v4724 = vpop.f32.mrf.mxu0
    %v4725 = vadd.f32 %v4424, %v4724
    %v4726 = vpop.f32.mrf.mxu0
    %4727 = vmatprep.mubr.f32.mxu0 0.0
    %4728 = vmatmul.mubr.f32.gmra.mxu0 %v4452
    %v4729 = vpop.f32.mrf.mxu0
    %v4730 = vadd.f32 %v4424, %v4729
    %v4731 = vpop.f32.mrf.mxu0
    %4732 = vmatprep.mubr.f32.mxu0 0.0
    %4733 = vmatmul.mubr.f32.gmra.mxu0 %v4455
    %v4734 = vpop.f32.mrf.mxu0
    %v4735 = vadd.f32 %v4424, %v4734
    %v4736 = vpop.f32.mrf.mxu0
    %4737 = vmatprep.mubr.f32.mxu0 0.0
    %4738 = vmatmul.mubr.f32.gmra.mxu0 %v4458
    %v4739 = vpop.f32.mrf.mxu0
    %v4740 = vadd.f32 %v4424, %v4739
    %v4741 = vpop.f32.mrf.mxu0
    %4742 = vmatprep.mubr.f32.mxu0 0.0
    %4743 = vmatmul.mubr.f32.gmra.mxu0 %v4461
    %v4744 = vpop.f32.mrf.mxu0
    %v4745 = vadd.f32 %v4424, %v4744
    %v4746 = vpop.f32.mrf.mxu0
    %4747 = vmatprep.mubr.f32.mxu0 0.0
    %4748 = vmatmul.mubr.f32.gmra.mxu0 %v4464
    %v4749 = vpop.f32.mrf.mxu0
    %v4750 = vadd.f32 %v4424, %v4749
    %v4751 = vpop.f32.mrf.mxu0
    %4752 = vmatprep.mubr.f32.mxu0 0.0
    %4753 = vmatmul.mubr.f32.gmra.mxu0 %v4467
    %v4754 = vpop.f32.mrf.mxu0
    %v4755 = vadd.f32 %v4424, %v4754
    %v4756 = vpop.f32.mrf.mxu0
    %4757 = vmatprep.mubr.f32.mxu0 0.0
    %4758 = vmatmul.mubr.f32.gmra.mxu0 %v4470
    %v4759 = vpop.f32.mrf.mxu0
    %v4760 = vadd.f32 %v4424, %v4759
    %v4761 = vpop.f32.mrf.mxu0
    %4762 = vmatprep.mubr.f32.mxu0 0.0
    %4763 = vmatmul.mubr.f32.gmra.mxu0 %v4473
    %v4764 = vpop.f32.mrf.mxu0
    %v4765 = vadd.f32 %v4424, %v4764
    %v4766 = vpop.f32.mrf.mxu0
    %4767 = vmatprep.mubr.f32.mxu0 0.0
    %4768 = vmatmul.mubr.f32.gmra.mxu0 %v4476
    %v4769 = vpop.f32.mrf.mxu0
    %v4770 = vadd.f32 %v4424, %v4769
    %v4771 = vpop.f32.mrf.mxu0
    %4772 = vmatprep.mubr.f32.mxu0 0.0
    %4773 = vmatmul.mubr.f32.gmra.mxu0 %v4479
    %v4774 = vpop.f32.mrf.mxu0
    %v4775 = vadd.f32 %v4424, %v4774
    %v4776 = vpop.f32.mrf.mxu0
    %4777 = vmatprep.mubr.f32.mxu0 0.0
    %4778 = vmatmul.mubr.f32.gmra.mxu0 %v4482
    %v4779 = vpop.f32.mrf.mxu0
    %v4780 = vadd.f32 %v4424, %v4779
    %v4781 = vpop.f32.mrf.mxu0
    %4782 = vmatprep.mubr.f32.mxu0 0.0
    %4783 = vmatmul.mubr.f32.gmra.mxu0 %v4485
    %v4784 = vpop.f32.mrf.mxu0
    %v4785 = vadd.f32 %v4424, %v4784
    %v4786 = vpop.f32.mrf.mxu0
    %4787 = vmatprep.mubr.f32.mxu0 0.0
    %4788 = vmatmul.mubr.f32.gmra.mxu0 %v4488
    %v4789 = vpop.f32.mrf.mxu0
    %v4790 = vadd.f32 %v4424, %v4789
    %v4791 = vpop.f32.mrf.mxu0
    %4792 = vmatprep.mubr.f32.mxu0 0.0
    %4793 = vmatmul.mubr.f32.gmra.mxu0 %v4491
    %v4794 = vpop.f32.mrf.mxu0
    %v4795 = vadd.f32 %v4424, %v4794
    %v4796 = vpop.f32.mrf.mxu0
    %4797 = vmatprep.mubr.f32.mxu0 0.0
    %4798 = vmatmul.mubr.f32.gmra.mxu0 %v4494
    %v4799 = vpop.f32.mrf.mxu0
    %v4800 = vadd.f32 %v4424, %v4799
    %v4801 = vpop.f32.mrf.mxu0
    %4802 = vmatprep.mubr.f32.mxu0 0.0
    %4803 = vmatmul.mubr.f32.gmra.mxu0 %v4497
    %v4804 = vpop.f32.mrf.mxu0
    %v4805 = vadd.f32 %v4424, %v4804
    %v4806 = vpop.f32.mrf.mxu0
    %4807 = vmatprep.mubr.f32.mxu0 0.0
    %4808 = vmatmul.mubr.f32.gmra.mxu0 %v4500
    %v4809 = vpop.f32.mrf.mxu0
    %v4810 = vadd.f32 %v4424, %v4809
    %v4811 = vpop.f32.mrf.mxu0
    %4812 = vmatprep.mubr.f32.mxu0 0.0
    %4813 = vmatmul.mubr.f32.gmra.mxu0 %v4503
    %v4814 = vpop.f32.mrf.mxu0
    %v4815 = vadd.f32 %v4424, %v4814
    %v4816 = vpop.f32.mrf.mxu0
    %4817 = vmatprep.mubr.f32.mxu0 0.0
    %4818 = vmatmul.mubr.f32.gmra.mxu0 %v4506
    %v4819 = vpop.f32.mrf.mxu0
    %v4820 = vadd.f32 %v4424, %v4819
    %v4821 = vpop.f32.mrf.mxu0
    %4822 = vmatprep.mubr.f32.mxu0 0.0
    %4823 = vmatmul.mubr.f32.gmra.mxu0 %v4509
    %v4824 = vpop.f32.mrf.mxu0
    %v4825 = vadd.f32 %v4424, %v4824
    %v4826 = vpop.f32.mrf.mxu0
    %4827 = vmatprep.mubr.f32.mxu0 0.0
    %4828 = vmatmul.mubr.f32.gmra.mxu0 %v4512
    %v4829 = vpop.f32.mrf.mxu0
    %v4830 = vadd.f32 %v4424, %v4829
    %v4831 = vpop.f32.mrf.mxu0
    %4832 = vmatprep.mubr.f32.mxu0 0.0
    %4833 = vmatmul.mubr.f32.gmra.mxu0 %v4515
    %v4834 = vpop.f32.mrf.mxu0
    %v4835 = vadd.f32 %v4424, %v4834
    %v4836 = vpop.f32.mrf.mxu0
    %4837 = vmatprep.mubr.f32.mxu0 0.0
    %4838 = vmatmul.mubr.f32.gmra.mxu0 %v4518
    %v4839 = vpop.f32.mrf.mxu0
    %v4840 = vadd.f32 %v4424, %v4839
    %v4841 = vpop.f32.mrf.mxu0
    %4842 = vmatprep.mubr.f32.mxu0 0.0
    %4843 = vmatmul.mubr.f32.gmra.mxu0 %v4521
    %v4844 = vpop.f32.mrf.mxu0
    %v4845 = vadd.f32 %v4424, %v4844
    %v4846 = vpop.f32.mrf.mxu0
    %4847 = vmatprep.mubr.f32.mxu0 0.0
    %4848 = vmatmul.mubr.f32.gmra.mxu0 %v4524
    %v4849 = vpop.f32.mrf.mxu0
    %v4850 = vadd.f32 %v4424, %v4849
    %v4851 = vpop.f32.mrf.mxu0
    %4852 = vmatprep.mubr.f32.mxu0 0.0
    %4853 = vmatmul.mubr.f32.gmra.mxu0 %v4527
    %v4854 = vpop.f32.mrf.mxu0
    %v4855 = vadd.f32 %v4424, %v4854
    %v4856 = vpop.f32.mrf.mxu0
    %4857 = vmatprep.mubr.f32.mxu0 0.0
    %4858 = vmatmul.mubr.f32.gmra.mxu0 %v4530
    %v4859 = vpop.f32.mrf.mxu0
    %v4860 = vadd.f32 %v4424, %v4859
    %v4861 = vpop.f32.mrf.mxu0
    %4862 = vmatprep.mubr.f32.mxu0 0.0
    %4863 = vmatmul.mubr.f32.gmra.mxu0 %v4533
    %v4864 = vpop.f32.mrf.mxu0
    %v4865 = vadd.f32 %v4424, %v4864
    %v4866 = vpop.f32.mrf.mxu0
    %4867 = vmatprep.mubr.f32.mxu0 0.0
    %4868 = vmatmul.mubr.f32.gmra.mxu0 %v4536
    %v4869 = vpop.f32.mrf.mxu0
    %v4870 = vadd.f32 %v4424, %v4869
    %v4871 = vpop.f32.mrf.mxu0
    %4872 = vmatprep.mubr.f32.mxu0 0.0
    %4873 = vmatmul.mubr.f32.gmra.mxu0 %v4539
    %v4874 = vpop.f32.mrf.mxu0
    %v4875 = vadd.f32 %v4424, %v4874
    %v4876 = vpop.f32.mrf.mxu0
    %4877 = vmatprep.mubr.f32.mxu0 0.0
    %4878 = vmatmul.mubr.f32.gmra.mxu0 %v4542
    %v4879 = vpop.f32.mrf.mxu0
    %v4880 = vadd.f32 %v4424, %v4879
    %v4881 = vpop.f32.mrf.mxu0
    %4882 = vmatprep.mubr.f32.mxu0 0.0
    %4883 = vmatmul.mubr.f32.gmra.mxu0 %v4545
    %v4884 = vpop.f32.mrf.mxu0
    %v4885 = vadd.f32 %v4424, %v4884
    %v4886 = vpop.f32.mrf.mxu0
    %4887 = vmatprep.mubr.f32.mxu0 0.0
    %4888 = vmatmul.mubr.f32.gmra.mxu0 %v4548
    %v4889 = vpop.f32.mrf.mxu0
    %v4890 = vadd.f32 %v4424, %v4889
    %v4891 = vpop.f32.mrf.mxu0
    %4892 = vmatprep.mubr.f32.mxu0 0.0
    %4893 = vmatmul.mubr.f32.gmra.mxu0 %v4551
    %v4894 = vpop.f32.mrf.mxu0
    %v4895 = vadd.f32 %v4424, %v4894
    %v4896 = vpop.f32.mrf.mxu0
    %4897 = vmatprep.mubr.f32.mxu0 0.0
    %4898 = vmatmul.mubr.f32.gmra.mxu0 %v4554
    %v4899 = vpop.f32.mrf.mxu0
    %v4900 = vadd.f32 %v4424, %v4899
    %v4901 = vpop.f32.mrf.mxu0
    %4902 = vmatprep.mubr.f32.mxu0 0.0
    %4903 = vmatmul.mubr.f32.gmra.mxu0 %v4557
    %v4904 = vpop.f32.mrf.mxu0
    %v4905 = vadd.f32 %v4424, %v4904
    %v4906 = vpop.f32.mrf.mxu0
    %4907 = vmatprep.mubr.f32.mxu0 0.0
    %4908 = vmatmul.mubr.f32.gmra.mxu0 %v4560
    %v4909 = vpop.f32.mrf.mxu0
    %v4910 = vadd.f32 %v4424, %v4909
    %v4911 = vpop.f32.mrf.mxu0
    %4912 = vmatprep.mubr.f32.mxu0 0.0
    %4913 = vmatmul.mubr.f32.gmra.mxu0 %v4563
    %v4914 = vpop.f32.mrf.mxu0
    %v4915 = vadd.f32 %v4424, %v4914
    %v4916 = vpop.f32.mrf.mxu0
    %4917 = vmatprep.mubr.f32.mxu0 0.0
    %4918 = vmatmul.mubr.f32.gmra.mxu0 %v4566
    %v4919 = vpop.f32.mrf.mxu0
    %v4920 = vadd.f32 %v4424, %v4919
    %v4921 = vpop.f32.mrf.mxu0
    %4922 = vmatprep.mubr.f32.mxu0 0.0
    %4923 = vmatmul.mubr.f32.gmra.mxu0 %v4569
    %v4924 = vpop.f32.mrf.mxu0
    %v4925 = vadd.f32 %v4424, %v4924
    %v4926 = vpop.f32.mrf.mxu0
    %4927 = vmatprep.mubr.f32.mxu0 0.0
    %4928 = vmatmul.mubr.f32.gmra.mxu0 %v4572
    %v4929 = vpop.f32.mrf.mxu0
    %v4930 = vadd.f32 %v4424, %v4929
    %v4931 = vpop.f32.mrf.mxu0
    %4932 = vmatprep.mubr.f32.mxu0 0.0
    %4933 = vmatmul.mubr.f32.gmra.mxu0 %v4575
    %v4934 = vpop.f32.mrf.mxu0
    %v4935 = vadd.f32 %v4424, %v4934
    %v4936 = vpop.f32.mrf.mxu0
    %4937 = vmatprep.mubr.f32.mxu0 0.0
    %4938 = vmatmul.mubr.f32.gmra.mxu0 %v4578
    %v4939 = vpop.f32.mrf.mxu0
    %v4940 = vadd.f32 %v4424, %v4939
    %v4941 = vpop.f32.mrf.mxu0
    %4942 = vmatprep.mubr.f32.mxu0 0.0
    %4943 = vmatmul.mubr.f32.gmra.mxu0 %v4581
    %v4944 = vpop.f32.mrf.mxu0
    %v4945 = vadd.f32 %v4424, %v4944
    %v4946 = vpop.f32.mrf.mxu0
    %4947 = vmatprep.mubr.f32.mxu0 0.0
    %4948 = vmatmul.mubr.f32.gmra.mxu0 %v4584
    %v4949 = vpop.f32.mrf.mxu0
    %v4950 = vadd.f32 %v4424, %v4949
    %v4951 = vpop.f32.mrf.mxu0
    %4952 = vmatprep.mubr.f32.mxu0 0.0
    %4953 = vmatmul.mubr.f32.gmra.mxu0 %v4587
    %v4954 = vpop.f32.mrf.mxu0
    %v4955 = vadd.f32 %v4424, %v4954
    %v4956 = vpop.f32.mrf.mxu0
    %4957 = vmatprep.mubr.f32.mxu0 0.0
    %4958 = vmatmul.mubr.f32.gmra.mxu0 %v4590
    %v4959 = vpop.f32.mrf.mxu0
    %v4960 = vadd.f32 %v4424, %v4959
    %v4961 = vpop.f32.mrf.mxu0
    %4962 = vmatprep.mubr.f32.mxu0 0.0
    %4963 = vmatmul.mubr.f32.gmra.mxu0 %v4593
    %v4964 = vpop.f32.mrf.mxu0
    %v4965 = vadd.f32 %v4424, %v4964
    %v4966 = vpop.f32.mrf.mxu0
    %4967 = vmatprep.mubr.f32.mxu0 0.0
    %4968 = vmatmul.mubr.f32.gmra.mxu0 %v4596
    %v4969 = vpop.f32.mrf.mxu0
    %v4970 = vadd.f32 %v4424, %v4969
    %v4971 = vpop.f32.mrf.mxu0
    %4972 = vmatprep.mubr.f32.mxu0 0.0
    %4973 = vmatmul.mubr.f32.gmra.mxu0 %v4599
    %v4974 = vpop.f32.mrf.mxu0
    %v4975 = vadd.f32 %v4424, %v4974
    %v4976 = vpop.f32.mrf.mxu0
    %4977 = vmatprep.mubr.f32.mxu0 0.0
    %4978 = vmatmul.mubr.f32.gmra.mxu0 %v4602
    %v4979 = vpop.f32.mrf.mxu0
    %v4980 = vadd.f32 %v4424, %v4979
    %v4981 = vpop.f32.mrf.mxu0
    %4982 = vmatprep.mubr.f32.mxu0 0.0
    %4983 = vmatmul.mubr.f32.gmra.mxu0 %v4605
    %v4984 = vpop.f32.mrf.mxu0
    %v4985 = vadd.f32 %v4424, %v4984
    %v4986 = vpop.f32.mrf.mxu0
    %4987 = vmatprep.mubr.f32.mxu0 0.0
    %4988 = vmatmul.mubr.f32.gmra.mxu0 %v4608
    %v4989 = vpop.f32.mrf.mxu0
    %v4990 = vadd.f32 %v4424, %v4989
    %v4991 = vpop.f32.mrf.mxu0
    %4992 = vmatprep.mubr.f32.mxu0 0.0
    %4993 = vmatmul.mubr.f32.gmra.mxu0 %v4611
    %v4994 = vpop.f32.mrf.mxu0
    %v4995 = vadd.f32 %v4424, %v4994
    %v4996 = vpop.f32.mrf.mxu0
    %4997 = vmatprep.mubr.f32.mxu0 0.0
    %4998 = vmatmul.mubr.f32.gmra.mxu0 %v4614
    %v4999 = vpop.f32.mrf.mxu0
    %v5000 = vadd.f32 %v4424, %v4999
    %v5001 = vpop.f32.mrf.mxu0
    %5002 = vmatprep.mubr.f32.mxu0 0.0
    %5003 = vmatmul.mubr.f32.gmra.mxu0 %v4617
    %v5004 = vpop.f32.mrf.mxu0
    %v5005 = vadd.f32 %v4424, %v5004
    %v5006 = vpop.f32.mrf.mxu0
    %5007 = vdwg.mxu0
    %v5008 = vmax.f32 %v4690, 0.0
    %v5009 = vmax.f32 %v4695, 0.0
    %v5010 = vmax.f32 %v4700, 0.0
    %v5011 = vmax.f32 %v4705, 0.0
    %v5012 = vmax.f32 %v4710, 0.0
    %v5013 = vmax.f32 %v4715, 0.0
    %v5014 = vmax.f32 %v4720, 0.0
    %v5015 = vmax.f32 %v4725, 0.0
    %v5016 = vmax.f32 %v4730, 0.0
    %v5017 = vmax.f32 %v4735, 0.0
    %v5018 = vmax.f32 %v4740, 0.0
    %v5019 = vmax.f32 %v4745, 0.0
    %v5020 = vmax.f32 %v4750, 0.0
    %v5021 = vmax.f32 %v4755, 0.0
    %v5022 = vmax.f32 %v4760, 0.0
    %v5023 = vmax.f32 %v4765, 0.0
    %v5024 = vmax.f32 %v4770, 0.0
    %v5025 = vmax.f32 %v4775, 0.0
    %v5026 = vmax.f32 %v4780, 0.0
    %v5027 = vmax.f32 %v4785, 0.0
    %v5028 = vmax.f32 %v4790, 0.0
    %v5029 = vmax.f32 %v4795, 0.0
    %v5030 = vmax.f32 %v4800, 0.0
    %v5031 = vmax.f32 %v4805, 0.0
    %v5032 = vmax.f32 %v4810, 0.0
    %v5033 = vmax.f32 %v4815, 0.0
    %v5034 = vmax.f32 %v4820, 0.0
    %v5035 = vmax.f32 %v4825, 0.0
    %v5036 = vmax.f32 %v4830, 0.0
    %v5037 = vmax.f32 %v4835, 0.0
    %v5038 = vmax.f32 %v4840, 0.0
    %v5039 = vmax.f32 %v4845, 0.0
    %v5040 = vmax.f32 %v4850, 0.0
    %v5041 = vmax.f32 %v4855, 0.0
    %v5042 = vmax.f32 %v4860, 0.0
    %v5043 = vmax.f32 %v4865, 0.0
    %v5044 = vmax.f32 %v4870, 0.0
    %v5045 = vmax.f32 %v4875, 0.0
    %v5046 = vmax.f32 %v4880, 0.0
    %v5047 = vmax.f32 %v4885, 0.0
    %v5048 = vmax.f32 %v4890, 0.0
    %v5049 = vmax.f32 %v4895, 0.0
    %v5050 = vmax.f32 %v4900, 0.0
    %v5051 = vmax.f32 %v4905, 0.0
    %v5052 = vmax.f32 %v4910, 0.0
    %v5053 = vmax.f32 %v4915, 0.0
    %v5054 = vmax.f32 %v4920, 0.0
    %v5055 = vmax.f32 %v4925, 0.0
    %v5056 = vmax.f32 %v4930, 0.0
    %v5057 = vmax.f32 %v4935, 0.0
    %v5058 = vmax.f32 %v4940, 0.0
    %v5059 = vmax.f32 %v4945, 0.0
    %v5060 = vmax.f32 %v4950, 0.0
    %v5061 = vmax.f32 %v4955, 0.0
    %v5062 = vmax.f32 %v4960, 0.0
    %v5063 = vmax.f32 %v4965, 0.0
    %v5064 = vmax.f32 %v4970, 0.0
    %v5065 = vmax.f32 %v4975, 0.0
    %v5066 = vmax.f32 %v4980, 0.0
    %v5067 = vmax.f32 %v4985, 0.0
    %v5068 = vmax.f32 %v4990, 0.0
    %v5069 = vmax.f32 %v4995, 0.0
    %v5070 = vmax.f32 %v5000, 0.0
    %v5071 = vmax.f32 %v5005, 0.0
    %v5072 = vld [vmem:[%s17] sm:$0xff]
    %v5073 = vld [vmem:[%s17 + $0x8] sm:$0xff]
    %v5074 = vld [vmem:[%s17 + $0x10] sm:$0xff]
    %v5075 = vld [vmem:[%s17 + $0x18] sm:$0xff]
    %v5076 = vld [vmem:[%s17 + $0x20] sm:$0xff]
    %v5077 = vld [vmem:[%s17 + $0x28] sm:$0xff]
    %v5078 = vld [vmem:[%s17 + $0x30] sm:$0xff]
    %v5079 = vld [vmem:[%s17 + $0x38] sm:$0xff]
    %v5080 = vld [vmem:[#allocation4] sm:$0x1]
    %v5082 = vlaneseq
    %v5083 = vshrl.u32 %v5082, 7
    %v5084 = vsub.s32 0, %v5083
    %v5085 = vrot.slane %v5080, %v5084
    %v5088 = vsel %vm1099, %v5008, 0
    %v5091 = vsel %vm1099, %v5009, 0
    %v5094 = vsel %vm1099, %v5010, 0
    %v5097 = vsel %vm1099, %v5011, 0
    %v5100 = vsel %vm1099, %v5012, 0
    %v5103 = vsel %vm1099, %v5013, 0
    %v5106 = vsel %vm1099, %v5014, 0
    %v5109 = vsel %vm1099, %v5015, 0
    %v5112 = vsel %vm1099, %v5016, 0
    %v5115 = vsel %vm1099, %v5017, 0
    %v5118 = vsel %vm1099, %v5018, 0
    %v5121 = vsel %vm1099, %v5019, 0
    %v5124 = vsel %vm1099, %v5020, 0
    %v5127 = vsel %vm1099, %v5021, 0
    %v5130 = vsel %vm1099, %v5022, 0
    %v5133 = vsel %vm1099, %v5023, 0
    %v5136 = vsel %vm1099, %v5024, 0
    %v5139 = vsel %vm1099, %v5025, 0
    %v5142 = vsel %vm1099, %v5026, 0
    %v5145 = vsel %vm1099, %v5027, 0
    %v5148 = vsel %vm1099, %v5028, 0
    %v5151 = vsel %vm1099, %v5029, 0
    %v5154 = vsel %vm1099, %v5030, 0
    %v5157 = vsel %vm1099, %v5031, 0
    %v5160 = vsel %vm1099, %v5032, 0
    %v5163 = vsel %vm1099, %v5033, 0
    %v5166 = vsel %vm1099, %v5034, 0
    %v5169 = vsel %vm1099, %v5035, 0
    %v5172 = vsel %vm1099, %v5036, 0
    %v5175 = vsel %vm1099, %v5037, 0
    %v5178 = vsel %vm1099, %v5038, 0
    %v5181 = vsel %vm1099, %v5039, 0
    %v5184 = vsel %vm1099, %v5040, 0
    %v5187 = vsel %vm1099, %v5041, 0
    %v5190 = vsel %vm1099, %v5042, 0
    %v5193 = vsel %vm1099, %v5043, 0
    %v5196 = vsel %vm1099, %v5044, 0
    %v5199 = vsel %vm1099, %v5045, 0
    %v5202 = vsel %vm1099, %v5046, 0
    %v5205 = vsel %vm1099, %v5047, 0
    %v5208 = vsel %vm1099, %v5048, 0
    %v5211 = vsel %vm1099, %v5049, 0
    %v5214 = vsel %vm1099, %v5050, 0
    %v5217 = vsel %vm1099, %v5051, 0
    %v5220 = vsel %vm1099, %v5052, 0
    %v5223 = vsel %vm1099, %v5053, 0
    %v5226 = vsel %vm1099, %v5054, 0
    %v5229 = vsel %vm1099, %v5055, 0
    %v5232 = vsel %vm1099, %v5056, 0
    %v5235 = vsel %vm1099, %v5057, 0
    %v5238 = vsel %vm1099, %v5058, 0
    %v5241 = vsel %vm1099, %v5059, 0
    %v5244 = vsel %vm1099, %v5060, 0
    %v5247 = vsel %vm1099, %v5061, 0
    %v5250 = vsel %vm1099, %v5062, 0
    %v5253 = vsel %vm1099, %v5063, 0
    %v5256 = vsel %vm1099, %v5064, 0
    %v5259 = vsel %vm1099, %v5065, 0
    %v5262 = vsel %vm1099, %v5066, 0
    %v5265 = vsel %vm1099, %v5067, 0
    %v5268 = vsel %vm1099, %v5068, 0
    %v5271 = vsel %vm1099, %v5069, 0
    %v5274 = vsel %vm1099, %v5070, 0
    %v5277 = vsel %vm1099, %v5071, 0
    %5279 = vmatprep.subr.mxu0 0.0
    %5280 = vmatpush1.msra.mxu0 0.0
    %5281 = vmatprep.subr.mxu0 0.0
    %5282 = vmatpush1.msra.mxu0 0.0
    %5283 = vmatprep.subr.mxu0 0.0
    %5284 = vmatpush1.msra.mxu0 0.0
    %5285 = vmatprep.subr.mxu0 0.0
    %5286 = vmatpush1.msra.mxu0 0.0
    %5287 = vmatprep.subr.mxu0 0.0
    %5288 = vmatpush1.msra.mxu0 0.0
    %5289 = vmatprep.subr.mxu0 0.0
    %5290 = vmatpush1.msra.mxu0 0.0
    %5291 = vmatprep.subr.mxu0 0.0
    %5292 = vmatpush1.msra.mxu0 0.0
    %5293 = vmatprep.subr.mxu0 0.0
    %5294 = vmatpush1.msra.mxu0 0.0
    %5295 = vmatprep.subr.mxu0 0.0
    %5296 = vmatpush1.msra.mxu0 %v5079
    %5297 = vmatprep.subr.mxu0 0.0
    %5298 = vmatpush1.msra.mxu0 %v5078
    %5299 = vmatprep.subr.mxu0 0.0
    %5300 = vmatpush1.msra.mxu0 %v5077
    %5301 = vmatprep.subr.mxu0 0.0
    %5302 = vmatpush1.msra.mxu0 %v5076
    %5303 = vmatprep.subr.mxu0 0.0
    %5304 = vmatpush1.msra.mxu0 %v5075
    %5305 = vmatprep.subr.mxu0 0.0
    %5306 = vmatpush1.msra.mxu0 %v5074
    %5307 = vmatprep.subr.mxu0 0.0
    %5308 = vmatpush1.msra.mxu0 %v5073
    %5309 = vmatprep.subr.mxu0 0.0
    %5310 = vmatpush1.msra.mxu0 %v5072
    %5311 = vmatprep.subr.mxu0 0.0
    %5312 = vmatpush2.msra.mxu0 0.0
    %5313 = vmatprep.subr.mxu0 0.0
    %5314 = vmatpush2.msra.mxu0 0.0
    %5315 = vmatprep.subr.mxu0 0.0
    %5316 = vmatpush2.msra.mxu0 0.0
    %5317 = vmatprep.subr.mxu0 0.0
    %5318 = vmatpush2.msra.mxu0 0.0
    %5319 = vmatprep.subr.mxu0 0.0
    %5320 = vmatpush2.msra.mxu0 0.0
    %5321 = vmatprep.subr.mxu0 0.0
    %5322 = vmatpush2.msra.mxu0 0.0
    %5323 = vmatprep.subr.mxu0 0.0
    %5324 = vmatpush2.msra.mxu0 0.0
    %5325 = vmatprep.subr.mxu0 0.0
    %5326 = vmatpush2.msra.mxu0 0.0
    %5327 = vmatprep.subr.mxu0 0.0
    %5328 = vmatpush2.msra.mxu0 0.0
    %5329 = vmatprep.subr.mxu0 0.0
    %5330 = vmatpush2.msra.mxu0 0.0
    %5331 = vmatprep.subr.mxu0 0.0
    %5332 = vmatpush2.msra.mxu0 0.0
    %5333 = vmatprep.subr.mxu0 0.0
    %5334 = vmatpush2.msra.mxu0 0.0
    %5335 = vmatprep.subr.mxu0 0.0
    %5336 = vmatpush2.msra.mxu0 0.0
    %5337 = vmatprep.subr.mxu0 0.0
    %5338 = vmatpush2.msra.mxu0 0.0
    %5339 = vmatprep.subr.mxu0 0.0
    %5340 = vmatpush2.msra.mxu0 0.0
    %5341 = vmatprep.subr.mxu0 0.0
    %5342 = vmatpush2.msra.mxu0 0.0
    %5343 = vmatprep.mubr.f32.mxu0 0.0
    %5344 = vmatmul.mubr.f32.gmra.mxu0 %v5088
    %v5345 = vpop.f32.mrf.mxu0
    %v5346 = vadd.f32 %v5085, %v5345
    %v5347 = vpop.f32.mrf.mxu0
    %5348 = vmatprep.mubr.f32.mxu0 0.0
    %5349 = vmatmul.mubr.f32.gmra.mxu0 %v5091
    %v5350 = vpop.f32.mrf.mxu0
    %v5351 = vadd.f32 %v5085, %v5350
    %v5352 = vpop.f32.mrf.mxu0
    %5353 = vmatprep.mubr.f32.mxu0 0.0
    %5354 = vmatmul.mubr.f32.gmra.mxu0 %v5094
    %v5355 = vpop.f32.mrf.mxu0
    %v5356 = vadd.f32 %v5085, %v5355
    %v5357 = vpop.f32.mrf.mxu0
    %5358 = vmatprep.mubr.f32.mxu0 0.0
    %5359 = vmatmul.mubr.f32.gmra.mxu0 %v5097
    %v5360 = vpop.f32.mrf.mxu0
    %v5361 = vadd.f32 %v5085, %v5360
    %v5362 = vpop.f32.mrf.mxu0
    %5363 = vmatprep.mubr.f32.mxu0 0.0
    %5364 = vmatmul.mubr.f32.gmra.mxu0 %v5100
    %v5365 = vpop.f32.mrf.mxu0
    %v5366 = vadd.f32 %v5085, %v5365
    %v5367 = vpop.f32.mrf.mxu0
    %5368 = vmatprep.mubr.f32.mxu0 0.0
    %5369 = vmatmul.mubr.f32.gmra.mxu0 %v5103
    %v5370 = vpop.f32.mrf.mxu0
    %v5371 = vadd.f32 %v5085, %v5370
    %v5372 = vpop.f32.mrf.mxu0
    %5373 = vmatprep.mubr.f32.mxu0 0.0
    %5374 = vmatmul.mubr.f32.gmra.mxu0 %v5106
    %v5375 = vpop.f32.mrf.mxu0
    %v5376 = vadd.f32 %v5085, %v5375
    %v5377 = vpop.f32.mrf.mxu0
    %5378 = vmatprep.mubr.f32.mxu0 0.0
    %5379 = vmatmul.mubr.f32.gmra.mxu0 %v5109
    %v5380 = vpop.f32.mrf.mxu0
    %v5381 = vadd.f32 %v5085, %v5380
    %v5382 = vpop.f32.mrf.mxu0
    %5383 = vmatprep.mubr.f32.mxu0 0.0
    %5384 = vmatmul.mubr.f32.gmra.mxu0 %v5112
    %v5385 = vpop.f32.mrf.mxu0
    %v5386 = vadd.f32 %v5085, %v5385
    %v5387 = vpop.f32.mrf.mxu0
    %5388 = vmatprep.mubr.f32.mxu0 0.0
    %5389 = vmatmul.mubr.f32.gmra.mxu0 %v5115
    %v5390 = vpop.f32.mrf.mxu0
    %v5391 = vadd.f32 %v5085, %v5390
    %v5392 = vpop.f32.mrf.mxu0
    %5393 = vmatprep.mubr.f32.mxu0 0.0
    %5394 = vmatmul.mubr.f32.gmra.mxu0 %v5118
    %v5395 = vpop.f32.mrf.mxu0
    %v5396 = vadd.f32 %v5085, %v5395
    %v5397 = vpop.f32.mrf.mxu0
    %5398 = vmatprep.mubr.f32.mxu0 0.0
    %5399 = vmatmul.mubr.f32.gmra.mxu0 %v5121
    %v5400 = vpop.f32.mrf.mxu0
    %v5401 = vadd.f32 %v5085, %v5400
    %v5402 = vpop.f32.mrf.mxu0
    %5403 = vmatprep.mubr.f32.mxu0 0.0
    %5404 = vmatmul.mubr.f32.gmra.mxu0 %v5124
    %v5405 = vpop.f32.mrf.mxu0
    %v5406 = vadd.f32 %v5085, %v5405
    %v5407 = vpop.f32.mrf.mxu0
    %5408 = vmatprep.mubr.f32.mxu0 0.0
    %5409 = vmatmul.mubr.f32.gmra.mxu0 %v5127
    %v5410 = vpop.f32.mrf.mxu0
    %v5411 = vadd.f32 %v5085, %v5410
    %v5412 = vpop.f32.mrf.mxu0
    %5413 = vmatprep.mubr.f32.mxu0 0.0
    %5414 = vmatmul.mubr.f32.gmra.mxu0 %v5130
    %v5415 = vpop.f32.mrf.mxu0
    %v5416 = vadd.f32 %v5085, %v5415
    %v5417 = vpop.f32.mrf.mxu0
    %5418 = vmatprep.mubr.f32.mxu0 0.0
    %5419 = vmatmul.mubr.f32.gmra.mxu0 %v5133
    %v5420 = vpop.f32.mrf.mxu0
    %v5421 = vadd.f32 %v5085, %v5420
    %v5422 = vpop.f32.mrf.mxu0
    %5423 = vmatprep.mubr.f32.mxu0 0.0
    %5424 = vmatmul.mubr.f32.gmra.mxu0 %v5136
    %v5425 = vpop.f32.mrf.mxu0
    %v5426 = vadd.f32 %v5085, %v5425
    %v5427 = vpop.f32.mrf.mxu0
    %5428 = vmatprep.mubr.f32.mxu0 0.0
    %5429 = vmatmul.mubr.f32.gmra.mxu0 %v5139
    %v5430 = vpop.f32.mrf.mxu0
    %v5431 = vadd.f32 %v5085, %v5430
    %v5432 = vpop.f32.mrf.mxu0
    %5433 = vmatprep.mubr.f32.mxu0 0.0
    %5434 = vmatmul.mubr.f32.gmra.mxu0 %v5142
    %v5435 = vpop.f32.mrf.mxu0
    %v5436 = vadd.f32 %v5085, %v5435
    %v5437 = vpop.f32.mrf.mxu0
    %5438 = vmatprep.mubr.f32.mxu0 0.0
    %5439 = vmatmul.mubr.f32.gmra.mxu0 %v5145
    %v5440 = vpop.f32.mrf.mxu0
    %v5441 = vadd.f32 %v5085, %v5440
    %v5442 = vpop.f32.mrf.mxu0
    %5443 = vmatprep.mubr.f32.mxu0 0.0
    %5444 = vmatmul.mubr.f32.gmra.mxu0 %v5148
    %v5445 = vpop.f32.mrf.mxu0
    %v5446 = vadd.f32 %v5085, %v5445
    %v5447 = vpop.f32.mrf.mxu0
    %5448 = vmatprep.mubr.f32.mxu0 0.0
    %5449 = vmatmul.mubr.f32.gmra.mxu0 %v5151
    %v5450 = vpop.f32.mrf.mxu0
    %v5451 = vadd.f32 %v5085, %v5450
    %v5452 = vpop.f32.mrf.mxu0
    %5453 = vmatprep.mubr.f32.mxu0 0.0
    %5454 = vmatmul.mubr.f32.gmra.mxu0 %v5154
    %v5455 = vpop.f32.mrf.mxu0
    %v5456 = vadd.f32 %v5085, %v5455
    %v5457 = vpop.f32.mrf.mxu0
    %5458 = vmatprep.mubr.f32.mxu0 0.0
    %5459 = vmatmul.mubr.f32.gmra.mxu0 %v5157
    %v5460 = vpop.f32.mrf.mxu0
    %v5461 = vadd.f32 %v5085, %v5460
    %v5462 = vpop.f32.mrf.mxu0
    %5463 = vmatprep.mubr.f32.mxu0 0.0
    %5464 = vmatmul.mubr.f32.gmra.mxu0 %v5160
    %v5465 = vpop.f32.mrf.mxu0
    %v5466 = vadd.f32 %v5085, %v5465
    %v5467 = vpop.f32.mrf.mxu0
    %5468 = vmatprep.mubr.f32.mxu0 0.0
    %5469 = vmatmul.mubr.f32.gmra.mxu0 %v5163
    %v5470 = vpop.f32.mrf.mxu0
    %v5471 = vadd.f32 %v5085, %v5470
    %v5472 = vpop.f32.mrf.mxu0
    %5473 = vmatprep.mubr.f32.mxu0 0.0
    %5474 = vmatmul.mubr.f32.gmra.mxu0 %v5166
    %v5475 = vpop.f32.mrf.mxu0
    %v5476 = vadd.f32 %v5085, %v5475
    %v5477 = vpop.f32.mrf.mxu0
    %5478 = vmatprep.mubr.f32.mxu0 0.0
    %5479 = vmatmul.mubr.f32.gmra.mxu0 %v5169
    %v5480 = vpop.f32.mrf.mxu0
    %v5481 = vadd.f32 %v5085, %v5480
    %v5482 = vpop.f32.mrf.mxu0
    %5483 = vmatprep.mubr.f32.mxu0 0.0
    %5484 = vmatmul.mubr.f32.gmra.mxu0 %v5172
    %v5485 = vpop.f32.mrf.mxu0
    %v5486 = vadd.f32 %v5085, %v5485
    %v5487 = vpop.f32.mrf.mxu0
    %5488 = vmatprep.mubr.f32.mxu0 0.0
    %5489 = vmatmul.mubr.f32.gmra.mxu0 %v5175
    %v5490 = vpop.f32.mrf.mxu0
    %v5491 = vadd.f32 %v5085, %v5490
    %v5492 = vpop.f32.mrf.mxu0
    %5493 = vmatprep.mubr.f32.mxu0 0.0
    %5494 = vmatmul.mubr.f32.gmra.mxu0 %v5178
    %v5495 = vpop.f32.mrf.mxu0
    %v5496 = vadd.f32 %v5085, %v5495
    %v5497 = vpop.f32.mrf.mxu0
    %5498 = vmatprep.mubr.f32.mxu0 0.0
    %5499 = vmatmul.mubr.f32.gmra.mxu0 %v5181
    %v5500 = vpop.f32.mrf.mxu0
    %v5501 = vadd.f32 %v5085, %v5500
    %v5502 = vpop.f32.mrf.mxu0
    %5503 = vmatprep.mubr.f32.mxu0 0.0
    %5504 = vmatmul.mubr.f32.gmra.mxu0 %v5184
    %v5505 = vpop.f32.mrf.mxu0
    %v5506 = vadd.f32 %v5085, %v5505
    %v5507 = vpop.f32.mrf.mxu0
    %5508 = vmatprep.mubr.f32.mxu0 0.0
    %5509 = vmatmul.mubr.f32.gmra.mxu0 %v5187
    %v5510 = vpop.f32.mrf.mxu0
    %v5511 = vadd.f32 %v5085, %v5510
    %v5512 = vpop.f32.mrf.mxu0
    %5513 = vmatprep.mubr.f32.mxu0 0.0
    %5514 = vmatmul.mubr.f32.gmra.mxu0 %v5190
    %v5515 = vpop.f32.mrf.mxu0
    %v5516 = vadd.f32 %v5085, %v5515
    %v5517 = vpop.f32.mrf.mxu0
    %5518 = vmatprep.mubr.f32.mxu0 0.0
    %5519 = vmatmul.mubr.f32.gmra.mxu0 %v5193
    %v5520 = vpop.f32.mrf.mxu0
    %v5521 = vadd.f32 %v5085, %v5520
    %v5522 = vpop.f32.mrf.mxu0
    %5523 = vmatprep.mubr.f32.mxu0 0.0
    %5524 = vmatmul.mubr.f32.gmra.mxu0 %v5196
    %v5525 = vpop.f32.mrf.mxu0
    %v5526 = vadd.f32 %v5085, %v5525
    %v5527 = vpop.f32.mrf.mxu0
    %5528 = vmatprep.mubr.f32.mxu0 0.0
    %5529 = vmatmul.mubr.f32.gmra.mxu0 %v5199
    %v5530 = vpop.f32.mrf.mxu0
    %v5531 = vadd.f32 %v5085, %v5530
    %v5532 = vpop.f32.mrf.mxu0
    %5533 = vmatprep.mubr.f32.mxu0 0.0
    %5534 = vmatmul.mubr.f32.gmra.mxu0 %v5202
    %v5535 = vpop.f32.mrf.mxu0
    %v5536 = vadd.f32 %v5085, %v5535
    %v5537 = vpop.f32.mrf.mxu0
    %5538 = vmatprep.mubr.f32.mxu0 0.0
    %5539 = vmatmul.mubr.f32.gmra.mxu0 %v5205
    %v5540 = vpop.f32.mrf.mxu0
    %v5541 = vadd.f32 %v5085, %v5540
    %v5542 = vpop.f32.mrf.mxu0
    %5543 = vmatprep.mubr.f32.mxu0 0.0
    %5544 = vmatmul.mubr.f32.gmra.mxu0 %v5208
    %v5545 = vpop.f32.mrf.mxu0
    %v5546 = vadd.f32 %v5085, %v5545
    %v5547 = vpop.f32.mrf.mxu0
    %5548 = vmatprep.mubr.f32.mxu0 0.0
    %5549 = vmatmul.mubr.f32.gmra.mxu0 %v5211
    %v5550 = vpop.f32.mrf.mxu0
    %v5551 = vadd.f32 %v5085, %v5550
    %v5552 = vpop.f32.mrf.mxu0
    %5553 = vmatprep.mubr.f32.mxu0 0.0
    %5554 = vmatmul.mubr.f32.gmra.mxu0 %v5214
    %v5555 = vpop.f32.mrf.mxu0
    %v5556 = vadd.f32 %v5085, %v5555
    %v5557 = vpop.f32.mrf.mxu0
    %5558 = vmatprep.mubr.f32.mxu0 0.0
    %5559 = vmatmul.mubr.f32.gmra.mxu0 %v5217
    %v5560 = vpop.f32.mrf.mxu0
    %v5561 = vadd.f32 %v5085, %v5560
    %v5562 = vpop.f32.mrf.mxu0
    %5563 = vmatprep.mubr.f32.mxu0 0.0
    %5564 = vmatmul.mubr.f32.gmra.mxu0 %v5220
    %v5565 = vpop.f32.mrf.mxu0
    %v5566 = vadd.f32 %v5085, %v5565
    %v5567 = vpop.f32.mrf.mxu0
    %5568 = vmatprep.mubr.f32.mxu0 0.0
    %5569 = vmatmul.mubr.f32.gmra.mxu0 %v5223
    %v5570 = vpop.f32.mrf.mxu0
    %v5571 = vadd.f32 %v5085, %v5570
    %v5572 = vpop.f32.mrf.mxu0
    %5573 = vmatprep.mubr.f32.mxu0 0.0
    %5574 = vmatmul.mubr.f32.gmra.mxu0 %v5226
    %v5575 = vpop.f32.mrf.mxu0
    %v5576 = vadd.f32 %v5085, %v5575
    %v5577 = vpop.f32.mrf.mxu0
    %5578 = vmatprep.mubr.f32.mxu0 0.0
    %5579 = vmatmul.mubr.f32.gmra.mxu0 %v5229
    %v5580 = vpop.f32.mrf.mxu0
    %v5581 = vadd.f32 %v5085, %v5580
    %v5582 = vpop.f32.mrf.mxu0
    %5583 = vmatprep.mubr.f32.mxu0 0.0
    %5584 = vmatmul.mubr.f32.gmra.mxu0 %v5232
    %v5585 = vpop.f32.mrf.mxu0
    %v5586 = vadd.f32 %v5085, %v5585
    %v5587 = vpop.f32.mrf.mxu0
    %5588 = vmatprep.mubr.f32.mxu0 0.0
    %5589 = vmatmul.mubr.f32.gmra.mxu0 %v5235
    %v5590 = vpop.f32.mrf.mxu0
    %v5591 = vadd.f32 %v5085, %v5590
    %v5592 = vpop.f32.mrf.mxu0
    %5593 = vmatprep.mubr.f32.mxu0 0.0
    %5594 = vmatmul.mubr.f32.gmra.mxu0 %v5238
    %v5595 = vpop.f32.mrf.mxu0
    %v5596 = vadd.f32 %v5085, %v5595
    %v5597 = vpop.f32.mrf.mxu0
    %5598 = vmatprep.mubr.f32.mxu0 0.0
    %5599 = vmatmul.mubr.f32.gmra.mxu0 %v5241
    %v5600 = vpop.f32.mrf.mxu0
    %v5601 = vadd.f32 %v5085, %v5600
    %v5602 = vpop.f32.mrf.mxu0
    %5603 = vmatprep.mubr.f32.mxu0 0.0
    %5604 = vmatmul.mubr.f32.gmra.mxu0 %v5244
    %v5605 = vpop.f32.mrf.mxu0
    %v5606 = vadd.f32 %v5085, %v5605
    %v5607 = vpop.f32.mrf.mxu0
    %5608 = vmatprep.mubr.f32.mxu0 0.0
    %5609 = vmatmul.mubr.f32.gmra.mxu0 %v5247
    %v5610 = vpop.f32.mrf.mxu0
    %v5611 = vadd.f32 %v5085, %v5610
    %v5612 = vpop.f32.mrf.mxu0
    %5613 = vmatprep.mubr.f32.mxu0 0.0
    %5614 = vmatmul.mubr.f32.gmra.mxu0 %v5250
    %v5615 = vpop.f32.mrf.mxu0
    %v5616 = vadd.f32 %v5085, %v5615
    %v5617 = vpop.f32.mrf.mxu0
    %5618 = vmatprep.mubr.f32.mxu0 0.0
    %5619 = vmatmul.mubr.f32.gmra.mxu0 %v5253
    %v5620 = vpop.f32.mrf.mxu0
    %v5621 = vadd.f32 %v5085, %v5620
    %v5622 = vpop.f32.mrf.mxu0
    %5623 = vmatprep.mubr.f32.mxu0 0.0
    %5624 = vmatmul.mubr.f32.gmra.mxu0 %v5256
    %v5625 = vpop.f32.mrf.mxu0
    %v5626 = vadd.f32 %v5085, %v5625
    %v5627 = vpop.f32.mrf.mxu0
    %5628 = vmatprep.mubr.f32.mxu0 0.0
    %5629 = vmatmul.mubr.f32.gmra.mxu0 %v5259
    %v5630 = vpop.f32.mrf.mxu0
    %v5631 = vadd.f32 %v5085, %v5630
    %v5632 = vpop.f32.mrf.mxu0
    %5633 = vmatprep.mubr.f32.mxu0 0.0
    %5634 = vmatmul.mubr.f32.gmra.mxu0 %v5262
    %v5635 = vpop.f32.mrf.mxu0
    %v5636 = vadd.f32 %v5085, %v5635
    %v5637 = vpop.f32.mrf.mxu0
    %5638 = vmatprep.mubr.f32.mxu0 0.0
    %5639 = vmatmul.mubr.f32.gmra.mxu0 %v5265
    %v5640 = vpop.f32.mrf.mxu0
    %v5641 = vadd.f32 %v5085, %v5640
    %v5642 = vpop.f32.mrf.mxu0
    %5643 = vmatprep.mubr.f32.mxu0 0.0
    %5644 = vmatmul.mubr.f32.gmra.mxu0 %v5268
    %v5645 = vpop.f32.mrf.mxu0
    %v5646 = vadd.f32 %v5085, %v5645
    %v5647 = vpop.f32.mrf.mxu0
    %5648 = vmatprep.mubr.f32.mxu0 0.0
    %5649 = vmatmul.mubr.f32.gmra.mxu0 %v5271
    %v5650 = vpop.f32.mrf.mxu0
    %v5651 = vadd.f32 %v5085, %v5650
    %v5652 = vpop.f32.mrf.mxu0
    %5653 = vmatprep.mubr.f32.mxu0 0.0
    %5654 = vmatmul.mubr.f32.gmra.mxu0 %v5274
    %v5655 = vpop.f32.mrf.mxu0
    %v5656 = vadd.f32 %v5085, %v5655
    %v5657 = vpop.f32.mrf.mxu0
    %5658 = vmatprep.mubr.f32.mxu0 0.0
    %5659 = vmatmul.mubr.f32.gmra.mxu0 %v5277
    %v5660 = vpop.f32.mrf.mxu0
    %v5661 = vadd.f32 %v5085, %v5660
    %v5662 = vpop.f32.mrf.mxu0
    %5663 = vdwg.mxu0
    %v5664 = vmax.f32 %v5346, 0.0
    %v5665 = vmax.f32 %v5351, 0.0
    %v5666 = vmax.f32 %v5356, 0.0
    %v5667 = vmax.f32 %v5361, 0.0
    %v5668 = vmax.f32 %v5366, 0.0
    %v5669 = vmax.f32 %v5371, 0.0
    %v5670 = vmax.f32 %v5376, 0.0
    %v5671 = vmax.f32 %v5381, 0.0
    %v5672 = vmax.f32 %v5386, 0.0
    %v5673 = vmax.f32 %v5391, 0.0
    %v5674 = vmax.f32 %v5396, 0.0
    %v5675 = vmax.f32 %v5401, 0.0
    %v5676 = vmax.f32 %v5406, 0.0
    %v5677 = vmax.f32 %v5411, 0.0
    %v5678 = vmax.f32 %v5416, 0.0
    %v5679 = vmax.f32 %v5421, 0.0
    %v5680 = vmax.f32 %v5426, 0.0
    %v5681 = vmax.f32 %v5431, 0.0
    %v5682 = vmax.f32 %v5436, 0.0
    %v5683 = vmax.f32 %v5441, 0.0
    %v5684 = vmax.f32 %v5446, 0.0
    %v5685 = vmax.f32 %v5451, 0.0
    %v5686 = vmax.f32 %v5456, 0.0
    %v5687 = vmax.f32 %v5461, 0.0
    %v5688 = vmax.f32 %v5466, 0.0
    %v5689 = vmax.f32 %v5471, 0.0
    %v5690 = vmax.f32 %v5476, 0.0
    %v5691 = vmax.f32 %v5481, 0.0
    %v5692 = vmax.f32 %v5486, 0.0
    %v5693 = vmax.f32 %v5491, 0.0
    %v5694 = vmax.f32 %v5496, 0.0
    %v5695 = vmax.f32 %v5501, 0.0
    %v5696 = vmax.f32 %v5506, 0.0
    %v5697 = vmax.f32 %v5511, 0.0
    %v5698 = vmax.f32 %v5516, 0.0
    %v5699 = vmax.f32 %v5521, 0.0
    %v5700 = vmax.f32 %v5526, 0.0
    %v5701 = vmax.f32 %v5531, 0.0
    %v5702 = vmax.f32 %v5536, 0.0
    %v5703 = vmax.f32 %v5541, 0.0
    %v5704 = vmax.f32 %v5546, 0.0
    %v5705 = vmax.f32 %v5551, 0.0
    %v5706 = vmax.f32 %v5556, 0.0
    %v5707 = vmax.f32 %v5561, 0.0
    %v5708 = vmax.f32 %v5566, 0.0
    %v5709 = vmax.f32 %v5571, 0.0
    %v5710 = vmax.f32 %v5576, 0.0
    %v5711 = vmax.f32 %v5581, 0.0
    %v5712 = vmax.f32 %v5586, 0.0
    %v5713 = vmax.f32 %v5591, 0.0
    %v5714 = vmax.f32 %v5596, 0.0
    %v5715 = vmax.f32 %v5601, 0.0
    %v5716 = vmax.f32 %v5606, 0.0
    %v5717 = vmax.f32 %v5611, 0.0
    %v5718 = vmax.f32 %v5616, 0.0
    %v5719 = vmax.f32 %v5621, 0.0
    %v5720 = vmax.f32 %v5626, 0.0
    %v5721 = vmax.f32 %v5631, 0.0
    %v5722 = vmax.f32 %v5636, 0.0
    %v5723 = vmax.f32 %v5641, 0.0
    %v5724 = vmax.f32 %v5646, 0.0
    %v5725 = vmax.f32 %v5651, 0.0
    %v5726 = vmax.f32 %v5656, 0.0
    %v5727 = vmax.f32 %v5661, 0.0
    %5729 = vset.pattern.permute.xlu0 0
    %5730 = vperm.xlu0 %5729, %v5664
    %v5731 = vpop.permute.xlu0 %5730
    %5734 = vset.pattern.permute.xlu0 0
    %5735 = vperm.xlu0 %5734, %v5665
    %v5736 = vpop.permute.xlu0 %5735
    %5739 = vset.pattern.permute.xlu0 0
    %5740 = vperm.xlu0 %5739, %v5666
    %v5741 = vpop.permute.xlu0 %5740
    %5744 = vset.pattern.permute.xlu0 0
    %5745 = vperm.xlu0 %5744, %v5667
    %v5746 = vpop.permute.xlu0 %5745
    %5749 = vset.pattern.permute.xlu0 0
    %5750 = vperm.xlu0 %5749, %v5668
    %v5751 = vpop.permute.xlu0 %5750
    %5754 = vset.pattern.permute.xlu0 0
    %5755 = vperm.xlu0 %5754, %v5669
    %v5756 = vpop.permute.xlu0 %5755
    %5759 = vset.pattern.permute.xlu0 0
    %5760 = vperm.xlu0 %5759, %v5670
    %v5761 = vpop.permute.xlu0 %5760
    %5764 = vset.pattern.permute.xlu0 0
    %5765 = vperm.xlu0 %5764, %v5671
    %v5766 = vpop.permute.xlu0 %5765
    %5769 = vset.pattern.permute.xlu0 0
    %5770 = vperm.xlu0 %5769, %v5672
    %v5771 = vpop.permute.xlu0 %5770
    %5774 = vset.pattern.permute.xlu0 0
    %5775 = vperm.xlu0 %5774, %v5673
    %v5776 = vpop.permute.xlu0 %5775
    %5779 = vset.pattern.permute.xlu0 0
    %5780 = vperm.xlu0 %5779, %v5674
    %v5781 = vpop.permute.xlu0 %5780
    %5784 = vset.pattern.permute.xlu0 0
    %5785 = vperm.xlu0 %5784, %v5675
    %v5786 = vpop.permute.xlu0 %5785
    %5789 = vset.pattern.permute.xlu0 0
    %5790 = vperm.xlu0 %5789, %v5676
    %v5791 = vpop.permute.xlu0 %5790
    %5794 = vset.pattern.permute.xlu0 0
    %5795 = vperm.xlu0 %5794, %v5677
    %v5796 = vpop.permute.xlu0 %5795
    %5799 = vset.pattern.permute.xlu0 0
    %5800 = vperm.xlu0 %5799, %v5678
    %v5801 = vpop.permute.xlu0 %5800
    %5804 = vset.pattern.permute.xlu0 0
    %5805 = vperm.xlu0 %5804, %v5679
    %v5806 = vpop.permute.xlu0 %5805
    %5809 = vset.pattern.permute.xlu0 0
    %5810 = vperm.xlu0 %5809, %v5680
    %v5811 = vpop.permute.xlu0 %5810
    %5814 = vset.pattern.permute.xlu0 0
    %5815 = vperm.xlu0 %5814, %v5681
    %v5816 = vpop.permute.xlu0 %5815
    %5819 = vset.pattern.permute.xlu0 0
    %5820 = vperm.xlu0 %5819, %v5682
    %v5821 = vpop.permute.xlu0 %5820
    %5824 = vset.pattern.permute.xlu0 0
    %5825 = vperm.xlu0 %5824, %v5683
    %v5826 = vpop.permute.xlu0 %5825
    %5829 = vset.pattern.permute.xlu0 0
    %5830 = vperm.xlu0 %5829, %v5684
    %v5831 = vpop.permute.xlu0 %5830
    %5834 = vset.pattern.permute.xlu0 0
    %5835 = vperm.xlu0 %5834, %v5685
    %v5836 = vpop.permute.xlu0 %5835
    %5839 = vset.pattern.permute.xlu0 0
    %5840 = vperm.xlu0 %5839, %v5686
    %v5841 = vpop.permute.xlu0 %5840
    %5844 = vset.pattern.permute.xlu0 0
    %5845 = vperm.xlu0 %5844, %v5687
    %v5846 = vpop.permute.xlu0 %5845
    %5849 = vset.pattern.permute.xlu0 0
    %5850 = vperm.xlu0 %5849, %v5688
    %v5851 = vpop.permute.xlu0 %5850
    %5854 = vset.pattern.permute.xlu0 0
    %5855 = vperm.xlu0 %5854, %v5689
    %v5856 = vpop.permute.xlu0 %5855
    %5859 = vset.pattern.permute.xlu0 0
    %5860 = vperm.xlu0 %5859, %v5690
    %v5861 = vpop.permute.xlu0 %5860
    %5864 = vset.pattern.permute.xlu0 0
    %5865 = vperm.xlu0 %5864, %v5691
    %v5866 = vpop.permute.xlu0 %5865
    %5869 = vset.pattern.permute.xlu0 0
    %5870 = vperm.xlu0 %5869, %v5692
    %v5871 = vpop.permute.xlu0 %5870
    %5874 = vset.pattern.permute.xlu0 0
    %5875 = vperm.xlu0 %5874, %v5693
    %v5876 = vpop.permute.xlu0 %5875
    %5879 = vset.pattern.permute.xlu0 0
    %5880 = vperm.xlu0 %5879, %v5694
    %v5881 = vpop.permute.xlu0 %5880
    %5884 = vset.pattern.permute.xlu0 0
    %5885 = vperm.xlu0 %5884, %v5695
    %v5886 = vpop.permute.xlu0 %5885
    %5889 = vset.pattern.permute.xlu0 0
    %5890 = vperm.xlu0 %5889, %v5696
    %v5891 = vpop.permute.xlu0 %5890
    %5894 = vset.pattern.permute.xlu0 0
    %5895 = vperm.xlu0 %5894, %v5697
    %v5896 = vpop.permute.xlu0 %5895
    %5899 = vset.pattern.permute.xlu0 0
    %5900 = vperm.xlu0 %5899, %v5698
    %v5901 = vpop.permute.xlu0 %5900
    %5904 = vset.pattern.permute.xlu0 0
    %5905 = vperm.xlu0 %5904, %v5699
    %v5906 = vpop.permute.xlu0 %5905
    %5909 = vset.pattern.permute.xlu0 0
    %5910 = vperm.xlu0 %5909, %v5700
    %v5911 = vpop.permute.xlu0 %5910
    %5914 = vset.pattern.permute.xlu0 0
    %5915 = vperm.xlu0 %5914, %v5701
    %v5916 = vpop.permute.xlu0 %5915
    %5919 = vset.pattern.permute.xlu0 0
    %5920 = vperm.xlu0 %5919, %v5702
    %v5921 = vpop.permute.xlu0 %5920
    %5924 = vset.pattern.permute.xlu0 0
    %5925 = vperm.xlu0 %5924, %v5703
    %v5926 = vpop.permute.xlu0 %5925
    %5929 = vset.pattern.permute.xlu0 0
    %5930 = vperm.xlu0 %5929, %v5704
    %v5931 = vpop.permute.xlu0 %5930
    %5934 = vset.pattern.permute.xlu0 0
    %5935 = vperm.xlu0 %5934, %v5705
    %v5936 = vpop.permute.xlu0 %5935
    %5939 = vset.pattern.permute.xlu0 0
    %5940 = vperm.xlu0 %5939, %v5706
    %v5941 = vpop.permute.xlu0 %5940
    %5944 = vset.pattern.permute.xlu0 0
    %5945 = vperm.xlu0 %5944, %v5707
    %v5946 = vpop.permute.xlu0 %5945
    %5949 = vset.pattern.permute.xlu0 0
    %5950 = vperm.xlu0 %5949, %v5708
    %v5951 = vpop.permute.xlu0 %5950
    %5954 = vset.pattern.permute.xlu0 0
    %5955 = vperm.xlu0 %5954, %v5709
    %v5956 = vpop.permute.xlu0 %5955
    %5959 = vset.pattern.permute.xlu0 0
    %5960 = vperm.xlu0 %5959, %v5710
    %v5961 = vpop.permute.xlu0 %5960
    %5964 = vset.pattern.permute.xlu0 0
    %5965 = vperm.xlu0 %5964, %v5711
    %v5966 = vpop.permute.xlu0 %5965
    %5969 = vset.pattern.permute.xlu0 0
    %5970 = vperm.xlu0 %5969, %v5712
    %v5971 = vpop.permute.xlu0 %5970
    %5974 = vset.pattern.permute.xlu0 0
    %5975 = vperm.xlu0 %5974, %v5713
    %v5976 = vpop.permute.xlu0 %5975
    %5979 = vset.pattern.permute.xlu0 0
    %5980 = vperm.xlu0 %5979, %v5714
    %v5981 = vpop.permute.xlu0 %5980
    %5984 = vset.pattern.permute.xlu0 0
    %5985 = vperm.xlu0 %5984, %v5715
    %v5986 = vpop.permute.xlu0 %5985
    %5989 = vset.pattern.permute.xlu0 0
    %5990 = vperm.xlu0 %5989, %v5716
    %v5991 = vpop.permute.xlu0 %5990
    %5994 = vset.pattern.permute.xlu0 0
    %5995 = vperm.xlu0 %5994, %v5717
    %v5996 = vpop.permute.xlu0 %5995
    %5999 = vset.pattern.permute.xlu0 0
    %6000 = vperm.xlu0 %5999, %v5718
    %v6001 = vpop.permute.xlu0 %6000
    %6004 = vset.pattern.permute.xlu0 0
    %6005 = vperm.xlu0 %6004, %v5719
    %v6006 = vpop.permute.xlu0 %6005
    %6009 = vset.pattern.permute.xlu0 0
    %6010 = vperm.xlu0 %6009, %v5720
    %v6011 = vpop.permute.xlu0 %6010
    %6014 = vset.pattern.permute.xlu0 0
    %6015 = vperm.xlu0 %6014, %v5721
    %v6016 = vpop.permute.xlu0 %6015
    %6019 = vset.pattern.permute.xlu0 0
    %6020 = vperm.xlu0 %6019, %v5722
    %v6021 = vpop.permute.xlu0 %6020
    %6024 = vset.pattern.permute.xlu0 0
    %6025 = vperm.xlu0 %6024, %v5723
    %v6026 = vpop.permute.xlu0 %6025
    %6029 = vset.pattern.permute.xlu0 0
    %6030 = vperm.xlu0 %6029, %v5724
    %v6031 = vpop.permute.xlu0 %6030
    %6034 = vset.pattern.permute.xlu0 0
    %6035 = vperm.xlu0 %6034, %v5725
    %v6036 = vpop.permute.xlu0 %6035
    %6039 = vset.pattern.permute.xlu0 0
    %6040 = vperm.xlu0 %6039, %v5726
    %v6041 = vpop.permute.xlu0 %6040
    %6044 = vset.pattern.permute.xlu0 0
    %6045 = vperm.xlu0 %6044, %v5727
    %v6046 = vpop.permute.xlu0 %6045
    %v6048 = vmul.f32 %v5731, %v299
    %v6049 = vmul.f32 %v5736, %v300
    %v6050 = vmul.f32 %v5741, %v301
    %v6051 = vmul.f32 %v5746, %v302
    %v6052 = vmul.f32 %v5751, %v303
    %v6053 = vmul.f32 %v5756, %v304
    %v6054 = vmul.f32 %v5761, %v305
    %v6055 = vmul.f32 %v5766, %v306
    %v6056 = vmul.f32 %v5771, %v307
    %v6057 = vmul.f32 %v5776, %v308
    %v6058 = vmul.f32 %v5781, %v309
    %v6059 = vmul.f32 %v5786, %v310
    %v6060 = vmul.f32 %v5791, %v311
    %v6061 = vmul.f32 %v5796, %v312
    %v6062 = vmul.f32 %v5801, %v313
    %v6063 = vmul.f32 %v5806, %v314
    %v6064 = vmul.f32 %v5811, %v315
    %v6065 = vmul.f32 %v5816, %v316
    %v6066 = vmul.f32 %v5821, %v317
    %v6067 = vmul.f32 %v5826, %v318
    %v6068 = vmul.f32 %v5831, %v319
    %v6069 = vmul.f32 %v5836, %v320
    %v6070 = vmul.f32 %v5841, %v321
    %v6071 = vmul.f32 %v5846, %v322
    %v6072 = vmul.f32 %v5851, %v323
    %v6073 = vmul.f32 %v5856, %v324
    %v6074 = vmul.f32 %v5861, %v325
    %v6075 = vmul.f32 %v5866, %v326
    %v6076 = vmul.f32 %v5871, %v327
    %v6077 = vmul.f32 %v5876, %v328
    %v6078 = vmul.f32 %v5881, %v329
    %v6079 = vmul.f32 %v5886, %v330
    %v6080 = vmul.f32 %v5891, %v331
    %v6081 = vmul.f32 %v5896, %v332
    %v6082 = vmul.f32 %v5901, %v333
    %v6083 = vmul.f32 %v5906, %v334
    %v6084 = vmul.f32 %v5911, %v335
    %v6085 = vmul.f32 %v5916, %v336
    %v6086 = vmul.f32 %v5921, %v337
    %v6087 = vmul.f32 %v5926, %v338
    %v6088 = vmul.f32 %v5931, %v339
    %v6089 = vmul.f32 %v5936, %v340
    %v6090 = vmul.f32 %v5941, %v341
    %v6091 = vmul.f32 %v5946, %v342
    %v6092 = vmul.f32 %v5951, %v343
    %v6093 = vmul.f32 %v5956, %v344
    %v6094 = vmul.f32 %v5961, %v345
    %v6095 = vmul.f32 %v5966, %v346
    %v6096 = vmul.f32 %v5971, %v347
    %v6097 = vmul.f32 %v5976, %v348
    %v6098 = vmul.f32 %v5981, %v349
    %v6099 = vmul.f32 %v5986, %v350
    %v6100 = vmul.f32 %v5991, %v351
    %v6101 = vmul.f32 %v5996, %v352
    %v6102 = vmul.f32 %v6001, %v353
    %v6103 = vmul.f32 %v6006, %v354
    %v6104 = vmul.f32 %v6011, %v355
    %v6105 = vmul.f32 %v6016, %v356
    %v6106 = vmul.f32 %v6021, %v357
    %v6107 = vmul.f32 %v6026, %v358
    %v6108 = vmul.f32 %v6031, %v359
    %v6109 = vmul.f32 %v6036, %v360
    %v6110 = vmul.f32 %v6041, %v361
    %v6111 = vmul.f32 %v6046, %v362
    %6112 = vmatprep.subr.mxu0 0.0
    %6113 = vmatpush1.msra.mxu0 %v6063
    %6114 = vmatprep.subr.mxu0 0.0
    %6115 = vmatpush1.msra.mxu0 %v6062
    %6116 = vmatprep.subr.mxu0 0.0
    %6117 = vmatpush1.msra.mxu0 %v6061
    %6118 = vmatprep.subr.mxu0 0.0
    %6119 = vmatpush1.msra.mxu0 %v6060
    %6120 = vmatprep.subr.mxu0 0.0
    %6121 = vmatpush1.msra.mxu0 %v6059
    %6122 = vmatprep.subr.mxu0 0.0
    %6123 = vmatpush1.msra.mxu0 %v6058
    %6124 = vmatprep.subr.mxu0 0.0
    %6125 = vmatpush1.msra.mxu0 %v6057
    %6126 = vmatprep.subr.mxu0 0.0
    %6127 = vmatpush1.msra.mxu0 %v6056
    %6128 = vmatprep.subr.mxu0 0.0
    %6129 = vmatpush1.msra.mxu0 %v6055
    %6130 = vmatprep.subr.mxu0 0.0
    %6131 = vmatpush1.msra.mxu0 %v6054
    %6132 = vmatprep.subr.mxu0 0.0
    %6133 = vmatpush1.msra.mxu0 %v6053
    %6134 = vmatprep.subr.mxu0 0.0
    %6135 = vmatpush1.msra.mxu0 %v6052
    %6136 = vmatprep.subr.mxu0 0.0
    %6137 = vmatpush1.msra.mxu0 %v6051
    %6138 = vmatprep.subr.mxu0 0.0
    %6139 = vmatpush1.msra.mxu0 %v6050
    %6140 = vmatprep.subr.mxu0 0.0
    %6141 = vmatpush1.msra.mxu0 %v6049
    %6142 = vmatprep.subr.mxu0 0.0
    %6143 = vmatpush1.msra.mxu0 %v6048
    %6144 = vmatprep.subr.mxu0 0.0
    %6145 = vmatpush2.msra.mxu0 %v6079
    %6146 = vmatprep.subr.mxu0 0.0
    %6147 = vmatpush2.msra.mxu0 %v6078
    %6148 = vmatprep.subr.mxu0 0.0
    %6149 = vmatpush2.msra.mxu0 %v6077
    %6150 = vmatprep.subr.mxu0 0.0
    %6151 = vmatpush2.msra.mxu0 %v6076
    %6152 = vmatprep.subr.mxu0 0.0
    %6153 = vmatpush2.msra.mxu0 %v6075
    %6154 = vmatprep.subr.mxu0 0.0
    %6155 = vmatpush2.msra.mxu0 %v6074
    %6156 = vmatprep.subr.mxu0 0.0
    %6157 = vmatpush2.msra.mxu0 %v6073
    %6158 = vmatprep.subr.mxu0 0.0
    %6159 = vmatpush2.msra.mxu0 %v6072
    %6160 = vmatprep.subr.mxu0 0.0
    %6161 = vmatpush2.msra.mxu0 %v6071
    %6162 = vmatprep.subr.mxu0 0.0
    %6163 = vmatpush2.msra.mxu0 %v6070
    %6164 = vmatprep.subr.mxu0 0.0
    %6165 = vmatpush2.msra.mxu0 %v6069
    %6166 = vmatprep.subr.mxu0 0.0
    %6167 = vmatpush2.msra.mxu0 %v6068
    %6168 = vmatprep.subr.mxu0 0.0
    %6169 = vmatpush2.msra.mxu0 %v6067
    %6170 = vmatprep.subr.mxu0 0.0
    %6171 = vmatpush2.msra.mxu0 %v6066
    %6172 = vmatprep.subr.mxu0 0.0
    %6173 = vmatpush2.msra.mxu0 %v6065
    %6174 = vmatprep.subr.mxu0 0.0
    %6175 = vmatpush2.msra.mxu0 %v6064
    %6176 = vmatprep.mubr.f32.mxu0 %v105
    %6177 = vmatmul.mubr.f32.gmra.mxu0 %v104
    %v6178 = vpop.f32.mrf.mxu0
    %v6179 = vadd.f32 0.0, %v6178
    %v6180 = vpop.f32.mrf.mxu0
    %6181 = vdwg.mxu0
    %6182 = vmatprep.subr.mxu0 0.0
    %6183 = vmatpush1.msra.mxu0 %v6095
    %6184 = vmatprep.subr.mxu0 0.0
    %6185 = vmatpush1.msra.mxu0 %v6094
    %6186 = vmatprep.subr.mxu0 0.0
    %6187 = vmatpush1.msra.mxu0 %v6093
    %6188 = vmatprep.subr.mxu0 0.0
    %6189 = vmatpush1.msra.mxu0 %v6092
    %6190 = vmatprep.subr.mxu0 0.0
    %6191 = vmatpush1.msra.mxu0 %v6091
    %6192 = vmatprep.subr.mxu0 0.0
    %6193 = vmatpush1.msra.mxu0 %v6090
    %6194 = vmatprep.subr.mxu0 0.0
    %6195 = vmatpush1.msra.mxu0 %v6089
    %6196 = vmatprep.subr.mxu0 0.0
    %6197 = vmatpush1.msra.mxu0 %v6088
    %6198 = vmatprep.subr.mxu0 0.0
    %6199 = vmatpush1.msra.mxu0 %v6087
    %6200 = vmatprep.subr.mxu0 0.0
    %6201 = vmatpush1.msra.mxu0 %v6086
    %6202 = vmatprep.subr.mxu0 0.0
    %6203 = vmatpush1.msra.mxu0 %v6085
    %6204 = vmatprep.subr.mxu0 0.0
    %6205 = vmatpush1.msra.mxu0 %v6084
    %6206 = vmatprep.subr.mxu0 0.0
    %6207 = vmatpush1.msra.mxu0 %v6083
    %6208 = vmatprep.subr.mxu0 0.0
    %6209 = vmatpush1.msra.mxu0 %v6082
    %6210 = vmatprep.subr.mxu0 0.0
    %6211 = vmatpush1.msra.mxu0 %v6081
    %6212 = vmatprep.subr.mxu0 0.0
    %6213 = vmatpush1.msra.mxu0 %v6080
    %6214 = vmatprep.subr.mxu0 0.0
    %6215 = vmatpush2.msra.mxu0 %v6111
    %6216 = vmatprep.subr.mxu0 0.0
    %6217 = vmatpush2.msra.mxu0 %v6110
    %6218 = vmatprep.subr.mxu0 0.0
    %6219 = vmatpush2.msra.mxu0 %v6109
    %6220 = vmatprep.subr.mxu0 0.0
    %6221 = vmatpush2.msra.mxu0 %v6108
    %6222 = vmatprep.subr.mxu0 0.0
    %6223 = vmatpush2.msra.mxu0 %v6107
    %6224 = vmatprep.subr.mxu0 0.0
    %6225 = vmatpush2.msra.mxu0 %v6106
    %6226 = vmatprep.subr.mxu0 0.0
    %6227 = vmatpush2.msra.mxu0 %v6105
    %6228 = vmatprep.subr.mxu0 0.0
    %6229 = vmatpush2.msra.mxu0 %v6104
    %6230 = vmatprep.subr.mxu0 0.0
    %6231 = vmatpush2.msra.mxu0 %v6103
    %6232 = vmatprep.subr.mxu0 0.0
    %6233 = vmatpush2.msra.mxu0 %v6102
    %6234 = vmatprep.subr.mxu0 0.0
    %6235 = vmatpush2.msra.mxu0 %v6101
    %6236 = vmatprep.subr.mxu0 0.0
    %6237 = vmatpush2.msra.mxu0 %v6100
    %6238 = vmatprep.subr.mxu0 0.0
    %6239 = vmatpush2.msra.mxu0 %v6099
    %6240 = vmatprep.subr.mxu0 0.0
    %6241 = vmatpush2.msra.mxu0 %v6098
    %6242 = vmatprep.subr.mxu0 0.0
    %6243 = vmatpush2.msra.mxu0 %v6097
    %6244 = vmatprep.subr.mxu0 0.0
    %6245 = vmatpush2.msra.mxu0 %v6096
    %6246 = vmatprep.mubr.f32.mxu0 %v107
    %6247 = vmatmul.mubr.f32.gmra.mxu0 %v106
    %v6248 = vpop.f32.mrf.mxu0
    %v6249 = vadd.f32 %v6179, %v6248
    %v6250 = vpop.f32.mrf.mxu0
    %6251 = vdwg.mxu0
    %v6253 = vsel %vm1099, %v6249, 0
    %6255 = vmatprep.subr.mxu0 0.0
    %6256 = vmatpush1.msra.mxu0 0.0
    %6257 = vmatprep.subr.mxu0 0.0
    %6258 = vmatpush1.msra.mxu0 0.0
    %6259 = vmatprep.subr.mxu0 0.0
    %6260 = vmatpush1.msra.mxu0 0.0
    %6261 = vmatprep.subr.mxu0 0.0
    %6262 = vmatpush1.msra.mxu0 0.0
    %6263 = vmatprep.subr.mxu0 0.0
    %6264 = vmatpush1.msra.mxu0 0.0
    %6265 = vmatprep.subr.mxu0 0.0
    %6266 = vmatpush1.msra.mxu0 0.0
    %6267 = vmatprep.subr.mxu0 0.0
    %6268 = vmatpush1.msra.mxu0 0.0
    %6269 = vmatprep.subr.mxu0 0.0
    %6270 = vmatpush1.msra.mxu0 0.0
    %6271 = vmatprep.subr.mxu0 0.0
    %6272 = vmatpush1.msra.mxu0 %v4260
    %6273 = vmatprep.subr.mxu0 0.0
    %6274 = vmatpush1.msra.mxu0 %v4259
    %6275 = vmatprep.subr.mxu0 0.0
    %6276 = vmatpush1.msra.mxu0 %v4258
    %6277 = vmatprep.subr.mxu0 0.0
    %6278 = vmatpush1.msra.mxu0 %v4257
    %6279 = vmatprep.subr.mxu0 0.0
    %6280 = vmatpush1.msra.mxu0 %v4256
    %6281 = vmatprep.subr.mxu0 0.0
    %6282 = vmatpush1.msra.mxu0 %v4255
    %6283 = vmatprep.subr.mxu0 0.0
    %6284 = vmatpush1.msra.mxu0 %v4254
    %6285 = vmatprep.subr.mxu0 0.0
    %6286 = vmatpush1.msra.mxu0 %v4253
    %6287 = vmatprep.subr.mxu0 0.0
    %6288 = vmatpush2.msra.mxu0 0.0
    %6289 = vmatprep.subr.mxu0 0.0
    %6290 = vmatpush2.msra.mxu0 0.0
    %6291 = vmatprep.subr.mxu0 0.0
    %6292 = vmatpush2.msra.mxu0 0.0
    %6293 = vmatprep.subr.mxu0 0.0
    %6294 = vmatpush2.msra.mxu0 0.0
    %6295 = vmatprep.subr.mxu0 0.0
    %6296 = vmatpush2.msra.mxu0 0.0
    %6297 = vmatprep.subr.mxu0 0.0
    %6298 = vmatpush2.msra.mxu0 0.0
    %6299 = vmatprep.subr.mxu0 0.0
    %6300 = vmatpush2.msra.mxu0 0.0
    %6301 = vmatprep.subr.mxu0 0.0
    %6302 = vmatpush2.msra.mxu0 0.0
    %6303 = vmatprep.subr.mxu0 0.0
    %6304 = vmatpush2.msra.mxu0 0.0
    %6305 = vmatprep.subr.mxu0 0.0
    %6306 = vmatpush2.msra.mxu0 0.0
    %6307 = vmatprep.subr.mxu0 0.0
    %6308 = vmatpush2.msra.mxu0 0.0
    %6309 = vmatprep.subr.mxu0 0.0
    %6310 = vmatpush2.msra.mxu0 0.0
    %6311 = vmatprep.subr.mxu0 0.0
    %6312 = vmatpush2.msra.mxu0 0.0
    %6313 = vmatprep.subr.mxu0 0.0
    %6314 = vmatpush2.msra.mxu0 0.0
    %6315 = vmatprep.subr.mxu0 0.0
    %6316 = vmatpush2.msra.mxu0 0.0
    %6317 = vmatprep.subr.mxu0 0.0
    %6318 = vmatpush2.msra.mxu0 0.0
    %6319 = vmatprep.mubr.f32.mxu0 0.0
    %6320 = vmatmul.mubr.f32.gmra.mxu0 %v6253
    %v6321 = vpop.f32.mrf.mxu0
    %v6322 = vadd.f32 %v4266, %v6321
    %v6323 = vpop.f32.mrf.mxu0
    %6324 = vdwg.mxu0
    %v6325 = vmax.f32 %v6322, 0.0
    %v6326 = vld [vmem:[%s19] sm:$0xff]
    %v6327 = vld [vmem:[%s19 + $0x8] sm:$0xff]
    %v6328 = vld [vmem:[%s19 + $0x10] sm:$0xff]
    %v6329 = vld [vmem:[%s19 + $0x18] sm:$0xff]
    %v6330 = vld [vmem:[%s19 + $0x20] sm:$0xff]
    %v6331 = vld [vmem:[%s19 + $0x28] sm:$0xff]
    %v6332 = vld [vmem:[%s19 + $0x30] sm:$0xff]
    %v6333 = vld [vmem:[%s19 + $0x38] sm:$0xff]
    %v6334 = vld [vmem:[%s19 + $0x40] sm:$0xff]
    %v6335 = vld [vmem:[%s19 + $0x48] sm:$0xff]
    %v6336 = vld [vmem:[%s19 + $0x50] sm:$0xff]
    %v6337 = vld [vmem:[%s19 + $0x58] sm:$0xff]
    %v6338 = vld [vmem:[%s19 + $0x60] sm:$0xff]
    %v6339 = vld [vmem:[%s19 + $0x68] sm:$0xff]
    %v6340 = vld [vmem:[%s19 + $0x70] sm:$0xff]
    %v6341 = vld [vmem:[%s19 + $0x78] sm:$0xff]
    %v6343 = vsel %vm1099, %v4341, 0
    %6345 = vmatprep.subr.mxu0 0.0
    %6346 = vmatpush1.msra.mxu0 0.0
    %6347 = vmatprep.subr.mxu0 0.0
    %6348 = vmatpush1.msra.mxu0 0.0
    %6349 = vmatprep.subr.mxu0 0.0
    %6350 = vmatpush1.msra.mxu0 0.0
    %6351 = vmatprep.subr.mxu0 0.0
    %6352 = vmatpush1.msra.mxu0 0.0
    %6353 = vmatprep.subr.mxu0 0.0
    %6354 = vmatpush1.msra.mxu0 0.0
    %6355 = vmatprep.subr.mxu0 0.0
    %6356 = vmatpush1.msra.mxu0 0.0
    %6357 = vmatprep.subr.mxu0 0.0
    %6358 = vmatpush1.msra.mxu0 0.0
    %6359 = vmatprep.subr.mxu0 0.0
    %6360 = vmatpush1.msra.mxu0 0.0
    %6361 = vmatprep.subr.mxu0 0.0
    %6362 = vmatpush1.msra.mxu0 %v6341
    %6363 = vmatprep.subr.mxu0 0.0
    %6364 = vmatpush1.msra.mxu0 %v6340
    %6365 = vmatprep.subr.mxu0 0.0
    %6366 = vmatpush1.msra.mxu0 %v6339
    %6367 = vmatprep.subr.mxu0 0.0
    %6368 = vmatpush1.msra.mxu0 %v6338
    %6369 = vmatprep.subr.mxu0 0.0
    %6370 = vmatpush1.msra.mxu0 %v6337
    %6371 = vmatprep.subr.mxu0 0.0
    %6372 = vmatpush1.msra.mxu0 %v6336
    %6373 = vmatprep.subr.mxu0 0.0
    %6374 = vmatpush1.msra.mxu0 %v6335
    %6375 = vmatprep.subr.mxu0 0.0
    %6376 = vmatpush1.msra.mxu0 %v6334
    %6377 = vmatprep.subr.mxu0 0.0
    %6378 = vmatpush2.msra.mxu0 0.0
    %6379 = vmatprep.subr.mxu0 0.0
    %6380 = vmatpush2.msra.mxu0 0.0
    %6381 = vmatprep.subr.mxu0 0.0
    %6382 = vmatpush2.msra.mxu0 0.0
    %6383 = vmatprep.subr.mxu0 0.0
    %6384 = vmatpush2.msra.mxu0 0.0
    %6385 = vmatprep.subr.mxu0 0.0
    %6386 = vmatpush2.msra.mxu0 0.0
    %6387 = vmatprep.subr.mxu0 0.0
    %6388 = vmatpush2.msra.mxu0 0.0
    %6389 = vmatprep.subr.mxu0 0.0
    %6390 = vmatpush2.msra.mxu0 0.0
    %6391 = vmatprep.subr.mxu0 0.0
    %6392 = vmatpush2.msra.mxu0 0.0
    %6393 = vmatprep.subr.mxu0 0.0
    %6394 = vmatpush2.msra.mxu0 0.0
    %6395 = vmatprep.subr.mxu0 0.0
    %6396 = vmatpush2.msra.mxu0 0.0
    %6397 = vmatprep.subr.mxu0 0.0
    %6398 = vmatpush2.msra.mxu0 0.0
    %6399 = vmatprep.subr.mxu0 0.0
    %6400 = vmatpush2.msra.mxu0 0.0
    %6401 = vmatprep.subr.mxu0 0.0
    %6402 = vmatpush2.msra.mxu0 0.0
    %6403 = vmatprep.subr.mxu0 0.0
    %6404 = vmatpush2.msra.mxu0 0.0
    %6405 = vmatprep.subr.mxu0 0.0
    %6406 = vmatpush2.msra.mxu0 0.0
    %6407 = vmatprep.subr.mxu0 0.0
    %6408 = vmatpush2.msra.mxu0 0.0
    %6409 = vmatprep.mubr.f32.mxu0 0.0
    %6410 = vmatmul.mubr.f32.gmra.mxu0 %v6343
    %v6411 = vpop.f32.mrf.mxu0
    %v6412 = vadd.f32 0.0, %v6411
    %v6413 = vpop.f32.mrf.mxu0
    %6414 = vdwg.mxu0
    %v6416 = vsel %vm1099, %v2353, 0
    %6418 = vmatprep.subr.mxu0 0.0
    %6419 = vmatpush1.msra.mxu0 0.0
    %6420 = vmatprep.subr.mxu0 0.0
    %6421 = vmatpush1.msra.mxu0 0.0
    %6422 = vmatprep.subr.mxu0 0.0
    %6423 = vmatpush1.msra.mxu0 0.0
    %6424 = vmatprep.subr.mxu0 0.0
    %6425 = vmatpush1.msra.mxu0 0.0
    %6426 = vmatprep.subr.mxu0 0.0
    %6427 = vmatpush1.msra.mxu0 0.0
    %6428 = vmatprep.subr.mxu0 0.0
    %6429 = vmatpush1.msra.mxu0 0.0
    %6430 = vmatprep.subr.mxu0 0.0
    %6431 = vmatpush1.msra.mxu0 0.0
    %6432 = vmatprep.subr.mxu0 0.0
    %6433 = vmatpush1.msra.mxu0 0.0
    %6434 = vmatprep.subr.mxu0 0.0
    %6435 = vmatpush1.msra.mxu0 %v6333
    %6436 = vmatprep.subr.mxu0 0.0
    %6437 = vmatpush1.msra.mxu0 %v6332
    %6438 = vmatprep.subr.mxu0 0.0
    %6439 = vmatpush1.msra.mxu0 %v6331
    %6440 = vmatprep.subr.mxu0 0.0
    %6441 = vmatpush1.msra.mxu0 %v6330
    %6442 = vmatprep.subr.mxu0 0.0
    %6443 = vmatpush1.msra.mxu0 %v6329
    %6444 = vmatprep.subr.mxu0 0.0
    %6445 = vmatpush1.msra.mxu0 %v6328
    %6446 = vmatprep.subr.mxu0 0.0
    %6447 = vmatpush1.msra.mxu0 %v6327
    %6448 = vmatprep.subr.mxu0 0.0
    %6449 = vmatpush1.msra.mxu0 %v6326
    %6450 = vmatprep.subr.mxu0 0.0
    %6451 = vmatpush2.msra.mxu0 0.0
    %6452 = vmatprep.subr.mxu0 0.0
    %6453 = vmatpush2.msra.mxu0 0.0
    %6454 = vmatprep.subr.mxu0 0.0
    %6455 = vmatpush2.msra.mxu0 0.0
    %6456 = vmatprep.subr.mxu0 0.0
    %6457 = vmatpush2.msra.mxu0 0.0
    %6458 = vmatprep.subr.mxu0 0.0
    %6459 = vmatpush2.msra.mxu0 0.0
    %6460 = vmatprep.subr.mxu0 0.0
    %6461 = vmatpush2.msra.mxu0 0.0
    %6462 = vmatprep.subr.mxu0 0.0
    %6463 = vmatpush2.msra.mxu0 0.0
    %6464 = vmatprep.subr.mxu0 0.0
    %6465 = vmatpush2.msra.mxu0 0.0
    %6466 = vmatprep.subr.mxu0 0.0
    %6467 = vmatpush2.msra.mxu0 0.0
    %6468 = vmatprep.subr.mxu0 0.0
    %6469 = vmatpush2.msra.mxu0 0.0
    %6470 = vmatprep.subr.mxu0 0.0
    %6471 = vmatpush2.msra.mxu0 0.0
    %6472 = vmatprep.subr.mxu0 0.0
    %6473 = vmatpush2.msra.mxu0 0.0
    %6474 = vmatprep.subr.mxu0 0.0
    %6475 = vmatpush2.msra.mxu0 0.0
    %6476 = vmatprep.subr.mxu0 0.0
    %6477 = vmatpush2.msra.mxu0 0.0
    %6478 = vmatprep.subr.mxu0 0.0
    %6479 = vmatpush2.msra.mxu0 0.0
    %6480 = vmatprep.subr.mxu0 0.0
    %6481 = vmatpush2.msra.mxu0 0.0
    %6482 = vmatprep.mubr.f32.mxu0 0.0
    %6483 = vmatmul.mubr.f32.gmra.mxu0 %v6416
    %v6484 = vpop.f32.mrf.mxu0
    %v6485 = vadd.f32 %v6412, %v6484
    %v6486 = vpop.f32.mrf.mxu0
    %6487 = vdwg.mxu0
    %v6488 = vld [vmem:[%s19 + $0x80] sm:$0xff]
    %v6489 = vld [vmem:[%s19 + $0x88] sm:$0xff]
    %v6490 = vld [vmem:[%s19 + $0x90] sm:$0xff]
    %v6491 = vld [vmem:[%s19 + $0x98] sm:$0xff]
    %v6492 = vld [vmem:[%s19 + $0xa0] sm:$0xff]
    %v6493 = vld [vmem:[%s19 + $0xa8] sm:$0xff]
    %v6494 = vld [vmem:[%s19 + $0xb0] sm:$0xff]
    %v6495 = vld [vmem:[%s19 + $0xb8] sm:$0xff]
    %v6497 = vsel %vm1099, %v6325, 0
    %6499 = vmatprep.subr.mxu0 0.0
    %6500 = vmatpush1.msra.mxu0 0.0
    %6501 = vmatprep.subr.mxu0 0.0
    %6502 = vmatpush1.msra.mxu0 0.0
    %6503 = vmatprep.subr.mxu0 0.0
    %6504 = vmatpush1.msra.mxu0 0.0
    %6505 = vmatprep.subr.mxu0 0.0
    %6506 = vmatpush1.msra.mxu0 0.0
    %6507 = vmatprep.subr.mxu0 0.0
    %6508 = vmatpush1.msra.mxu0 0.0
    %6509 = vmatprep.subr.mxu0 0.0
    %6510 = vmatpush1.msra.mxu0 0.0
    %6511 = vmatprep.subr.mxu0 0.0
    %6512 = vmatpush1.msra.mxu0 0.0
    %6513 = vmatprep.subr.mxu0 0.0
    %6514 = vmatpush1.msra.mxu0 0.0
    %6515 = vmatprep.subr.mxu0 0.0
    %6516 = vmatpush1.msra.mxu0 %v6495
    %6517 = vmatprep.subr.mxu0 0.0
    %6518 = vmatpush1.msra.mxu0 %v6494
    %6519 = vmatprep.subr.mxu0 0.0
    %6520 = vmatpush1.msra.mxu0 %v6493
    %6521 = vmatprep.subr.mxu0 0.0
    %6522 = vmatpush1.msra.mxu0 %v6492
    %6523 = vmatprep.subr.mxu0 0.0
    %6524 = vmatpush1.msra.mxu0 %v6491
    %6525 = vmatprep.subr.mxu0 0.0
    %6526 = vmatpush1.msra.mxu0 %v6490
    %6527 = vmatprep.subr.mxu0 0.0
    %6528 = vmatpush1.msra.mxu0 %v6489
    %6529 = vmatprep.subr.mxu0 0.0
    %6530 = vmatpush1.msra.mxu0 %v6488
    %6531 = vmatprep.subr.mxu0 0.0
    %6532 = vmatpush2.msra.mxu0 0.0
    %6533 = vmatprep.subr.mxu0 0.0
    %6534 = vmatpush2.msra.mxu0 0.0
    %6535 = vmatprep.subr.mxu0 0.0
    %6536 = vmatpush2.msra.mxu0 0.0
    %6537 = vmatprep.subr.mxu0 0.0
    %6538 = vmatpush2.msra.mxu0 0.0
    %6539 = vmatprep.subr.mxu0 0.0
    %6540 = vmatpush2.msra.mxu0 0.0
    %6541 = vmatprep.subr.mxu0 0.0
    %6542 = vmatpush2.msra.mxu0 0.0
    %6543 = vmatprep.subr.mxu0 0.0
    %6544 = vmatpush2.msra.mxu0 0.0
    %6545 = vmatprep.subr.mxu0 0.0
    %6546 = vmatpush2.msra.mxu0 0.0
    %6547 = vmatprep.subr.mxu0 0.0
    %6548 = vmatpush2.msra.mxu0 0.0
    %6549 = vmatprep.subr.mxu0 0.0
    %6550 = vmatpush2.msra.mxu0 0.0
    %6551 = vmatprep.subr.mxu0 0.0
    %6552 = vmatpush2.msra.mxu0 0.0
    %6553 = vmatprep.subr.mxu0 0.0
    %6554 = vmatpush2.msra.mxu0 0.0
    %6555 = vmatprep.subr.mxu0 0.0
    %6556 = vmatpush2.msra.mxu0 0.0
    %6557 = vmatprep.subr.mxu0 0.0
    %6558 = vmatpush2.msra.mxu0 0.0
    %6559 = vmatprep.subr.mxu0 0.0
    %6560 = vmatpush2.msra.mxu0 0.0
    %6561 = vmatprep.subr.mxu0 0.0
    %6562 = vmatpush2.msra.mxu0 0.0
    %6563 = vmatprep.mubr.f32.mxu0 0.0
    %6564 = vmatmul.mubr.f32.gmra.mxu0 %v6497
    %v6565 = vpop.f32.mrf.mxu0
    %v6566 = vadd.f32 0.0, %v6565
    %v6567 = vpop.f32.mrf.mxu0
    %6568 = vdwg.mxu0
    %v6569 = vadd.f32 %v6485, %v6566
    %v6570 = vld [vmem:[%s20] sm:$0x1]
    %v6572 = vlaneseq
    %v6573 = vshrl.u32 %v6572, 7
    %v6574 = vsub.s32 0, %v6573
    %v6575 = vrot.slane %v6570, %v6574
    %v6577 = vadd.f32 %v6569, %v6575
    %v6578 = vld [vmem:[%s21] sm:$0xff]
    %v6579 = vld [vmem:[%s21 + $0x8] sm:$0xff]
    %v6580 = vld [vmem:[%s21 + $0x10] sm:$0xff]
    %v6581 = vld [vmem:[%s21 + $0x18] sm:$0xff]
    %v6582 = vld [vmem:[%s21 + $0x20] sm:$0xff]
    %v6583 = vld [vmem:[%s21 + $0x28] sm:$0xff]
    %v6584 = vld [vmem:[%s21 + $0x30] sm:$0xff]
    %v6585 = vld [vmem:[%s21 + $0x38] sm:$0xff]
    %v6586 = vld [vmem:[#allocation5] sm:$0x1]
    %v6588 = vlaneseq
    %v6589 = vshrl.u32 %v6588, 7
    %v6590 = vsub.s32 0, %v6589
    %v6591 = vrot.slane %v6586, %v6590
    %v6594 = vsel %vm1099, %v6577, 0
    %6596 = vmatprep.subr.mxu0 0.0
    %6597 = vmatpush1.msra.mxu0 0.0
    %6598 = vmatprep.subr.mxu0 0.0
    %6599 = vmatpush1.msra.mxu0 0.0
    %6600 = vmatprep.subr.mxu0 0.0
    %6601 = vmatpush1.msra.mxu0 0.0
    %6602 = vmatprep.subr.mxu0 0.0
    %6603 = vmatpush1.msra.mxu0 0.0
    %6604 = vmatprep.subr.mxu0 0.0
    %6605 = vmatpush1.msra.mxu0 0.0
    %6606 = vmatprep.subr.mxu0 0.0
    %6607 = vmatpush1.msra.mxu0 0.0
    %6608 = vmatprep.subr.mxu0 0.0
    %6609 = vmatpush1.msra.mxu0 0.0
    %6610 = vmatprep.subr.mxu0 0.0
    %6611 = vmatpush1.msra.mxu0 0.0
    %6612 = vmatprep.subr.mxu0 0.0
    %6613 = vmatpush1.msra.mxu0 %v6585
    %6614 = vmatprep.subr.mxu0 0.0
    %6615 = vmatpush1.msra.mxu0 %v6584
    %6616 = vmatprep.subr.mxu0 0.0
    %6617 = vmatpush1.msra.mxu0 %v6583
    %6618 = vmatprep.subr.mxu0 0.0
    %6619 = vmatpush1.msra.mxu0 %v6582
    %6620 = vmatprep.subr.mxu0 0.0
    %6621 = vmatpush1.msra.mxu0 %v6581
    %6622 = vmatprep.subr.mxu0 0.0
    %6623 = vmatpush1.msra.mxu0 %v6580
    %6624 = vmatprep.subr.mxu0 0.0
    %6625 = vmatpush1.msra.mxu0 %v6579
    %6626 = vmatprep.subr.mxu0 0.0
    %6627 = vmatpush1.msra.mxu0 %v6578
    %6628 = vmatprep.subr.mxu0 0.0
    %6629 = vmatpush2.msra.mxu0 0.0
    %6630 = vmatprep.subr.mxu0 0.0
    %6631 = vmatpush2.msra.mxu0 0.0
    %6632 = vmatprep.subr.mxu0 0.0
    %6633 = vmatpush2.msra.mxu0 0.0
    %6634 = vmatprep.subr.mxu0 0.0
    %6635 = vmatpush2.msra.mxu0 0.0
    %6636 = vmatprep.subr.mxu0 0.0
    %6637 = vmatpush2.msra.mxu0 0.0
    %6638 = vmatprep.subr.mxu0 0.0
    %6639 = vmatpush2.msra.mxu0 0.0
    %6640 = vmatprep.subr.mxu0 0.0
    %6641 = vmatpush2.msra.mxu0 0.0
    %6642 = vmatprep.subr.mxu0 0.0
    %6643 = vmatpush2.msra.mxu0 0.0
    %6644 = vmatprep.subr.mxu0 0.0
    %6645 = vmatpush2.msra.mxu0 0.0
    %6646 = vmatprep.subr.mxu0 0.0
    %6647 = vmatpush2.msra.mxu0 0.0
    %6648 = vmatprep.subr.mxu0 0.0
    %6649 = vmatpush2.msra.mxu0 0.0
    %6650 = vmatprep.subr.mxu0 0.0
    %6651 = vmatpush2.msra.mxu0 0.0
    %6652 = vmatprep.subr.mxu0 0.0
    %6653 = vmatpush2.msra.mxu0 0.0
    %6654 = vmatprep.subr.mxu0 0.0
    %6655 = vmatpush2.msra.mxu0 0.0
    %6656 = vmatprep.subr.mxu0 0.0
    %6657 = vmatpush2.msra.mxu0 0.0
    %6658 = vmatprep.subr.mxu0 0.0
    %6659 = vmatpush2.msra.mxu0 0.0
    %6660 = vmatprep.mubr.f32.mxu0 0.0
    %6661 = vmatmul.mubr.f32.gmra.mxu0 %v6594
    %v6662 = vpop.f32.mrf.mxu0
    %v6663 = vadd.f32 %v6591, %v6662
    %v6664 = vpop.f32.mrf.mxu0
    %6665 = vdwg.mxu0
    %6667 = vset.pattern.permute.xlu0 0
    %6668 = vperm.xlu0 %6667, %v6663
    %v6669 = vpop.permute.xlu0 %6668
    %6671 = vst [vmem:[#allocation6] sm:$0xff] %v6669
    // Predicated region
    $region94: #{tpu_custom_call.1} parent=1 // pred_check
      _
    $region95: #{tpu_custom_call.1} parent=1 // pred_check_branch
      %6673 = sbr.rel (0) target = $region97
    $region96: #{tpu_custom_call.1} parent=1 // pred_region
      %s6675 = ssub.s32 128, 128
      %6676 = vsyncadd [#allocation7], %s6675
      %s6678 = sshll.u32 [#allocation6], 4
      %s6679 = int_to_ptr.vmem [resolvable:$true] %s6678
      %6681 = dma.vmem_to_hbm [thread:$0]  %s6679, 128, %s23, [#allocation7]
    $region97: #{tpu_custom_call.1} parent=1 // pred_fallthru
      _
    // Predicated region
    $region98: #{tpu_custom_call.1} parent=1 // pred_check
      _
    $region99: #{tpu_custom_call.1} parent=1 // pred_check_branch
      %6683 = sbr.rel (0) target = $region101
    $region100: #{tpu_custom_call.1} parent=1 // pred_region
      %6684 = dma.done [#allocation7], 128
    $region101: #{tpu_custom_call.1} parent=1 // pred_fallthru
      _
    %6685 = vsyncpa [#allocation7], 1

</llo_original>
